<compile_context>
chip_gen: v7x
topology: tpu7x:2x2x1
jax: 0.10.0
libtpu: 0.0.40
codegen_flags: <defaults>
</compile_context>

<pallas_src>
import jax
import jax.numpy as jnp
import numpy as np
from jax import lax
from jax.experimental import pallas as pl
from jax.experimental.pallas import tpu as pltpu

HIDDEN = 128
NUM_LAYERS = 2
INPUT_SIZE = 2
OUT_DIM = 10
OUT_PAD = 128          # lane-dense padded output width (sliced to OUT_DIM outside)


def _lstm_kernel(xproj_ref,            # (T, B, 4H) f32: x @ w_ih0 + b0, precomputed
                 h0_ref, c0_ref,       # (NUM_LAYERS, B, H) f32 initial states
                 w_hh0_ref,            # (H, 4H) bf16
                 w_l1_ref,             # (2H, 4H) bf16  (fused [w_ih1; w_hh1])
                 b1_ref,               # (1, 4H) f32
                 w_out_ref,            # (H, OUT_PAD) bf16 (zero-padded cols)
                 b_out_ref,            # (1, OUT_PAD) f32  (zero-padded cols)
                 out_ref):             # (B, OUT_PAD) f32
    T = xproj_ref.shape[0]
    B = h0_ref.shape[1]

    # Hoist all weight / bias loads AND the b1 broadcast out of the recurrence
    # (JAX does not CSE loads or broadcast_in_dim; the loop is fully unrolled).
    w_hh0 = w_hh0_ref[...]
    w_l1 = w_l1_ref[...]
    b1_b = jnp.broadcast_to(b1_ref[...], (B, 4 * HIDDEN))

    def gates_to_hc(gates, c_prev):
        i_g = jax.nn.sigmoid(gates[:, 0 * HIDDEN:1 * HIDDEN])
        f_g = jax.nn.sigmoid(gates[:, 1 * HIDDEN:2 * HIDDEN])
        g_g = jnp.tanh(gates[:, 2 * HIDDEN:3 * HIDDEN])
        o_g = jax.nn.sigmoid(gates[:, 3 * HIDDEN:4 * HIDDEN])
        c_new = f_g * c_prev + i_g * g_g
        h_new = o_g * jnp.tanh(c_new)
        return h_new, c_new

    def step(t, carry):
        h0p, c0p, h1p, c1p = carry
        # Layer 0: input projection was precomputed; only the recurrent matmul
        # sits on the serial critical path.
        gates0 = xproj_ref[t] + jnp.dot(h0p.astype(jnp.bfloat16), w_hh0,
                                        preferred_element_type=jnp.float32)
        h0n, c0n = gates_to_hc(gates0, c0p)
        # Layer 1: single fused matmul on concat([x_in, h_prev]) -> (B, 2H)@(2H, 4H).
        cat = jnp.concatenate([h0n, h1p], axis=-1).astype(jnp.bfloat16)
        gates1 = jnp.dot(cat, w_l1, preferred_element_type=jnp.float32) + b1_b
        h1n, c1n = gates_to_hc(gates1, c1p)
        return (h0n, c0n, h1n, c1n)

    carry0 = (h0_ref[0], c0_ref[0], h0_ref[1], c0_ref[1])
    _, _, h1_last, _ = lax.fori_loop(0, T, step, carry0, unroll=True)

    # Final linear projection for the last time step (lane-dense 128-wide store).
    out_ref[...] = (jnp.dot(h1_last.astype(jnp.bfloat16), w_out_ref[...],
                            preferred_element_type=jnp.float32)
                    + b_out_ref[...])


def _vmem_full_spec(shape):
    # Full-array block (no tiling): index_map always returns block (0, ..., 0).
    return pl.BlockSpec(shape, lambda i, _shape=shape: (0,) * len(_shape))


@jax.jit
def lstm_net_forward(x, h0, c0, params):
    """x: (B, T, INPUT_SIZE) f32; h0/c0: (NUM_LAYERS, B, HIDDEN). Returns (B, OUT_DIM)."""
    B, T, _ = x.shape
    w_ih0, b0, w_hh0, w_l1, b1, w_out_p, b_out_p = params

    # Hoist the K=2 layer-0 input projection for ALL time steps into one matmul
    # (off the serial recurrence; fused by XLA into a single tiny op).
    x_tb = jnp.transpose(x, (1, 0, 2))                              # (T, B, 2)
    xproj = (jnp.dot(x_tb.reshape(T * B, INPUT_SIZE).astype(jnp.bfloat16),
                     w_ih0, preferred_element_type=jnp.float32)
             .reshape(T, B, 4 * HIDDEN) + b0)                       # (T, B, 4H) f32

    out_pad = pl.pallas_call(
        _lstm_kernel,
        out_shape=jax.ShapeDtypeStruct((B, OUT_PAD), jnp.float32),
        grid_spec=pltpu.PrefetchScalarGridSpec(
            num_scalar_prefetch=0,
            grid=(1,),                                   # single invocation
            in_specs=[
                _vmem_full_spec((T, B, 4 * HIDDEN)),     # xproj
                _vmem_full_spec((NUM_LAYERS, B, HIDDEN)),  # h0
                _vmem_full_spec((NUM_LAYERS, B, HIDDEN)),  # c0
                _vmem_full_spec((HIDDEN, 4 * HIDDEN)),   # w_hh0 (bf16)
                _vmem_full_spec((2 * HIDDEN, 4 * HIDDEN)),  # w_l1 (bf16, fused)
                _vmem_full_spec((1, 4 * HIDDEN)),        # b1
                _vmem_full_spec((HIDDEN, OUT_PAD)),      # w_out (bf16, padded)
                _vmem_full_spec((1, OUT_PAD)),           # b_out (padded)
            ],
            out_specs=pl.BlockSpec((B, OUT_PAD), lambda i: (0, 0)),
        ),
        compiler_params=pltpu.CompilerParams(
            dimension_semantics=("arbitrary",)),
    )(xproj, h0, c0, w_hh0, w_l1, b1, w_out_p, b_out_p)

    return out_pad[:, :OUT_DIM]


def _init_params(key):
    """Deterministic params mimicking PyTorch's U(-1/sqrt(H), 1/sqrt(H)) init.

    Packed for the kernel:
      w_ih0  : (2, 4H)      bf16   (used only in the wrapper pre-projection)
      b0     : (1, 4H)      f32    (b_ih0 + b_hh0, folded into the pre-projection)
      w_hh0  : (H, 4H)      bf16
      w_l1   : (2H, 4H)     bf16   (concat of w_ih1 and w_hh1)
      b1     : (1, 4H)      f32    (b_ih1 + b_hh1)
      w_out_p: (H, OUT_PAD) bf16   (cols >= OUT_DIM zero)
      b_out_p: (1, OUT_PAD) f32    (cols >= OUT_DIM zero)
    """
    bound = 1.0 / np.sqrt(HIDDEN)
    ks = jax.random.split(key, 10)
    u = lambda k, shape: jax.random.uniform(k, shape, jnp.float32, -bound, bound)

    w_ih0 = u(ks[0], (INPUT_SIZE, 4 * HIDDEN))
    w_hh0 = u(ks[1], (HIDDEN, 4 * HIDDEN))
    b0 = u(ks[2], (1, 4 * HIDDEN)) + u(ks[3], (1, 4 * HIDDEN))
    w_ih1 = u(ks[4], (HIDDEN, 4 * HIDDEN))
    w_hh1 = u(ks[5], (HIDDEN, 4 * HIDDEN))
    b1 = u(ks[6], (1, 4 * HIDDEN)) + u(ks[7], (1, 4 * HIDDEN))
    w_out = u(ks[8], (HIDDEN, OUT_DIM))
    b_out = u(ks[9], (1, OUT_DIM))

    w_l1 = jnp.concatenate([w_ih1, w_hh1], axis=0)                  # (2H, 4H)
    w_out_p = jnp.zeros((HIDDEN, OUT_PAD), jnp.float32).at[:, :OUT_DIM].set(w_out)
    b_out_p = jnp.zeros((1, OUT_PAD), jnp.float32).at[:, :OUT_DIM].set(b_out)

    return (w_ih0.astype(jnp.bfloat16), b0,
            w_hh0.astype(jnp.bfloat16),
            w_l1.astype(jnp.bfloat16), b1,
            w_out_p.astype(jnp.bfloat16), b_out_p)


def _reference(x, h0, c0, params):
    """Pure-JAX reference (lax.scan over time) using the same bf16-weight math."""
    w_ih0, b0, w_hh0, w_l1, b1, w_out_p, b_out_p = params

    def dot32(a, w):
        return jnp.dot(a.astype(jnp.bfloat16), w, preferred_element_type=jnp.float32)

    def cell(gates, c_prev):
        i_g, f_g, g_g, o_g = jnp.split(gates, 4, axis=-1)
        c_new = jax.nn.sigmoid(f_g) * c_prev + jax.nn.sigmoid(i_g) * jnp.tanh(g_g)
        h_new = jax.nn.sigmoid(o_g) * jnp.tanh(c_new)
        return h_new, c_new

    def step(carry, x_t):
        h0p, c0p, h1p, c1p = carry
        g0 = dot32(x_t, w_ih0) + b0 + dot32(h0p, w_hh0)
        h0n, c0n = cell(g0, c0p)
        g1 = dot32(jnp.concatenate([h0n, h1p], axis=-1), w_l1) + b1
        h1n, c1n = cell(g1, c1p)
        return (h0n, c0n, h1n, c1n), None

    x_tb = jnp.transpose(x, (1, 0, 2))
    (_, _, h1_last, _), _ = lax.scan(step, (h0[0], c0[0], h0[1], c0[1]), x_tb)
    out = dot32(h1_last, w_out_p) + b_out_p
    return out[:, :OUT_DIM]


if __name__ == "__main__":
    key = jax.random.PRNGKey(0)
    k_x, k_h, k_c, k_p = jax.random.split(key, 4)

    B, T = 2, 8
    x = jax.random.normal(k_x, (B, T, INPUT_SIZE), jnp.float32)
    # torch.rand(...)-style uniform [0,1) initial states (deterministic here).
    h0 = jax.random.uniform(k_h, (NUM_LAYERS, B, HIDDEN), jnp.float32)
    c0 = jax.random.uniform(k_c, (NUM_LAYERS, B, HIDDEN), jnp.float32)
    params = _init_params(k_p)

    out = lstm_net_forward(x, h0, c0, params)
    out = jax.block_until_ready(out)

    ref = _reference(x, h0, c0, params)
    assert out.shape == (B, OUT_DIM)
    np.testing.assert_allclose(np.asarray(out), np.asarray(ref), rtol=1e-2, atol=1e-2)

    print("KERNEL_OK")
</pallas_src>

<mosaic_0001>
module attributes {stable_mosaic.version = 11 : i64} {
  func.func @_lstm_kernel(%arg0: i32, %arg1: memref<8x2x512xf32, #tpu.memory_space<vmem>>, %arg2: memref<2x2x128xf32, #tpu.memory_space<vmem>>, %arg3: memref<2x2x128xf32, #tpu.memory_space<vmem>>, %arg4: memref<128x512xbf16, #tpu.memory_space<vmem>>, %arg5: memref<256x512xbf16, #tpu.memory_space<vmem>>, %arg6: memref<1x512xf32, #tpu.memory_space<vmem>>, %arg7: memref<128x128xbf16, #tpu.memory_space<vmem>>, %arg8: memref<1x128xf32, #tpu.memory_space<vmem>>, %arg9: memref<2x128xf32, #tpu.memory_space<vmem>>) attributes {dimension_semantics = [#tpu.dimension_semantics<arbitrary>], iteration_bounds = array<i64: 1>, scalar_prefetch = 0 : i64, scratch_operands = 0 : i64, tpu.core_type = #tpu.core_type<tc>, window_params = [{pipeline_mode = #tpu.pipeline_mode<synchronous>, transform_indices = @transform_0, window_bounds = array<i64: 8, 2, 512>}, {pipeline_mode = #tpu.pipeline_mode<synchronous>, transform_indices = @transform_1, window_bounds = array<i64: 2, 2, 128>}, {pipeline_mode = #tpu.pipeline_mode<synchronous>, transform_indices = @transform_2, window_bounds = array<i64: 2, 2, 128>}, {pipeline_mode = #tpu.pipeline_mode<synchronous>, transform_indices = @transform_3, window_bounds = array<i64: 128, 512>}, {pipeline_mode = #tpu.pipeline_mode<synchronous>, transform_indices = @transform_4, window_bounds = array<i64: 256, 512>}, {pipeline_mode = #tpu.pipeline_mode<synchronous>, transform_indices = @transform_5, window_bounds = array<i64: 1, 512>}, {pipeline_mode = #tpu.pipeline_mode<synchronous>, transform_indices = @transform_6, window_bounds = array<i64: 128, 128>}, {pipeline_mode = #tpu.pipeline_mode<synchronous>, transform_indices = @transform_7, window_bounds = array<i64: 1, 128>}, {pipeline_mode = #tpu.pipeline_mode<synchronous>, transform_indices = @transform_8, window_bounds = array<i64: 2, 128>}]} {
    %c0 = arith.constant 0 : index
    %c0_0 = arith.constant 0 : index
    %0 = vector.load %arg4[%c0, %c0_0] : memref<128x512xbf16, #tpu.memory_space<vmem>>, vector<128x512xbf16>
    %c0_1 = arith.constant 0 : index
    %c0_2 = arith.constant 0 : index
    %1 = vector.load %arg5[%c0_1, %c0_2] : memref<256x512xbf16, #tpu.memory_space<vmem>>, vector<256x512xbf16>
    %c0_3 = arith.constant 0 : index
    %c0_4 = arith.constant 0 : index
    %2 = vector.load %arg6[%c0_3, %c0_4] : memref<1x512xf32, #tpu.memory_space<vmem>>, vector<1x512xf32>
    %3 = vector.shape_cast %2 : vector<1x512xf32> to vector<1x512xf32>
    %4 = vector.broadcast %3 : vector<1x512xf32> to vector<2x512xf32>
    %c0_5 = arith.constant 0 : index
    %c0_6 = arith.constant 0 : index
    %c0_7 = arith.constant 0 : index
    %5 = vector.load %arg2[%c0_5, %c0_6, %c0_7] : memref<2x2x128xf32, #tpu.memory_space<vmem>>, vector<1x2x128xf32>
    %6 = vector.shape_cast %5 : vector<1x2x128xf32> to vector<2x128xf32>
    %c0_8 = arith.constant 0 : index
    %c0_9 = arith.constant 0 : index
    %c0_10 = arith.constant 0 : index
    %7 = vector.load %arg3[%c0_8, %c0_9, %c0_10] : memref<2x2x128xf32, #tpu.memory_space<vmem>>, vector<1x2x128xf32>
    %8 = vector.shape_cast %7 : vector<1x2x128xf32> to vector<2x128xf32>
    %c1 = arith.constant 1 : index
    %c0_11 = arith.constant 0 : index
    %c0_12 = arith.constant 0 : index
    %9 = vector.load %arg2[%c1, %c0_11, %c0_12] : memref<2x2x128xf32, #tpu.memory_space<vmem>>, vector<1x2x128xf32>
    %10 = vector.shape_cast %9 : vector<1x2x128xf32> to vector<2x128xf32>
    %c1_13 = arith.constant 1 : index
    %c0_14 = arith.constant 0 : index
    %c0_15 = arith.constant 0 : index
    %11 = vector.load %arg3[%c1_13, %c0_14, %c0_15] : memref<2x2x128xf32, #tpu.memory_space<vmem>>, vector<1x2x128xf32>
    %12 = vector.shape_cast %11 : vector<1x2x128xf32> to vector<2x128xf32>
    %c0_i32 = arith.constant 0 : i32
    %13 = arith.index_cast %c0_i32 : i32 to index
    %c0_16 = arith.constant 0 : index
    %c0_17 = arith.constant 0 : index
    %14 = vector.load %arg1[%13, %c0_16, %c0_17] : memref<8x2x512xf32, #tpu.memory_space<vmem>>, vector<1x2x512xf32>
    %15 = vector.shape_cast %14 : vector<1x2x512xf32> to vector<2x512xf32>
    %16 = arith.truncf %6 : vector<2x128xf32> to vector<2x128xbf16>
    %cst = arith.constant dense<0.000000e+00> : vector<2x512xf32>
    %17 = tpu.matmul %16, %0, %cst {dimension_numbers = #tpu.dot_dimension_numbers<[1], [0], [0], [1], [0, 0, 1, 1], [], []>} : vector<2x128xbf16>, vector<128x512xbf16>, vector<2x512xf32> -> vector<2x512xf32>
    %18 = arith.addf %15, %17 : vector<2x512xf32>
    %19 = vector.extract_strided_slice %18 {offsets = [0, 0], sizes = [2, 128], strides = [1, 1]} : vector<2x512xf32> to vector<2x128xf32>
    %20 = arith.negf %19 : vector<2x128xf32>
    %21 = math.exp %20 : vector<2x128xf32>
    %cst_18 = arith.constant 1.000000e+00 : f32
    %22 = vector.broadcast %cst_18 : f32 to vector<2x128xf32>
    %23 = arith.addf %22, %21 : vector<2x128xf32>
    %24 = arith.divf %22, %23 : vector<2x128xf32>
    %25 = vector.extract_strided_slice %18 {offsets = [0, 128], sizes = [2, 128], strides = [1, 1]} : vector<2x512xf32> to vector<2x128xf32>
    %26 = arith.negf %25 : vector<2x128xf32>
    %27 = math.exp %26 : vector<2x128xf32>
    %cst_19 = arith.constant 1.000000e+00 : f32
    %28 = vector.broadcast %cst_19 : f32 to vector<2x128xf32>
    %29 = arith.addf %28, %27 : vector<2x128xf32>
    %30 = arith.divf %28, %29 : vector<2x128xf32>
    %31 = vector.extract_strided_slice %18 {offsets = [0, 256], sizes = [2, 128], strides = [1, 1]} : vector<2x512xf32> to vector<2x128xf32>
    %32 = math.tanh %31 : vector<2x128xf32>
    %33 = vector.extract_strided_slice %18 {offsets = [0, 384], sizes = [2, 128], strides = [1, 1]} : vector<2x512xf32> to vector<2x128xf32>
    %34 = arith.negf %33 : vector<2x128xf32>
    %35 = math.exp %34 : vector<2x128xf32>
    %cst_20 = arith.constant 1.000000e+00 : f32
    %36 = vector.broadcast %cst_20 : f32 to vector<2x128xf32>
    %37 = arith.addf %36, %35 : vector<2x128xf32>
    %38 = arith.divf %36, %37 : vector<2x128xf32>
    %39 = arith.mulf %30, %8 : vector<2x128xf32>
    %40 = arith.mulf %24, %32 : vector<2x128xf32>
    %41 = arith.addf %39, %40 : vector<2x128xf32>
    %42 = math.tanh %41 : vector<2x128xf32>
    %43 = arith.mulf %38, %42 : vector<2x128xf32>
    %44 = tpu.concatenate %43, %10 in 1 : vector<2x128xf32>, vector<2x128xf32> -> vector<2x256xf32>
    %45 = arith.truncf %44 : vector<2x256xf32> to vector<2x256xbf16>
    %cst_21 = arith.constant dense<0.000000e+00> : vector<2x512xf32>
    %46 = tpu.matmul %45, %1, %cst_21 {dimension_numbers = #tpu.dot_dimension_numbers<[1], [0], [0], [1], [0, 0, 1, 1], [], []>} : vector<2x256xbf16>, vector<256x512xbf16>, vector<2x512xf32> -> vector<2x512xf32>
    %47 = arith.addf %46, %4 : vector<2x512xf32>
    %48 = vector.extract_strided_slice %47 {offsets = [0, 0], sizes = [2, 128], strides = [1, 1]} : vector<2x512xf32> to vector<2x128xf32>
    %49 = arith.negf %48 : vector<2x128xf32>
    %50 = math.exp %49 : vector<2x128xf32>
    %cst_22 = arith.constant 1.000000e+00 : f32
    %51 = vector.broadcast %cst_22 : f32 to vector<2x128xf32>
    %52 = arith.addf %51, %50 : vector<2x128xf32>
    %53 = arith.divf %51, %52 : vector<2x128xf32>
    %54 = vector.extract_strided_slice %47 {offsets = [0, 128], sizes = [2, 128], strides = [1, 1]} : vector<2x512xf32> to vector<2x128xf32>
    %55 = arith.negf %54 : vector<2x128xf32>
    %56 = math.exp %55 : vector<2x128xf32>
    %cst_23 = arith.constant 1.000000e+00 : f32
    %57 = vector.broadcast %cst_23 : f32 to vector<2x128xf32>
    %58 = arith.addf %57, %56 : vector<2x128xf32>
    %59 = arith.divf %57, %58 : vector<2x128xf32>
    %60 = vector.extract_strided_slice %47 {offsets = [0, 256], sizes = [2, 128], strides = [1, 1]} : vector<2x512xf32> to vector<2x128xf32>
    %61 = math.tanh %60 : vector<2x128xf32>
    %62 = vector.extract_strided_slice %47 {offsets = [0, 384], sizes = [2, 128], strides = [1, 1]} : vector<2x512xf32> to vector<2x128xf32>
    %63 = arith.negf %62 : vector<2x128xf32>
    %64 = math.exp %63 : vector<2x128xf32>
    %cst_24 = arith.constant 1.000000e+00 : f32
    %65 = vector.broadcast %cst_24 : f32 to vector<2x128xf32>
    %66 = arith.addf %65, %64 : vector<2x128xf32>
    %67 = arith.divf %65, %66 : vector<2x128xf32>
    %68 = arith.mulf %59, %12 : vector<2x128xf32>
    %69 = arith.mulf %53, %61 : vector<2x128xf32>
    %70 = arith.addf %68, %69 : vector<2x128xf32>
    %71 = math.tanh %70 : vector<2x128xf32>
    %72 = arith.mulf %67, %71 : vector<2x128xf32>
    %c1_i32 = arith.constant 1 : i32
    %73 = arith.index_cast %c1_i32 : i32 to index
    %c0_25 = arith.constant 0 : index
    %c0_26 = arith.constant 0 : index
    %74 = vector.load %arg1[%73, %c0_25, %c0_26] : memref<8x2x512xf32, #tpu.memory_space<vmem>>, vector<1x2x512xf32>
    %75 = vector.shape_cast %74 : vector<1x2x512xf32> to vector<2x512xf32>
    %76 = arith.truncf %43 : vector<2x128xf32> to vector<2x128xbf16>
    %cst_27 = arith.constant dense<0.000000e+00> : vector<2x512xf32>
    %77 = tpu.matmul %76, %0, %cst_27 {dimension_numbers = #tpu.dot_dimension_numbers<[1], [0], [0], [1], [0, 0, 1, 1], [], []>} : vector<2x128xbf16>, vector<128x512xbf16>, vector<2x512xf32> -> vector<2x512xf32>
    %78 = arith.addf %75, %77 : vector<2x512xf32>
    %79 = vector.extract_strided_slice %78 {offsets = [0, 0], sizes = [2, 128], strides = [1, 1]} : vector<2x512xf32> to vector<2x128xf32>
    %80 = arith.negf %79 : vector<2x128xf32>
    %81 = math.exp %80 : vector<2x128xf32>
    %cst_28 = arith.constant 1.000000e+00 : f32
    %82 = vector.broadcast %cst_28 : f32 to vector<2x128xf32>
    %83 = arith.addf %82, %81 : vector<2x128xf32>
    %84 = arith.divf %82, %83 : vector<2x128xf32>
    %85 = vector.extract_strided_slice %78 {offsets = [0, 128], sizes = [2, 128], strides = [1, 1]} : vector<2x512xf32> to vector<2x128xf32>
    %86 = arith.negf %85 : vector<2x128xf32>
    %87 = math.exp %86 : vector<2x128xf32>
    %cst_29 = arith.constant 1.000000e+00 : f32
    %88 = vector.broadcast %cst_29 : f32 to vector<2x128xf32>
    %89 = arith.addf %88, %87 : vector<2x128xf32>
    %90 = arith.divf %88, %89 : vector<2x128xf32>
    %91 = vector.extract_strided_slice %78 {offsets = [0, 256], sizes = [2, 128], strides = [1, 1]} : vector<2x512xf32> to vector<2x128xf32>
    %92 = math.tanh %91 : vector<2x128xf32>
    %93 = vector.extract_strided_slice %78 {offsets = [0, 384], sizes = [2, 128], strides = [1, 1]} : vector<2x512xf32> to vector<2x128xf32>
    %94 = arith.negf %93 : vector<2x128xf32>
    %95 = math.exp %94 : vector<2x128xf32>
    %cst_30 = arith.constant 1.000000e+00 : f32
    %96 = vector.broadcast %cst_30 : f32 to vector<2x128xf32>
    %97 = arith.addf %96, %95 : vector<2x128xf32>
    %98 = arith.divf %96, %97 : vector<2x128xf32>
    %99 = arith.mulf %90, %41 : vector<2x128xf32>
    %100 = arith.mulf %84, %92 : vector<2x128xf32>
    %101 = arith.addf %99, %100 : vector<2x128xf32>
    %102 = math.tanh %101 : vector<2x128xf32>
    %103 = arith.mulf %98, %102 : vector<2x128xf32>
    %104 = tpu.concatenate %103, %72 in 1 : vector<2x128xf32>, vector<2x128xf32> -> vector<2x256xf32>
    %105 = arith.truncf %104 : vector<2x256xf32> to vector<2x256xbf16>
    %cst_31 = arith.constant dense<0.000000e+00> : vector<2x512xf32>
    %106 = tpu.matmul %105, %1, %cst_31 {dimension_numbers = #tpu.dot_dimension_numbers<[1], [0], [0], [1], [0, 0, 1, 1], [], []>} : vector<2x256xbf16>, vector<256x512xbf16>, vector<2x512xf32> -> vector<2x512xf32>
    %107 = arith.addf %106, %4 : vector<2x512xf32>
    %108 = vector.extract_strided_slice %107 {offsets = [0, 0], sizes = [2, 128], strides = [1, 1]} : vector<2x512xf32> to vector<2x128xf32>
    %109 = arith.negf %108 : vector<2x128xf32>
    %110 = math.exp %109 : vector<2x128xf32>
    %cst_32 = arith.constant 1.000000e+00 : f32
    %111 = vector.broadcast %cst_32 : f32 to vector<2x128xf32>
    %112 = arith.addf %111, %110 : vector<2x128xf32>
    %113 = arith.divf %111, %112 : vector<2x128xf32>
    %114 = vector.extract_strided_slice %107 {offsets = [0, 128], sizes = [2, 128], strides = [1, 1]} : vector<2x512xf32> to vector<2x128xf32>
    %115 = arith.negf %114 : vector<2x128xf32>
    %116 = math.exp %115 : vector<2x128xf32>
    %cst_33 = arith.constant 1.000000e+00 : f32
    %117 = vector.broadcast %cst_33 : f32 to vector<2x128xf32>
    %118 = arith.addf %117, %116 : vector<2x128xf32>
    %119 = arith.divf %117, %118 : vector<2x128xf32>
    %120 = vector.extract_strided_slice %107 {offsets = [0, 256], sizes = [2, 128], strides = [1, 1]} : vector<2x512xf32> to vector<2x128xf32>
    %121 = math.tanh %120 : vector<2x128xf32>
    %122 = vector.extract_strided_slice %107 {offsets = [0, 384], sizes = [2, 128], strides = [1, 1]} : vector<2x512xf32> to vector<2x128xf32>
    %123 = arith.negf %122 : vector<2x128xf32>
    %124 = math.exp %123 : vector<2x128xf32>
    %cst_34 = arith.constant 1.000000e+00 : f32
    %125 = vector.broadcast %cst_34 : f32 to vector<2x128xf32>
    %126 = arith.addf %125, %124 : vector<2x128xf32>
    %127 = arith.divf %125, %126 : vector<2x128xf32>
    %128 = arith.mulf %119, %70 : vector<2x128xf32>
    %129 = arith.mulf %113, %121 : vector<2x128xf32>
    %130 = arith.addf %128, %129 : vector<2x128xf32>
    %131 = math.tanh %130 : vector<2x128xf32>
    %132 = arith.mulf %127, %131 : vector<2x128xf32>
    %c2_i32 = arith.constant 2 : i32
    %133 = arith.index_cast %c2_i32 : i32 to index
    %c0_35 = arith.constant 0 : index
    %c0_36 = arith.constant 0 : index
    %134 = vector.load %arg1[%133, %c0_35, %c0_36] : memref<8x2x512xf32, #tpu.memory_space<vmem>>, vector<1x2x512xf32>
    %135 = vector.shape_cast %134 : vector<1x2x512xf32> to vector<2x512xf32>
    %136 = arith.truncf %103 : vector<2x128xf32> to vector<2x128xbf16>
    %cst_37 = arith.constant dense<0.000000e+00> : vector<2x512xf32>
    %137 = tpu.matmul %136, %0, %cst_37 {dimension_numbers = #tpu.dot_dimension_numbers<[1], [0], [0], [1], [0, 0, 1, 1], [], []>} : vector<2x128xbf16>, vector<128x512xbf16>, vector<2x512xf32> -> vector<2x512xf32>
    %138 = arith.addf %135, %137 : vector<2x512xf32>
    %139 = vector.extract_strided_slice %138 {offsets = [0, 0], sizes = [2, 128], strides = [1, 1]} : vector<2x512xf32> to vector<2x128xf32>
    %140 = arith.negf %139 : vector<2x128xf32>
    %141 = math.exp %140 : vector<2x128xf32>
    %cst_38 = arith.constant 1.000000e+00 : f32
    %142 = vector.broadcast %cst_38 : f32 to vector<2x128xf32>
    %143 = arith.addf %142, %141 : vector<2x128xf32>
    %144 = arith.divf %142, %143 : vector<2x128xf32>
    %145 = vector.extract_strided_slice %138 {offsets = [0, 128], sizes = [2, 128], strides = [1, 1]} : vector<2x512xf32> to vector<2x128xf32>
    %146 = arith.negf %145 : vector<2x128xf32>
    %147 = math.exp %146 : vector<2x128xf32>
    %cst_39 = arith.constant 1.000000e+00 : f32
    %148 = vector.broadcast %cst_39 : f32 to vector<2x128xf32>
    %149 = arith.addf %148, %147 : vector<2x128xf32>
    %150 = arith.divf %148, %149 : vector<2x128xf32>
    %151 = vector.extract_strided_slice %138 {offsets = [0, 256], sizes = [2, 128], strides = [1, 1]} : vector<2x512xf32> to vector<2x128xf32>
    %152 = math.tanh %151 : vector<2x128xf32>
    %153 = vector.extract_strided_slice %138 {offsets = [0, 384], sizes = [2, 128], strides = [1, 1]} : vector<2x512xf32> to vector<2x128xf32>
    %154 = arith.negf %153 : vector<2x128xf32>
    %155 = math.exp %154 : vector<2x128xf32>
    %cst_40 = arith.constant 1.000000e+00 : f32
    %156 = vector.broadcast %cst_40 : f32 to vector<2x128xf32>
    %157 = arith.addf %156, %155 : vector<2x128xf32>
    %158 = arith.divf %156, %157 : vector<2x128xf32>
    %159 = arith.mulf %150, %101 : vector<2x128xf32>
    %160 = arith.mulf %144, %152 : vector<2x128xf32>
    %161 = arith.addf %159, %160 : vector<2x128xf32>
    %162 = math.tanh %161 : vector<2x128xf32>
    %163 = arith.mulf %158, %162 : vector<2x128xf32>
    %164 = tpu.concatenate %163, %132 in 1 : vector<2x128xf32>, vector<2x128xf32> -> vector<2x256xf32>
    %165 = arith.truncf %164 : vector<2x256xf32> to vector<2x256xbf16>
    %cst_41 = arith.constant dense<0.000000e+00> : vector<2x512xf32>
    %166 = tpu.matmul %165, %1, %cst_41 {dimension_numbers = #tpu.dot_dimension_numbers<[1], [0], [0], [1], [0, 0, 1, 1], [], []>} : vector<2x256xbf16>, vector<256x512xbf16>, vector<2x512xf32> -> vector<2x512xf32>
    %167 = arith.addf %166, %4 : vector<2x512xf32>
    %168 = vector.extract_strided_slice %167 {offsets = [0, 0], sizes = [2, 128], strides = [1, 1]} : vector<2x512xf32> to vector<2x128xf32>
    %169 = arith.negf %168 : vector<2x128xf32>
    %170 = math.exp %169 : vector<2x128xf32>
    %cst_42 = arith.constant 1.000000e+00 : f32
    %171 = vector.broadcast %cst_42 : f32 to vector<2x128xf32>
    %172 = arith.addf %171, %170 : vector<2x128xf32>
    %173 = arith.divf %171, %172 : vector<2x128xf32>
    %174 = vector.extract_strided_slice %167 {offsets = [0, 128], sizes = [2, 128], strides = [1, 1]} : vector<2x512xf32> to vector<2x128xf32>
    %175 = arith.negf %174 : vector<2x128xf32>
    %176 = math.exp %175 : vector<2x128xf32>
    %cst_43 = arith.constant 1.000000e+00 : f32
    %177 = vector.broadcast %cst_43 : f32 to vector<2x128xf32>
    %178 = arith.addf %177, %176 : vector<2x128xf32>
    %179 = arith.divf %177, %178 : vector<2x128xf32>
    %180 = vector.extract_strided_slice %167 {offsets = [0, 256], sizes = [2, 128], strides = [1, 1]} : vector<2x512xf32> to vector<2x128xf32>
    %181 = math.tanh %180 : vector<2x128xf32>
    %182 = vector.extract_strided_slice %167 {offsets = [0, 384], sizes = [2, 128], strides = [1, 1]} : vector<2x512xf32> to vector<2x128xf32>
    %183 = arith.negf %182 : vector<2x128xf32>
    %184 = math.exp %183 : vector<2x128xf32>
    %cst_44 = arith.constant 1.000000e+00 : f32
    %185 = vector.broadcast %cst_44 : f32 to vector<2x128xf32>
    %186 = arith.addf %185, %184 : vector<2x128xf32>
    %187 = arith.divf %185, %186 : vector<2x128xf32>
    %188 = arith.mulf %179, %130 : vector<2x128xf32>
    %189 = arith.mulf %173, %181 : vector<2x128xf32>
    %190 = arith.addf %188, %189 : vector<2x128xf32>
    %191 = math.tanh %190 : vector<2x128xf32>
    %192 = arith.mulf %187, %191 : vector<2x128xf32>
    %c3_i32 = arith.constant 3 : i32
    %193 = arith.index_cast %c3_i32 : i32 to index
    %c0_45 = arith.constant 0 : index
    %c0_46 = arith.constant 0 : index
    %194 = vector.load %arg1[%193, %c0_45, %c0_46] : memref<8x2x512xf32, #tpu.memory_space<vmem>>, vector<1x2x512xf32>
    %195 = vector.shape_cast %194 : vector<1x2x512xf32> to vector<2x512xf32>
    %196 = arith.truncf %163 : vector<2x128xf32> to vector<2x128xbf16>
    %cst_47 = arith.constant dense<0.000000e+00> : vector<2x512xf32>
    %197 = tpu.matmul %196, %0, %cst_47 {dimension_numbers = #tpu.dot_dimension_numbers<[1], [0], [0], [1], [0, 0, 1, 1], [], []>} : vector<2x128xbf16>, vector<128x512xbf16>, vector<2x512xf32> -> vector<2x512xf32>
    %198 = arith.addf %195, %197 : vector<2x512xf32>
    %199 = vector.extract_strided_slice %198 {offsets = [0, 0], sizes = [2, 128], strides = [1, 1]} : vector<2x512xf32> to vector<2x128xf32>
    %200 = arith.negf %199 : vector<2x128xf32>
    %201 = math.exp %200 : vector<2x128xf32>
    %cst_48 = arith.constant 1.000000e+00 : f32
    %202 = vector.broadcast %cst_48 : f32 to vector<2x128xf32>
    %203 = arith.addf %202, %201 : vector<2x128xf32>
    %204 = arith.divf %202, %203 : vector<2x128xf32>
    %205 = vector.extract_strided_slice %198 {offsets = [0, 128], sizes = [2, 128], strides = [1, 1]} : vector<2x512xf32> to vector<2x128xf32>
    %206 = arith.negf %205 : vector<2x128xf32>
    %207 = math.exp %206 : vector<2x128xf32>
    %cst_49 = arith.constant 1.000000e+00 : f32
    %208 = vector.broadcast %cst_49 : f32 to vector<2x128xf32>
    %209 = arith.addf %208, %207 : vector<2x128xf32>
    %210 = arith.divf %208, %209 : vector<2x128xf32>
    %211 = vector.extract_strided_slice %198 {offsets = [0, 256], sizes = [2, 128], strides = [1, 1]} : vector<2x512xf32> to vector<2x128xf32>
    %212 = math.tanh %211 : vector<2x128xf32>
    %213 = vector.extract_strided_slice %198 {offsets = [0, 384], sizes = [2, 128], strides = [1, 1]} : vector<2x512xf32> to vector<2x128xf32>
    %214 = arith.negf %213 : vector<2x128xf32>
    %215 = math.exp %214 : vector<2x128xf32>
    %cst_50 = arith.constant 1.000000e+00 : f32
    %216 = vector.broadcast %cst_50 : f32 to vector<2x128xf32>
    %217 = arith.addf %216, %215 : vector<2x128xf32>
    %218 = arith.divf %216, %217 : vector<2x128xf32>
    %219 = arith.mulf %210, %161 : vector<2x128xf32>
    %220 = arith.mulf %204, %212 : vector<2x128xf32>
    %221 = arith.addf %219, %220 : vector<2x128xf32>
    %222 = math.tanh %221 : vector<2x128xf32>
    %223 = arith.mulf %218, %222 : vector<2x128xf32>
    %224 = tpu.concatenate %223, %192 in 1 : vector<2x128xf32>, vector<2x128xf32> -> vector<2x256xf32>
    %225 = arith.truncf %224 : vector<2x256xf32> to vector<2x256xbf16>
    %cst_51 = arith.constant dense<0.000000e+00> : vector<2x512xf32>
    %226 = tpu.matmul %225, %1, %cst_51 {dimension_numbers = #tpu.dot_dimension_numbers<[1], [0], [0], [1], [0, 0, 1, 1], [], []>} : vector<2x256xbf16>, vector<256x512xbf16>, vector<2x512xf32> -> vector<2x512xf32>
    %227 = arith.addf %226, %4 : vector<2x512xf32>
    %228 = vector.extract_strided_slice %227 {offsets = [0, 0], sizes = [2, 128], strides = [1, 1]} : vector<2x512xf32> to vector<2x128xf32>
    %229 = arith.negf %228 : vector<2x128xf32>
    %230 = math.exp %229 : vector<2x128xf32>
    %cst_52 = arith.constant 1.000000e+00 : f32
    %231 = vector.broadcast %cst_52 : f32 to vector<2x128xf32>
    %232 = arith.addf %231, %230 : vector<2x128xf32>
    %233 = arith.divf %231, %232 : vector<2x128xf32>
    %234 = vector.extract_strided_slice %227 {offsets = [0, 128], sizes = [2, 128], strides = [1, 1]} : vector<2x512xf32> to vector<2x128xf32>
    %235 = arith.negf %234 : vector<2x128xf32>
    %236 = math.exp %235 : vector<2x128xf32>
    %cst_53 = arith.constant 1.000000e+00 : f32
    %237 = vector.broadcast %cst_53 : f32 to vector<2x128xf32>
    %238 = arith.addf %237, %236 : vector<2x128xf32>
    %239 = arith.divf %237, %238 : vector<2x128xf32>
    %240 = vector.extract_strided_slice %227 {offsets = [0, 256], sizes = [2, 128], strides = [1, 1]} : vector<2x512xf32> to vector<2x128xf32>
    %241 = math.tanh %240 : vector<2x128xf32>
    %242 = vector.extract_strided_slice %227 {offsets = [0, 384], sizes = [2, 128], strides = [1, 1]} : vector<2x512xf32> to vector<2x128xf32>
    %243 = arith.negf %242 : vector<2x128xf32>
    %244 = math.exp %243 : vector<2x128xf32>
    %cst_54 = arith.constant 1.000000e+00 : f32
    %245 = vector.broadcast %cst_54 : f32 to vector<2x128xf32>
    %246 = arith.addf %245, %244 : vector<2x128xf32>
    %247 = arith.divf %245, %246 : vector<2x128xf32>
    %248 = arith.mulf %239, %190 : vector<2x128xf32>
    %249 = arith.mulf %233, %241 : vector<2x128xf32>
    %250 = arith.addf %248, %249 : vector<2x128xf32>
    %251 = math.tanh %250 : vector<2x128xf32>
    %252 = arith.mulf %247, %251 : vector<2x128xf32>
    %c4_i32 = arith.constant 4 : i32
    %253 = arith.index_cast %c4_i32 : i32 to index
    %c0_55 = arith.constant 0 : index
    %c0_56 = arith.constant 0 : index
    %254 = vector.load %arg1[%253, %c0_55, %c0_56] : memref<8x2x512xf32, #tpu.memory_space<vmem>>, vector<1x2x512xf32>
    %255 = vector.shape_cast %254 : vector<1x2x512xf32> to vector<2x512xf32>
    %256 = arith.truncf %223 : vector<2x128xf32> to vector<2x128xbf16>
    %cst_57 = arith.constant dense<0.000000e+00> : vector<2x512xf32>
    %257 = tpu.matmul %256, %0, %cst_57 {dimension_numbers = #tpu.dot_dimension_numbers<[1], [0], [0], [1], [0, 0, 1, 1], [], []>} : vector<2x128xbf16>, vector<128x512xbf16>, vector<2x512xf32> -> vector<2x512xf32>
    %258 = arith.addf %255, %257 : vector<2x512xf32>
    %259 = vector.extract_strided_slice %258 {offsets = [0, 0], sizes = [2, 128], strides = [1, 1]} : vector<2x512xf32> to vector<2x128xf32>
    %260 = arith.negf %259 : vector<2x128xf32>
    %261 = math.exp %260 : vector<2x128xf32>
    %cst_58 = arith.constant 1.000000e+00 : f32
    %262 = vector.broadcast %cst_58 : f32 to vector<2x128xf32>
    %263 = arith.addf %262, %261 : vector<2x128xf32>
    %264 = arith.divf %262, %263 : vector<2x128xf32>
    %265 = vector.extract_strided_slice %258 {offsets = [0, 128], sizes = [2, 128], strides = [1, 1]} : vector<2x512xf32> to vector<2x128xf32>
    %266 = arith.negf %265 : vector<2x128xf32>
    %267 = math.exp %266 : vector<2x128xf32>
    %cst_59 = arith.constant 1.000000e+00 : f32
    %268 = vector.broadcast %cst_59 : f32 to vector<2x128xf32>
    %269 = arith.addf %268, %267 : vector<2x128xf32>
    %270 = arith.divf %268, %269 : vector<2x128xf32>
    %271 = vector.extract_strided_slice %258 {offsets = [0, 256], sizes = [2, 128], strides = [1, 1]} : vector<2x512xf32> to vector<2x128xf32>
    %272 = math.tanh %271 : vector<2x128xf32>
    %273 = vector.extract_strided_slice %258 {offsets = [0, 384], sizes = [2, 128], strides = [1, 1]} : vector<2x512xf32> to vector<2x128xf32>
    %274 = arith.negf %273 : vector<2x128xf32>
    %275 = math.exp %274 : vector<2x128xf32>
    %cst_60 = arith.constant 1.000000e+00 : f32
    %276 = vector.broadcast %cst_60 : f32 to vector<2x128xf32>
    %277 = arith.addf %276, %275 : vector<2x128xf32>
    %278 = arith.divf %276, %277 : vector<2x128xf32>
    %279 = arith.mulf %270, %221 : vector<2x128xf32>
    %280 = arith.mulf %264, %272 : vector<2x128xf32>
    %281 = arith.addf %279, %280 : vector<2x128xf32>
    %282 = math.tanh %281 : vector<2x128xf32>
    %283 = arith.mulf %278, %282 : vector<2x128xf32>
    %284 = tpu.concatenate %283, %252 in 1 : vector<2x128xf32>, vector<2x128xf32> -> vector<2x256xf32>
    %285 = arith.truncf %284 : vector<2x256xf32> to vector<2x256xbf16>
    %cst_61 = arith.constant dense<0.000000e+00> : vector<2x512xf32>
    %286 = tpu.matmul %285, %1, %cst_61 {dimension_numbers = #tpu.dot_dimension_numbers<[1], [0], [0], [1], [0, 0, 1, 1], [], []>} : vector<2x256xbf16>, vector<256x512xbf16>, vector<2x512xf32> -> vector<2x512xf32>
    %287 = arith.addf %286, %4 : vector<2x512xf32>
    %288 = vector.extract_strided_slice %287 {offsets = [0, 0], sizes = [2, 128], strides = [1, 1]} : vector<2x512xf32> to vector<2x128xf32>
    %289 = arith.negf %288 : vector<2x128xf32>
    %290 = math.exp %289 : vector<2x128xf32>
    %cst_62 = arith.constant 1.000000e+00 : f32
    %291 = vector.broadcast %cst_62 : f32 to vector<2x128xf32>
    %292 = arith.addf %291, %290 : vector<2x128xf32>
    %293 = arith.divf %291, %292 : vector<2x128xf32>
    %294 = vector.extract_strided_slice %287 {offsets = [0, 128], sizes = [2, 128], strides = [1, 1]} : vector<2x512xf32> to vector<2x128xf32>
    %295 = arith.negf %294 : vector<2x128xf32>
    %296 = math.exp %295 : vector<2x128xf32>
    %cst_63 = arith.constant 1.000000e+00 : f32
    %297 = vector.broadcast %cst_63 : f32 to vector<2x128xf32>
    %298 = arith.addf %297, %296 : vector<2x128xf32>
    %299 = arith.divf %297, %298 : vector<2x128xf32>
    %300 = vector.extract_strided_slice %287 {offsets = [0, 256], sizes = [2, 128], strides = [1, 1]} : vector<2x512xf32> to vector<2x128xf32>
    %301 = math.tanh %300 : vector<2x128xf32>
    %302 = vector.extract_strided_slice %287 {offsets = [0, 384], sizes = [2, 128], strides = [1, 1]} : vector<2x512xf32> to vector<2x128xf32>
    %303 = arith.negf %302 : vector<2x128xf32>
    %304 = math.exp %303 : vector<2x128xf32>
    %cst_64 = arith.constant 1.000000e+00 : f32
    %305 = vector.broadcast %cst_64 : f32 to vector<2x128xf32>
    %306 = arith.addf %305, %304 : vector<2x128xf32>
    %307 = arith.divf %305, %306 : vector<2x128xf32>
    %308 = arith.mulf %299, %250 : vector<2x128xf32>
    %309 = arith.mulf %293, %301 : vector<2x128xf32>
    %310 = arith.addf %308, %309 : vector<2x128xf32>
    %311 = math.tanh %310 : vector<2x128xf32>
    %312 = arith.mulf %307, %311 : vector<2x128xf32>
    %c5_i32 = arith.constant 5 : i32
    %313 = arith.index_cast %c5_i32 : i32 to index
    %c0_65 = arith.constant 0 : index
    %c0_66 = arith.constant 0 : index
    %314 = vector.load %arg1[%313, %c0_65, %c0_66] : memref<8x2x512xf32, #tpu.memory_space<vmem>>, vector<1x2x512xf32>
    %315 = vector.shape_cast %314 : vector<1x2x512xf32> to vector<2x512xf32>
    %316 = arith.truncf %283 : vector<2x128xf32> to vector<2x128xbf16>
    %cst_67 = arith.constant dense<0.000000e+00> : vector<2x512xf32>
    %317 = tpu.matmul %316, %0, %cst_67 {dimension_numbers = #tpu.dot_dimension_numbers<[1], [0], [0], [1], [0, 0, 1, 1], [], []>} : vector<2x128xbf16>, vector<128x512xbf16>, vector<2x512xf32> -> vector<2x512xf32>
    %318 = arith.addf %315, %317 : vector<2x512xf32>
    %319 = vector.extract_strided_slice %318 {offsets = [0, 0], sizes = [2, 128], strides = [1, 1]} : vector<2x512xf32> to vector<2x128xf32>
    %320 = arith.negf %319 : vector<2x128xf32>
    %321 = math.exp %320 : vector<2x128xf32>
    %cst_68 = arith.constant 1.000000e+00 : f32
    %322 = vector.broadcast %cst_68 : f32 to vector<2x128xf32>
    %323 = arith.addf %322, %321 : vector<2x128xf32>
    %324 = arith.divf %322, %323 : vector<2x128xf32>
    %325 = vector.extract_strided_slice %318 {offsets = [0, 128], sizes = [2, 128], strides = [1, 1]} : vector<2x512xf32> to vector<2x128xf32>
    %326 = arith.negf %325 : vector<2x128xf32>
    %327 = math.exp %326 : vector<2x128xf32>
    %cst_69 = arith.constant 1.000000e+00 : f32
    %328 = vector.broadcast %cst_69 : f32 to vector<2x128xf32>
    %329 = arith.addf %328, %327 : vector<2x128xf32>
    %330 = arith.divf %328, %329 : vector<2x128xf32>
    %331 = vector.extract_strided_slice %318 {offsets = [0, 256], sizes = [2, 128], strides = [1, 1]} : vector<2x512xf32> to vector<2x128xf32>
    %332 = math.tanh %331 : vector<2x128xf32>
    %333 = vector.extract_strided_slice %318 {offsets = [0, 384], sizes = [2, 128], strides = [1, 1]} : vector<2x512xf32> to vector<2x128xf32>
    %334 = arith.negf %333 : vector<2x128xf32>
    %335 = math.exp %334 : vector<2x128xf32>
    %cst_70 = arith.constant 1.000000e+00 : f32
    %336 = vector.broadcast %cst_70 : f32 to vector<2x128xf32>
    %337 = arith.addf %336, %335 : vector<2x128xf32>
    %338 = arith.divf %336, %337 : vector<2x128xf32>
    %339 = arith.mulf %330, %281 : vector<2x128xf32>
    %340 = arith.mulf %324, %332 : vector<2x128xf32>
    %341 = arith.addf %339, %340 : vector<2x128xf32>
    %342 = math.tanh %341 : vector<2x128xf32>
    %343 = arith.mulf %338, %342 : vector<2x128xf32>
    %344 = tpu.concatenate %343, %312 in 1 : vector<2x128xf32>, vector<2x128xf32> -> vector<2x256xf32>
    %345 = arith.truncf %344 : vector<2x256xf32> to vector<2x256xbf16>
    %cst_71 = arith.constant dense<0.000000e+00> : vector<2x512xf32>
    %346 = tpu.matmul %345, %1, %cst_71 {dimension_numbers = #tpu.dot_dimension_numbers<[1], [0], [0], [1], [0, 0, 1, 1], [], []>} : vector<2x256xbf16>, vector<256x512xbf16>, vector<2x512xf32> -> vector<2x512xf32>
    %347 = arith.addf %346, %4 : vector<2x512xf32>
    %348 = vector.extract_strided_slice %347 {offsets = [0, 0], sizes = [2, 128], strides = [1, 1]} : vector<2x512xf32> to vector<2x128xf32>
    %349 = arith.negf %348 : vector<2x128xf32>
    %350 = math.exp %349 : vector<2x128xf32>
    %cst_72 = arith.constant 1.000000e+00 : f32
    %351 = vector.broadcast %cst_72 : f32 to vector<2x128xf32>
    %352 = arith.addf %351, %350 : vector<2x128xf32>
    %353 = arith.divf %351, %352 : vector<2x128xf32>
    %354 = vector.extract_strided_slice %347 {offsets = [0, 128], sizes = [2, 128], strides = [1, 1]} : vector<2x512xf32> to vector<2x128xf32>
    %355 = arith.negf %354 : vector<2x128xf32>
    %356 = math.exp %355 : vector<2x128xf32>
    %cst_73 = arith.constant 1.000000e+00 : f32
    %357 = vector.broadcast %cst_73 : f32 to vector<2x128xf32>
    %358 = arith.addf %357, %356 : vector<2x128xf32>
    %359 = arith.divf %357, %358 : vector<2x128xf32>
    %360 = vector.extract_strided_slice %347 {offsets = [0, 256], sizes = [2, 128], strides = [1, 1]} : vector<2x512xf32> to vector<2x128xf32>
    %361 = math.tanh %360 : vector<2x128xf32>
    %362 = vector.extract_strided_slice %347 {offsets = [0, 384], sizes = [2, 128], strides = [1, 1]} : vector<2x512xf32> to vector<2x128xf32>
    %363 = arith.negf %362 : vector<2x128xf32>
    %364 = math.exp %363 : vector<2x128xf32>
    %cst_74 = arith.constant 1.000000e+00 : f32
    %365 = vector.broadcast %cst_74 : f32 to vector<2x128xf32>
    %366 = arith.addf %365, %364 : vector<2x128xf32>
    %367 = arith.divf %365, %366 : vector<2x128xf32>
    %368 = arith.mulf %359, %310 : vector<2x128xf32>
    %369 = arith.mulf %353, %361 : vector<2x128xf32>
    %370 = arith.addf %368, %369 : vector<2x128xf32>
    %371 = math.tanh %370 : vector<2x128xf32>
    %372 = arith.mulf %367, %371 : vector<2x128xf32>
    %c6_i32 = arith.constant 6 : i32
    %373 = arith.index_cast %c6_i32 : i32 to index
    %c0_75 = arith.constant 0 : index
    %c0_76 = arith.constant 0 : index
    %374 = vector.load %arg1[%373, %c0_75, %c0_76] : memref<8x2x512xf32, #tpu.memory_space<vmem>>, vector<1x2x512xf32>
    %375 = vector.shape_cast %374 : vector<1x2x512xf32> to vector<2x512xf32>
    %376 = arith.truncf %343 : vector<2x128xf32> to vector<2x128xbf16>
    %cst_77 = arith.constant dense<0.000000e+00> : vector<2x512xf32>
    %377 = tpu.matmul %376, %0, %cst_77 {dimension_numbers = #tpu.dot_dimension_numbers<[1], [0], [0], [1], [0, 0, 1, 1], [], []>} : vector<2x128xbf16>, vector<128x512xbf16>, vector<2x512xf32> -> vector<2x512xf32>
    %378 = arith.addf %375, %377 : vector<2x512xf32>
    %379 = vector.extract_strided_slice %378 {offsets = [0, 0], sizes = [2, 128], strides = [1, 1]} : vector<2x512xf32> to vector<2x128xf32>
    %380 = arith.negf %379 : vector<2x128xf32>
    %381 = math.exp %380 : vector<2x128xf32>
    %cst_78 = arith.constant 1.000000e+00 : f32
    %382 = vector.broadcast %cst_78 : f32 to vector<2x128xf32>
    %383 = arith.addf %382, %381 : vector<2x128xf32>
    %384 = arith.divf %382, %383 : vector<2x128xf32>
    %385 = vector.extract_strided_slice %378 {offsets = [0, 128], sizes = [2, 128], strides = [1, 1]} : vector<2x512xf32> to vector<2x128xf32>
    %386 = arith.negf %385 : vector<2x128xf32>
    %387 = math.exp %386 : vector<2x128xf32>
    %cst_79 = arith.constant 1.000000e+00 : f32
    %388 = vector.broadcast %cst_79 : f32 to vector<2x128xf32>
    %389 = arith.addf %388, %387 : vector<2x128xf32>
    %390 = arith.divf %388, %389 : vector<2x128xf32>
    %391 = vector.extract_strided_slice %378 {offsets = [0, 256], sizes = [2, 128], strides = [1, 1]} : vector<2x512xf32> to vector<2x128xf32>
    %392 = math.tanh %391 : vector<2x128xf32>
    %393 = vector.extract_strided_slice %378 {offsets = [0, 384], sizes = [2, 128], strides = [1, 1]} : vector<2x512xf32> to vector<2x128xf32>
    %394 = arith.negf %393 : vector<2x128xf32>
    %395 = math.exp %394 : vector<2x128xf32>
    %cst_80 = arith.constant 1.000000e+00 : f32
    %396 = vector.broadcast %cst_80 : f32 to vector<2x128xf32>
    %397 = arith.addf %396, %395 : vector<2x128xf32>
    %398 = arith.divf %396, %397 : vector<2x128xf32>
    %399 = arith.mulf %390, %341 : vector<2x128xf32>
    %400 = arith.mulf %384, %392 : vector<2x128xf32>
    %401 = arith.addf %399, %400 : vector<2x128xf32>
    %402 = math.tanh %401 : vector<2x128xf32>
    %403 = arith.mulf %398, %402 : vector<2x128xf32>
    %404 = tpu.concatenate %403, %372 in 1 : vector<2x128xf32>, vector<2x128xf32> -> vector<2x256xf32>
    %405 = arith.truncf %404 : vector<2x256xf32> to vector<2x256xbf16>
    %cst_81 = arith.constant dense<0.000000e+00> : vector<2x512xf32>
    %406 = tpu.matmul %405, %1, %cst_81 {dimension_numbers = #tpu.dot_dimension_numbers<[1], [0], [0], [1], [0, 0, 1, 1], [], []>} : vector<2x256xbf16>, vector<256x512xbf16>, vector<2x512xf32> -> vector<2x512xf32>
    %407 = arith.addf %406, %4 : vector<2x512xf32>
    %408 = vector.extract_strided_slice %407 {offsets = [0, 0], sizes = [2, 128], strides = [1, 1]} : vector<2x512xf32> to vector<2x128xf32>
    %409 = arith.negf %408 : vector<2x128xf32>
    %410 = math.exp %409 : vector<2x128xf32>
    %cst_82 = arith.constant 1.000000e+00 : f32
    %411 = vector.broadcast %cst_82 : f32 to vector<2x128xf32>
    %412 = arith.addf %411, %410 : vector<2x128xf32>
    %413 = arith.divf %411, %412 : vector<2x128xf32>
    %414 = vector.extract_strided_slice %407 {offsets = [0, 128], sizes = [2, 128], strides = [1, 1]} : vector<2x512xf32> to vector<2x128xf32>
    %415 = arith.negf %414 : vector<2x128xf32>
    %416 = math.exp %415 : vector<2x128xf32>
    %cst_83 = arith.constant 1.000000e+00 : f32
    %417 = vector.broadcast %cst_83 : f32 to vector<2x128xf32>
    %418 = arith.addf %417, %416 : vector<2x128xf32>
    %419 = arith.divf %417, %418 : vector<2x128xf32>
    %420 = vector.extract_strided_slice %407 {offsets = [0, 256], sizes = [2, 128], strides = [1, 1]} : vector<2x512xf32> to vector<2x128xf32>
    %421 = math.tanh %420 : vector<2x128xf32>
    %422 = vector.extract_strided_slice %407 {offsets = [0, 384], sizes = [2, 128], strides = [1, 1]} : vector<2x512xf32> to vector<2x128xf32>
    %423 = arith.negf %422 : vector<2x128xf32>
    %424 = math.exp %423 : vector<2x128xf32>
    %cst_84 = arith.constant 1.000000e+00 : f32
    %425 = vector.broadcast %cst_84 : f32 to vector<2x128xf32>
    %426 = arith.addf %425, %424 : vector<2x128xf32>
    %427 = arith.divf %425, %426 : vector<2x128xf32>
    %428 = arith.mulf %419, %370 : vector<2x128xf32>
    %429 = arith.mulf %413, %421 : vector<2x128xf32>
    %430 = arith.addf %428, %429 : vector<2x128xf32>
    %431 = math.tanh %430 : vector<2x128xf32>
    %432 = arith.mulf %427, %431 : vector<2x128xf32>
    %c7_i32 = arith.constant 7 : i32
    %433 = arith.index_cast %c7_i32 : i32 to index
    %c0_85 = arith.constant 0 : index
    %c0_86 = arith.constant 0 : index
    %434 = vector.load %arg1[%433, %c0_85, %c0_86] : memref<8x2x512xf32, #tpu.memory_space<vmem>>, vector<1x2x512xf32>
    %435 = vector.shape_cast %434 : vector<1x2x512xf32> to vector<2x512xf32>
    %436 = arith.truncf %403 : vector<2x128xf32> to vector<2x128xbf16>
    %cst_87 = arith.constant dense<0.000000e+00> : vector<2x512xf32>
    %437 = tpu.matmul %436, %0, %cst_87 {dimension_numbers = #tpu.dot_dimension_numbers<[1], [0], [0], [1], [0, 0, 1, 1], [], []>} : vector<2x128xbf16>, vector<128x512xbf16>, vector<2x512xf32> -> vector<2x512xf32>
    %438 = arith.addf %435, %437 : vector<2x512xf32>
    %439 = vector.extract_strided_slice %438 {offsets = [0, 0], sizes = [2, 128], strides = [1, 1]} : vector<2x512xf32> to vector<2x128xf32>
    %440 = arith.negf %439 : vector<2x128xf32>
    %441 = math.exp %440 : vector<2x128xf32>
    %cst_88 = arith.constant 1.000000e+00 : f32
    %442 = vector.broadcast %cst_88 : f32 to vector<2x128xf32>
    %443 = arith.addf %442, %441 : vector<2x128xf32>
    %444 = arith.divf %442, %443 : vector<2x128xf32>
    %445 = vector.extract_strided_slice %438 {offsets = [0, 128], sizes = [2, 128], strides = [1, 1]} : vector<2x512xf32> to vector<2x128xf32>
    %446 = arith.negf %445 : vector<2x128xf32>
    %447 = math.exp %446 : vector<2x128xf32>
    %cst_89 = arith.constant 1.000000e+00 : f32
    %448 = vector.broadcast %cst_89 : f32 to vector<2x128xf32>
    %449 = arith.addf %448, %447 : vector<2x128xf32>
    %450 = arith.divf %448, %449 : vector<2x128xf32>
    %451 = vector.extract_strided_slice %438 {offsets = [0, 256], sizes = [2, 128], strides = [1, 1]} : vector<2x512xf32> to vector<2x128xf32>
    %452 = math.tanh %451 : vector<2x128xf32>
    %453 = vector.extract_strided_slice %438 {offsets = [0, 384], sizes = [2, 128], strides = [1, 1]} : vector<2x512xf32> to vector<2x128xf32>
    %454 = arith.negf %453 : vector<2x128xf32>
    %455 = math.exp %454 : vector<2x128xf32>
    %cst_90 = arith.constant 1.000000e+00 : f32
    %456 = vector.broadcast %cst_90 : f32 to vector<2x128xf32>
    %457 = arith.addf %456, %455 : vector<2x128xf32>
    %458 = arith.divf %456, %457 : vector<2x128xf32>
    %459 = arith.mulf %450, %401 : vector<2x128xf32>
    %460 = arith.mulf %444, %452 : vector<2x128xf32>
    %461 = arith.addf %459, %460 : vector<2x128xf32>
    %462 = math.tanh %461 : vector<2x128xf32>
    %463 = arith.mulf %458, %462 : vector<2x128xf32>
    %464 = tpu.concatenate %463, %432 in 1 : vector<2x128xf32>, vector<2x128xf32> -> vector<2x256xf32>
    %465 = arith.truncf %464 : vector<2x256xf32> to vector<2x256xbf16>
    %cst_91 = arith.constant dense<0.000000e+00> : vector<2x512xf32>
    %466 = tpu.matmul %465, %1, %cst_91 {dimension_numbers = #tpu.dot_dimension_numbers<[1], [0], [0], [1], [0, 0, 1, 1], [], []>} : vector<2x256xbf16>, vector<256x512xbf16>, vector<2x512xf32> -> vector<2x512xf32>
    %467 = arith.addf %466, %4 : vector<2x512xf32>
    %468 = vector.extract_strided_slice %467 {offsets = [0, 0], sizes = [2, 128], strides = [1, 1]} : vector<2x512xf32> to vector<2x128xf32>
    %469 = arith.negf %468 : vector<2x128xf32>
    %470 = math.exp %469 : vector<2x128xf32>
    %cst_92 = arith.constant 1.000000e+00 : f32
    %471 = vector.broadcast %cst_92 : f32 to vector<2x128xf32>
    %472 = arith.addf %471, %470 : vector<2x128xf32>
    %473 = arith.divf %471, %472 : vector<2x128xf32>
    %474 = vector.extract_strided_slice %467 {offsets = [0, 128], sizes = [2, 128], strides = [1, 1]} : vector<2x512xf32> to vector<2x128xf32>
    %475 = arith.negf %474 : vector<2x128xf32>
    %476 = math.exp %475 : vector<2x128xf32>
    %cst_93 = arith.constant 1.000000e+00 : f32
    %477 = vector.broadcast %cst_93 : f32 to vector<2x128xf32>
    %478 = arith.addf %477, %476 : vector<2x128xf32>
    %479 = arith.divf %477, %478 : vector<2x128xf32>
    %480 = vector.extract_strided_slice %467 {offsets = [0, 256], sizes = [2, 128], strides = [1, 1]} : vector<2x512xf32> to vector<2x128xf32>
    %481 = math.tanh %480 : vector<2x128xf32>
    %482 = vector.extract_strided_slice %467 {offsets = [0, 384], sizes = [2, 128], strides = [1, 1]} : vector<2x512xf32> to vector<2x128xf32>
    %483 = arith.negf %482 : vector<2x128xf32>
    %484 = math.exp %483 : vector<2x128xf32>
    %cst_94 = arith.constant 1.000000e+00 : f32
    %485 = vector.broadcast %cst_94 : f32 to vector<2x128xf32>
    %486 = arith.addf %485, %484 : vector<2x128xf32>
    %487 = arith.divf %485, %486 : vector<2x128xf32>
    %488 = arith.mulf %479, %430 : vector<2x128xf32>
    %489 = arith.mulf %473, %481 : vector<2x128xf32>
    %490 = arith.addf %488, %489 : vector<2x128xf32>
    %491 = math.tanh %490 : vector<2x128xf32>
    %492 = arith.mulf %487, %491 : vector<2x128xf32>
    %c8_i32 = arith.constant 8 : i32
    %493 = arith.truncf %492 : vector<2x128xf32> to vector<2x128xbf16>
    %c0_95 = arith.constant 0 : index
    %c0_96 = arith.constant 0 : index
    %494 = vector.load %arg7[%c0_95, %c0_96] : memref<128x128xbf16, #tpu.memory_space<vmem>>, vector<128x128xbf16>
    %cst_97 = arith.constant dense<0.000000e+00> : vector<2x128xf32>
    %495 = tpu.matmul %493, %494, %cst_97 {dimension_numbers = #tpu.dot_dimension_numbers<[1], [0], [0], [1], [0, 0, 1, 1], [], []>} : vector<2x128xbf16>, vector<128x128xbf16>, vector<2x128xf32> -> vector<2x128xf32>
    %c0_98 = arith.constant 0 : index
    %c0_99 = arith.constant 0 : index
    %496 = vector.load %arg8[%c0_98, %c0_99] : memref<1x128xf32, #tpu.memory_space<vmem>>, vector<1x128xf32>
    %497 = vector.broadcast %496 : vector<1x128xf32> to vector<2x128xf32>
    %498 = arith.addf %495, %497 : vector<2x128xf32>
    %c0_100 = arith.constant 0 : index
    %c0_101 = arith.constant 0 : index
    %499 = vector.load %arg9[%c0_100, %c0_101] : memref<2x128xf32, #tpu.memory_space<vmem>>, vector<2x128xf32>
    tpu.vector_store %arg9[%c0_100, %c0_101], %498 {strides = array<i32>} : memref<2x128xf32, #tpu.memory_space<vmem>>, vector<2x128xf32>,
    return
  }
  func.func @transform_0(%arg0: i32) -> (i32, i32, i32) {
    %c0_i32 = arith.constant 0 : i32
    %c0_i32_0 = arith.constant 0 : i32
    %c0_i32_1 = arith.constant 0 : i32
    %c0_i32_2 = arith.constant 0 : i32
    return %c0_i32, %c0_i32_0, %c0_i32_1 : i32, i32, i32
  }
  func.func @transform_1(%arg0: i32) -> (i32, i32, i32) {
    %c0_i32 = arith.constant 0 : i32
    %c0_i32_0 = arith.constant 0 : i32
    %c0_i32_1 = arith.constant 0 : i32
    %c0_i32_2 = arith.constant 0 : i32
    return %c0_i32, %c0_i32_0, %c0_i32_1 : i32, i32, i32
  }
  func.func @transform_2(%arg0: i32) -> (i32, i32, i32) {
    %c0_i32 = arith.constant 0 : i32
    %c0_i32_0 = arith.constant 0 : i32
    %c0_i32_1 = arith.constant 0 : i32
    %c0_i32_2 = arith.constant 0 : i32
    return %c0_i32, %c0_i32_0, %c0_i32_1 : i32, i32, i32
  }
  func.func @transform_3(%arg0: i32) -> (i32, i32) {
    %c0_i32 = arith.constant 0 : i32
    %c0_i32_0 = arith.constant 0 : i32
    %c0_i32_1 = arith.constant 0 : i32
    return %c0_i32, %c0_i32_0 : i32, i32
  }
  func.func @transform_4(%arg0: i32) -> (i32, i32) {
    %c0_i32 = arith.constant 0 : i32
    %c0_i32_0 = arith.constant 0 : i32
    %c0_i32_1 = arith.constant 0 : i32
    return %c0_i32, %c0_i32_0 : i32, i32
  }
  func.func @transform_5(%arg0: i32) -> (i32, i32) {
    %c0_i32 = arith.constant 0 : i32
    %c0_i32_0 = arith.constant 0 : i32
    %c0_i32_1 = arith.constant 0 : i32
    return %c0_i32, %c0_i32_0 : i32, i32
  }
  func.func @transform_6(%arg0: i32) -> (i32, i32) {
    %c0_i32 = arith.constant 0 : i32
    %c0_i32_0 = arith.constant 0 : i32
    %c0_i32_1 = arith.constant 0 : i32
    return %c0_i32, %c0_i32_0 : i32, i32
  }
  func.func @transform_7(%arg0: i32) -> (i32, i32) {
    %c0_i32 = arith.constant 0 : i32
    %c0_i32_0 = arith.constant 0 : i32
    %c0_i32_1 = arith.constant 0 : i32
    return %c0_i32, %c0_i32_0 : i32, i32
  }
  func.func @transform_8(%arg0: i32) -> (i32, i32) {
    %c0_i32 = arith.constant 0 : i32
    %c0_i32_0 = arith.constant 0 : i32
    %c0_i32_1 = arith.constant 0 : i32
    return %c0_i32, %c0_i32_0 : i32, i32
  }
}

</mosaic_0001>

<llo_original>
// kernel: lstm_net_forward.1
$region0: #{lstm_net_forward.1}
  #allocation0 [shape = 'u32[]', space=smem, size = 0x4, offset = 0x4, fixed_abs, tag = 'smem constant byte address 0x4 - core index']
  #allocation1 [shape = 'u32[144,128]{1,0:T(1,128)}', space=vmem, size = 0x12000, scoped, tag = 'internal scratch']
  %s0 = inlined_call_operand.vmem [shape: f32[8,2,512], index: 0, kind: input, shape index: {}]
  %s1 = inlined_call_operand.vmem [shape: f32[2,2,128], index: 1, kind: input, shape index: {}]
  %s2 = inlined_call_operand.vmem [shape: f32[2,2,128], index: 2, kind: input, shape index: {}]
  %s3 = inlined_call_operand.hbm [shape: bf16[128,512], index: 3, kind: input, shape index: {}]
  %s4 = inlined_call_operand.hbm [shape: bf16[256,512], index: 4, kind: input, shape index: {}]
  %s5 = inlined_call_operand.vmem [shape: f32[1,512], index: 5, kind: input, shape index: {}]
  %s6 = inlined_call_operand.vmem [shape: bf16[128,128], index: 6, kind: input, shape index: {}]
  %s7 = inlined_call_operand.vmem [shape: f32[1,128], index: 7, kind: input, shape index: {}]
  %s8 = inlined_call_operand.hbm [shape: f32[2,128], index: 8, kind: output, shape index: {}]
  %s9 = sld [smem:[#allocation0]]
  $region50: #{lstm_net_forward.1} parent=0
    _
  %s11 = ssub.s32 1, %s9
  %s12 = scalar_select 0, %s11, %s9
  $region1: #{lstm_net_forward.1} parent=0
    #allocation2 [shape = 'u8[131072]{0}', space=vmem, size = 0x20000, scoped, tag = 'input window, operand 3, single buffered']
    #allocation3 [shape = 's32[1]{0}', space=sflag, size = 0x4, scoped, tag = 'scoped memory for lstm_net_forward.1']
    #allocation4 [shape = 's32[1]{0}', space=sflag, size = 0x4, scoped, tag = 'scoped memory for lstm_net_forward.1']
    #allocation5 [shape = 'u8[262144]{0}', space=vmem, size = 0x40000, scoped, tag = 'input window, operand 4, single buffered']
    #allocation6 [shape = 's32[1]{0}', space=sflag, size = 0x4, scoped, tag = 'scoped memory for lstm_net_forward.1']
    #allocation7 [shape = 'u8[1024]{0}', space=vmem, size = 0x400, scoped, tag = 'output window, operand 0, single buffered']
    %13 = vsyncpa [#allocation3], 0
    %14 = vsyncpa [#allocation6], 0
    %15 = vsyncpa [#allocation4], 0
    // Predicated region
    $region2: #{lstm_net_forward.1} parent=1 // pred_check
      _
    $region3: #{lstm_net_forward.1} parent=1 // pred_check_branch
      %17 = sbr.rel (0) target = $region5
    $region4: #{lstm_net_forward.1} parent=1 // pred_region
      _
    $region5: #{lstm_net_forward.1} parent=1 // pred_fallthru
      _
    // Predicated region
    $region6: #{lstm_net_forward.1} parent=1 // pred_check
      _
    $region7: #{lstm_net_forward.1} parent=1 // pred_check_branch
      %19 = sbr.rel (0) target = $region9
    $region8: #{lstm_net_forward.1} parent=1 // pred_region
      _
    $region9: #{lstm_net_forward.1} parent=1 // pred_fallthru
      _
    // Predicated region
    $region10: #{lstm_net_forward.1} parent=1 // pred_check
      _
    $region11: #{lstm_net_forward.1} parent=1 // pred_check_branch
      %21 = sbr.rel (0) target = $region13
    $region12: #{lstm_net_forward.1} parent=1 // pred_region
      _
    $region13: #{lstm_net_forward.1} parent=1 // pred_fallthru
      _
    // Predicated region
    $region14: #{lstm_net_forward.1} parent=1 // pred_check
      _
    $region15: #{lstm_net_forward.1} parent=1 // pred_check_branch
      %23 = sbr.rel (0) target = $region17
    $region16: #{lstm_net_forward.1} parent=1 // pred_region
      %s25 = ssub.s32 4096, 4096
      %26 = vsyncadd [#allocation3], %s25
      %s27 = sshll.u32 [#allocation2], 4
      %s28 = int_to_ptr.vmem [resolvable:$true] %s27
      %33 = dma.hbm_to_vmem [thread:$0]  %s3, 4096, %s28, [#allocation3], 256, 256, 16
    $region17: #{lstm_net_forward.1} parent=1 // pred_fallthru
      _
    // Predicated region
    $region18: #{lstm_net_forward.1} parent=1 // pred_check
      _
    $region19: #{lstm_net_forward.1} parent=1 // pred_check_branch
      %35 = sbr.rel (0) target = $region21
    $region20: #{lstm_net_forward.1} parent=1 // pred_region
      %s37 = ssub.s32 8192, 8192
      %38 = vsyncadd [#allocation6], %s37
      %s39 = sshll.u32 [#allocation5], 4
      %s40 = int_to_ptr.vmem [resolvable:$true] %s39
      %45 = dma.hbm_to_vmem [thread:$0]  %s4, 8192, %s40, [#allocation6], 256, 256, 16
    $region21: #{lstm_net_forward.1} parent=1 // pred_fallthru
      _
    // Predicated region
    $region22: #{lstm_net_forward.1} parent=1 // pred_check
      _
    $region23: #{lstm_net_forward.1} parent=1 // pred_check_branch
      %47 = sbr.rel (0) target = $region25
    $region24: #{lstm_net_forward.1} parent=1 // pred_region
      _
    $region25: #{lstm_net_forward.1} parent=1 // pred_fallthru
      _
    // Predicated region
    $region26: #{lstm_net_forward.1} parent=1 // pred_check
      _
    $region27: #{lstm_net_forward.1} parent=1 // pred_check_branch
      %49 = sbr.rel (0) target = $region29
    $region28: #{lstm_net_forward.1} parent=1 // pred_region
      _
    $region29: #{lstm_net_forward.1} parent=1 // pred_fallthru
      _
    // Predicated region
    $region30: #{lstm_net_forward.1} parent=1 // pred_check
      _
    $region31: #{lstm_net_forward.1} parent=1 // pred_check_branch
      %51 = sbr.rel (0) target = $region33
    $region32: #{lstm_net_forward.1} parent=1 // pred_region
      _
    $region33: #{lstm_net_forward.1} parent=1 // pred_fallthru
      _
    // Predicated region
    $region34: #{lstm_net_forward.1} parent=1 // pred_check
      _
    $region35: #{lstm_net_forward.1} parent=1 // pred_check_branch
      %53 = sbr.rel (0) target = $region37
    $region36: #{lstm_net_forward.1} parent=1 // pred_region
      %54 = dma.done [#allocation3], 4096
    $region37: #{lstm_net_forward.1} parent=1 // pred_fallthru
      _
    // Predicated region
    $region38: #{lstm_net_forward.1} parent=1 // pred_check
      _
    $region39: #{lstm_net_forward.1} parent=1 // pred_check_branch
      %56 = sbr.rel (0) target = $region41
    $region40: #{lstm_net_forward.1} parent=1 // pred_region
      %57 = dma.done [#allocation6], 8192
    $region41: #{lstm_net_forward.1} parent=1 // pred_fallthru
      _
    %v59 = vld [vmem:[#allocation2] sm:$0xff]
    %v60 = vld [vmem:[#allocation2 + $0x8] sm:$0xff]
    %v61 = vld [vmem:[#allocation2 + $0x10] sm:$0xff]
    %v62 = vld [vmem:[#allocation2 + $0x18] sm:$0xff]
    %v63 = vld [vmem:[#allocation2 + $0x20] sm:$0xff]
    %v64 = vld [vmem:[#allocation2 + $0x28] sm:$0xff]
    %v65 = vld [vmem:[#allocation2 + $0x30] sm:$0xff]
    %v66 = vld [vmem:[#allocation2 + $0x38] sm:$0xff]
    %v67 = vld [vmem:[#allocation2 + $0x40] sm:$0xff]
    %v68 = vld [vmem:[#allocation2 + $0x48] sm:$0xff]
    %v69 = vld [vmem:[#allocation2 + $0x50] sm:$0xff]
    %v70 = vld [vmem:[#allocation2 + $0x58] sm:$0xff]
    %v71 = vld [vmem:[#allocation2 + $0x60] sm:$0xff]
    %v72 = vld [vmem:[#allocation2 + $0x68] sm:$0xff]
    %v73 = vld [vmem:[#allocation2 + $0x70] sm:$0xff]
    %v74 = vld [vmem:[#allocation2 + $0x78] sm:$0xff]
    %v75 = vld [vmem:[#allocation2 + $0x80] sm:$0xff]
    %v76 = vld [vmem:[#allocation2 + $0x88] sm:$0xff]
    %v77 = vld [vmem:[#allocation2 + $0x90] sm:$0xff]
    %v78 = vld [vmem:[#allocation2 + $0x98] sm:$0xff]
    %v79 = vld [vmem:[#allocation2 + $0xa0] sm:$0xff]
    %v80 = vld [vmem:[#allocation2 + $0xa8] sm:$0xff]
    %v81 = vld [vmem:[#allocation2 + $0xb0] sm:$0xff]
    %v82 = vld [vmem:[#allocation2 + $0xb8] sm:$0xff]
    %v83 = vld [vmem:[#allocation2 + $0xc0] sm:$0xff]
    %v84 = vld [vmem:[#allocation2 + $0xc8] sm:$0xff]
    %v85 = vld [vmem:[#allocation2 + $0xd0] sm:$0xff]
    %v86 = vld [vmem:[#allocation2 + $0xd8] sm:$0xff]
    %v87 = vld [vmem:[#allocation2 + $0xe0] sm:$0xff]
    %v88 = vld [vmem:[#allocation2 + $0xe8] sm:$0xff]
    %v89 = vld [vmem:[#allocation2 + $0xf0] sm:$0xff]
    %v90 = vld [vmem:[#allocation2 + $0xf8] sm:$0xff]
    %v91 = vld [vmem:[#allocation5] sm:$0xff]
    %v92 = vld [vmem:[#allocation5 + $0x8] sm:$0xff]
    %v93 = vld [vmem:[#allocation5 + $0x10] sm:$0xff]
    %v94 = vld [vmem:[#allocation5 + $0x18] sm:$0xff]
    %v95 = vld [vmem:[#allocation5 + $0x20] sm:$0xff]
    %v96 = vld [vmem:[#allocation5 + $0x28] sm:$0xff]
    %v97 = vld [vmem:[#allocation5 + $0x30] sm:$0xff]
    %v98 = vld [vmem:[#allocation5 + $0x38] sm:$0xff]
    %v99 = vld [vmem:[#allocation5 + $0x40] sm:$0xff]
    %v100 = vld [vmem:[#allocation5 + $0x48] sm:$0xff]
    %v101 = vld [vmem:[#allocation5 + $0x50] sm:$0xff]
    %v102 = vld [vmem:[#allocation5 + $0x58] sm:$0xff]
    %v103 = vld [vmem:[#allocation5 + $0x60] sm:$0xff]
    %v104 = vld [vmem:[#allocation5 + $0x68] sm:$0xff]
    %v105 = vld [vmem:[#allocation5 + $0x70] sm:$0xff]
    %v106 = vld [vmem:[#allocation5 + $0x78] sm:$0xff]
    %v107 = vld [vmem:[#allocation5 + $0x80] sm:$0xff]
    %v108 = vld [vmem:[#allocation5 + $0x88] sm:$0xff]
    %v109 = vld [vmem:[#allocation5 + $0x90] sm:$0xff]
    %v110 = vld [vmem:[#allocation5 + $0x98] sm:$0xff]
    %v111 = vld [vmem:[#allocation5 + $0xa0] sm:$0xff]
    %v112 = vld [vmem:[#allocation5 + $0xa8] sm:$0xff]
    %v113 = vld [vmem:[#allocation5 + $0xb0] sm:$0xff]
    %v114 = vld [vmem:[#allocation5 + $0xb8] sm:$0xff]
    %v115 = vld [vmem:[#allocation5 + $0xc0] sm:$0xff]
    %v116 = vld [vmem:[#allocation5 + $0xc8] sm:$0xff]
    %v117 = vld [vmem:[#allocation5 + $0xd0] sm:$0xff]
    %v118 = vld [vmem:[#allocation5 + $0xd8] sm:$0xff]
    %v119 = vld [vmem:[#allocation5 + $0xe0] sm:$0xff]
    %v120 = vld [vmem:[#allocation5 + $0xe8] sm:$0xff]
    %v121 = vld [vmem:[#allocation5 + $0xf0] sm:$0xff]
    %v122 = vld [vmem:[#allocation5 + $0xf8] sm:$0xff]
    %v123 = vld [vmem:[#allocation5 + $0x100] sm:$0xff]
    %v124 = vld [vmem:[#allocation5 + $0x108] sm:$0xff]
    %v125 = vld [vmem:[#allocation5 + $0x110] sm:$0xff]
    %v126 = vld [vmem:[#allocation5 + $0x118] sm:$0xff]
    %v127 = vld [vmem:[#allocation5 + $0x120] sm:$0xff]
    %v128 = vld [vmem:[#allocation5 + $0x128] sm:$0xff]
    %v129 = vld [vmem:[#allocation5 + $0x130] sm:$0xff]
    %v130 = vld [vmem:[#allocation5 + $0x138] sm:$0xff]
    %v131 = vld [vmem:[#allocation5 + $0x140] sm:$0xff]
    %v132 = vld [vmem:[#allocation5 + $0x148] sm:$0xff]
    %v133 = vld [vmem:[#allocation5 + $0x150] sm:$0xff]
    %v134 = vld [vmem:[#allocation5 + $0x158] sm:$0xff]
    %v135 = vld [vmem:[#allocation5 + $0x160] sm:$0xff]
    %v136 = vld [vmem:[#allocation5 + $0x168] sm:$0xff]
    %v137 = vld [vmem:[#allocation5 + $0x170] sm:$0xff]
    %v138 = vld [vmem:[#allocation5 + $0x178] sm:$0xff]
    %v139 = vld [vmem:[#allocation5 + $0x180] sm:$0xff]
    %v140 = vld [vmem:[#allocation5 + $0x188] sm:$0xff]
    %v141 = vld [vmem:[#allocation5 + $0x190] sm:$0xff]
    %v142 = vld [vmem:[#allocation5 + $0x198] sm:$0xff]
    %v143 = vld [vmem:[#allocation5 + $0x1a0] sm:$0xff]
    %v144 = vld [vmem:[#allocation5 + $0x1a8] sm:$0xff]
    %v145 = vld [vmem:[#allocation5 + $0x1b0] sm:$0xff]
    %v146 = vld [vmem:[#allocation5 + $0x1b8] sm:$0xff]
    %v147 = vld [vmem:[#allocation5 + $0x1c0] sm:$0xff]
    %v148 = vld [vmem:[#allocation5 + $0x1c8] sm:$0xff]
    %v149 = vld [vmem:[#allocation5 + $0x1d0] sm:$0xff]
    %v150 = vld [vmem:[#allocation5 + $0x1d8] sm:$0xff]
    %v151 = vld [vmem:[#allocation5 + $0x1e0] sm:$0xff]
    %v152 = vld [vmem:[#allocation5 + $0x1e8] sm:$0xff]
    %v153 = vld [vmem:[#allocation5 + $0x1f0] sm:$0xff]
    %v154 = vld [vmem:[#allocation5 + $0x1f8] sm:$0xff]
    %v155 = vld [vmem:[%s5] sm:$0xf]
    %v157 = vlaneseq
    %v158 = vshrl.u32 %v157, 7
    %v159 = vsub.s32 0, %v158
    %v160 = vrot.slane %v155, %v159
    %v161 = vlaneseq
    %v162 = vshrl.u32 %v161, 7
    %v163 = vsub.s32 1, %v162
    %v164 = vrot.slane %v155, %v163
    %v165 = vlaneseq
    %v166 = vshrl.u32 %v165, 7
    %v167 = vsub.s32 2, %v166
    %v168 = vrot.slane %v155, %v167
    %v169 = vlaneseq
    %v170 = vshrl.u32 %v169, 7
    %v171 = vsub.s32 3, %v170
    %v172 = vrot.slane %v155, %v171
    %v177 = vld [vmem:[%s1] sm:$0x3]
    %v178 = vld [vmem:[%s2] sm:$0x3]
    %s179 = scalar_lea.vmem %s1, 2
    %v180 = vld [vmem:[%s179] sm:$0x3]
    %s181 = scalar_lea.vmem %s2, 2
    %v182 = vld [vmem:[%s181] sm:$0x3]
    %v183 = vld [vmem:[%s0] sm:$0xff]
    %v184 = vpack.c.bf16 %v177, %v177
    %v217 = vunpack.c.l.b16 %v59
    %v218 = vunpack.c.h.b16 %v59
    %v219 = vunpack.c.l.b16 %v60
    %v220 = vunpack.c.h.b16 %v60
    %v221 = vunpack.c.l.b16 %v61
    %v222 = vunpack.c.h.b16 %v61
    %v223 = vunpack.c.l.b16 %v62
    %v224 = vunpack.c.h.b16 %v62
    %v225 = vunpack.c.l.b16 %v63
    %v226 = vunpack.c.h.b16 %v63
    %v227 = vunpack.c.l.b16 %v64
    %v228 = vunpack.c.h.b16 %v64
    %v229 = vunpack.c.l.b16 %v65
    %v230 = vunpack.c.h.b16 %v65
    %v231 = vunpack.c.l.b16 %v66
    %v232 = vunpack.c.h.b16 %v66
    %v233 = vunpack.c.l.b16 %v67
    %v234 = vunpack.c.h.b16 %v67
    %v235 = vunpack.c.l.b16 %v68
    %v236 = vunpack.c.h.b16 %v68
    %v237 = vunpack.c.l.b16 %v69
    %v238 = vunpack.c.h.b16 %v69
    %v239 = vunpack.c.l.b16 %v70
    %v240 = vunpack.c.h.b16 %v70
    %v241 = vunpack.c.l.b16 %v71
    %v242 = vunpack.c.h.b16 %v71
    %v243 = vunpack.c.l.b16 %v72
    %v244 = vunpack.c.h.b16 %v72
    %v245 = vunpack.c.l.b16 %v73
    %v246 = vunpack.c.h.b16 %v73
    %v247 = vunpack.c.l.b16 %v74
    %v248 = vunpack.c.h.b16 %v74
    %v249 = vunpack.c.l.b16 %v75
    %v250 = vunpack.c.h.b16 %v75
    %v251 = vunpack.c.l.b16 %v76
    %v252 = vunpack.c.h.b16 %v76
    %v253 = vunpack.c.l.b16 %v77
    %v254 = vunpack.c.h.b16 %v77
    %v255 = vunpack.c.l.b16 %v78
    %v256 = vunpack.c.h.b16 %v78
    %v257 = vunpack.c.l.b16 %v79
    %v258 = vunpack.c.h.b16 %v79
    %v259 = vunpack.c.l.b16 %v80
    %v260 = vunpack.c.h.b16 %v80
    %v261 = vunpack.c.l.b16 %v81
    %v262 = vunpack.c.h.b16 %v81
    %v263 = vunpack.c.l.b16 %v82
    %v264 = vunpack.c.h.b16 %v82
    %v265 = vunpack.c.l.b16 %v83
    %v266 = vunpack.c.h.b16 %v83
    %v267 = vunpack.c.l.b16 %v84
    %v268 = vunpack.c.h.b16 %v84
    %v269 = vunpack.c.l.b16 %v85
    %v270 = vunpack.c.h.b16 %v85
    %v271 = vunpack.c.l.b16 %v86
    %v272 = vunpack.c.h.b16 %v86
    %v273 = vunpack.c.l.b16 %v87
    %v274 = vunpack.c.h.b16 %v87
    %v275 = vunpack.c.l.b16 %v88
    %v276 = vunpack.c.h.b16 %v88
    %v277 = vunpack.c.l.b16 %v89
    %v278 = vunpack.c.h.b16 %v89
    %v279 = vunpack.c.l.b16 %v90
    %v280 = vunpack.c.h.b16 %v90
    %v281 = vpack.c.b16 %v221, %v217
    %v282 = vpack.c.b16 %v222, %v218
    %v283 = vpack.c.b16 %v223, %v219
    %v284 = vpack.c.b16 %v224, %v220
    %v285 = vpack.c.b16 %v229, %v225
    %v286 = vpack.c.b16 %v230, %v226
    %v287 = vpack.c.b16 %v231, %v227
    %v288 = vpack.c.b16 %v232, %v228
    %v289 = vpack.c.b16 %v237, %v233
    %v290 = vpack.c.b16 %v238, %v234
    %v291 = vpack.c.b16 %v239, %v235
    %v292 = vpack.c.b16 %v240, %v236
    %v293 = vpack.c.b16 %v245, %v241
    %v294 = vpack.c.b16 %v246, %v242
    %v295 = vpack.c.b16 %v247, %v243
    %v296 = vpack.c.b16 %v248, %v244
    %v297 = vpack.c.b16 %v253, %v249
    %v298 = vpack.c.b16 %v254, %v250
    %v299 = vpack.c.b16 %v255, %v251
    %v300 = vpack.c.b16 %v256, %v252
    %v301 = vpack.c.b16 %v261, %v257
    %v302 = vpack.c.b16 %v262, %v258
    %v303 = vpack.c.b16 %v263, %v259
    %v304 = vpack.c.b16 %v264, %v260
    %v305 = vpack.c.b16 %v269, %v265
    %v306 = vpack.c.b16 %v270, %v266
    %v307 = vpack.c.b16 %v271, %v267
    %v308 = vpack.c.b16 %v272, %v268
    %v309 = vpack.c.b16 %v277, %v273
    %v310 = vpack.c.b16 %v278, %v274
    %v311 = vpack.c.b16 %v279, %v275
    %v312 = vpack.c.b16 %v280, %v276
    %345 = vmatprep.subr.bf16.mxu0 %v282
    %346 = vmatpush1.bf16.msra.mxu0 %v281
    %347 = vmatprep.subr.bf16.mxu0 %v286
    %348 = vmatpush1.bf16.msra.mxu0 %v285
    %349 = vmatprep.subr.bf16.mxu0 %v290
    %350 = vmatpush1.bf16.msra.mxu0 %v289
    %351 = vmatprep.subr.bf16.mxu0 %v294
    %352 = vmatpush1.bf16.msra.mxu0 %v293
    %353 = vmatprep.subr.bf16.mxu0 %v298
    %354 = vmatpush1.bf16.msra.mxu0 %v297
    %355 = vmatprep.subr.bf16.mxu0 %v302
    %356 = vmatpush1.bf16.msra.mxu0 %v301
    %357 = vmatprep.subr.bf16.mxu0 %v306
    %358 = vmatpush1.bf16.msra.mxu0 %v305
    %359 = vmatprep.subr.bf16.mxu0 %v310
    %360 = vmatpush1.bf16.msra.mxu0 %v309
    %361 = vmatprep.subr.bf16.mxu0 0
    %362 = vmatpush1.bf16.msra.mxu0 0
    %363 = vmatprep.subr.bf16.mxu0 0
    %364 = vmatpush1.bf16.msra.mxu0 0
    %365 = vmatprep.subr.bf16.mxu0 0
    %366 = vmatpush1.bf16.msra.mxu0 0
    %367 = vmatprep.subr.bf16.mxu0 0
    %368 = vmatpush1.bf16.msra.mxu0 0
    %369 = vmatprep.subr.bf16.mxu0 0
    %370 = vmatpush1.bf16.msra.mxu0 0
    %371 = vmatprep.subr.bf16.mxu0 0
    %372 = vmatpush1.bf16.msra.mxu0 0
    %373 = vmatprep.subr.bf16.mxu0 0
    %374 = vmatpush1.bf16.msra.mxu0 0
    %375 = vmatprep.subr.bf16.mxu0 0
    %376 = vmatpush1.bf16.msra.mxu0 0
    %377 = vmatprep.mubr.bf16.mxu0 0
    %378 = vmatmul.mubr.bf16.gmra.mrb[0].mxu0 %v184
    %v379 = vpop.f32.mrb[0].mxu0
    %v380 = vadd.f32 0.0, %v379
    %v381 = vpop.f32.mrb[0].mxu0
    %v382 = vadd.f32 0.0, %v381
    %v383 = vpop.f32.mrb[0].mxu0
    %v384 = vpop.f32.mrb[0].mxu0
    %385 = vdwg.mxu0
    %386 = vmatprep.subr.bf16.mxu0 %v284
    %387 = vmatpush1.bf16.msra.mxu0 %v283
    %388 = vmatprep.subr.bf16.mxu0 %v288
    %389 = vmatpush1.bf16.msra.mxu0 %v287
    %390 = vmatprep.subr.bf16.mxu0 %v292
    %391 = vmatpush1.bf16.msra.mxu0 %v291
    %392 = vmatprep.subr.bf16.mxu0 %v296
    %393 = vmatpush1.bf16.msra.mxu0 %v295
    %394 = vmatprep.subr.bf16.mxu0 %v300
    %395 = vmatpush1.bf16.msra.mxu0 %v299
    %396 = vmatprep.subr.bf16.mxu0 %v304
    %397 = vmatpush1.bf16.msra.mxu0 %v303
    %398 = vmatprep.subr.bf16.mxu0 %v308
    %399 = vmatpush1.bf16.msra.mxu0 %v307
    %400 = vmatprep.subr.bf16.mxu0 %v312
    %401 = vmatpush1.bf16.msra.mxu0 %v311
    %402 = vmatprep.subr.bf16.mxu0 0
    %403 = vmatpush1.bf16.msra.mxu0 0
    %404 = vmatprep.subr.bf16.mxu0 0
    %405 = vmatpush1.bf16.msra.mxu0 0
    %406 = vmatprep.subr.bf16.mxu0 0
    %407 = vmatpush1.bf16.msra.mxu0 0
    %408 = vmatprep.subr.bf16.mxu0 0
    %409 = vmatpush1.bf16.msra.mxu0 0
    %410 = vmatprep.subr.bf16.mxu0 0
    %411 = vmatpush1.bf16.msra.mxu0 0
    %412 = vmatprep.subr.bf16.mxu0 0
    %413 = vmatpush1.bf16.msra.mxu0 0
    %414 = vmatprep.subr.bf16.mxu0 0
    %415 = vmatpush1.bf16.msra.mxu0 0
    %416 = vmatprep.subr.bf16.mxu0 0
    %417 = vmatpush1.bf16.msra.mxu0 0
    %418 = vmatprep.mubr.bf16.mxu0 0
    %419 = vmatmul.mubr.bf16.gmra.mrb[0].mxu0 %v184
    %v420 = vpop.f32.mrb[0].mxu0
    %v421 = vadd.f32 0.0, %v420
    %v422 = vpop.f32.mrb[0].mxu0
    %v423 = vadd.f32 0.0, %v422
    %v424 = vpop.f32.mrb[0].mxu0
    %v425 = vpop.f32.mrb[0].mxu0
    %426 = vdwg.mxu0
    %v431 = vcombine.low %v380, %v382
    %v432 = vcombine.low %v421, %v423
    %v434 = vunpack.c.l.s4 1983009808
    %v435 = vunpack.c.0.s8 %v434
    %v436 = vlaneseq
    %v437 = vshrl.u32 %v436, 7
    %v438 = vsub.s32 %v435, %v437
    %v439 = vrot.slane %v431, %v438
    %v441 = vunpack.c.l.s4 1983009808
    %v442 = vunpack.c.0.s8 %v441
    %v443 = vlaneseq
    %v444 = vshrl.u32 %v443, 7
    %v445 = vsub.s32 %v442, %v444
    %v446 = vrot.slane %v432, %v445
    %v447 = vcombine.low %v439, %v446
    %v449 = vadd.f32 %v183, %v447
    %v450 = vxor.u32 %v449, 2147483648
    %v451 = vmul.f32 %v450, 1.442695
    %v452 = vpow.pop %v451
    %v453 = vadd.f32 %v452, 1.0
    %v454 = vrcp.pop %v453
    %v455 = vmul.f32 1.0, %v454
    %v457 = vrot.slane %v449, 2
    %v459 = vxor.u32 %v457, 2147483648
    %v460 = vmul.f32 %v459, 1.442695
    %v461 = vpow.pop %v460
    %v462 = vadd.f32 %v461, 1.0
    %v463 = vrcp.pop %v462
    %v464 = vmul.f32 1.0, %v463
    %v465 = vrot.slane %v449, 4
    %v467 = vtanh.pop %v465
    %v468 = vrot.slane %v449, 6
    %v470 = vxor.u32 %v468, 2147483648
    %v471 = vmul.f32 %v470, 1.442695
    %v472 = vpow.pop %v471
    %v473 = vadd.f32 %v472, 1.0
    %v474 = vrcp.pop %v473
    %v475 = vmul.f32 1.0, %v474
    %v476 = vmul.f32 %v464, %v178
    %v477 = vmul.f32 %v455, %v467
    %v478 = vadd.f32 %v476, %v477
    %v479 = vtanh.pop %v478
    %v480 = vmul.f32 %v475, %v479
    %v481 = vpack.c.bf16 %v480, %v480
    %v482 = vpack.c.bf16 %v180, %v180
    %v547 = vunpack.c.l.b16 %v91
    %v548 = vunpack.c.h.b16 %v91
    %v549 = vunpack.c.l.b16 %v92
    %v550 = vunpack.c.h.b16 %v92
    %v551 = vunpack.c.l.b16 %v93
    %v552 = vunpack.c.h.b16 %v93
    %v553 = vunpack.c.l.b16 %v94
    %v554 = vunpack.c.h.b16 %v94
    %v555 = vunpack.c.l.b16 %v95
    %v556 = vunpack.c.h.b16 %v95
    %v557 = vunpack.c.l.b16 %v96
    %v558 = vunpack.c.h.b16 %v96
    %v559 = vunpack.c.l.b16 %v97
    %v560 = vunpack.c.h.b16 %v97
    %v561 = vunpack.c.l.b16 %v98
    %v562 = vunpack.c.h.b16 %v98
    %v563 = vunpack.c.l.b16 %v99
    %v564 = vunpack.c.h.b16 %v99
    %v565 = vunpack.c.l.b16 %v100
    %v566 = vunpack.c.h.b16 %v100
    %v567 = vunpack.c.l.b16 %v101
    %v568 = vunpack.c.h.b16 %v101
    %v569 = vunpack.c.l.b16 %v102
    %v570 = vunpack.c.h.b16 %v102
    %v571 = vunpack.c.l.b16 %v103
    %v572 = vunpack.c.h.b16 %v103
    %v573 = vunpack.c.l.b16 %v104
    %v574 = vunpack.c.h.b16 %v104
    %v575 = vunpack.c.l.b16 %v105
    %v576 = vunpack.c.h.b16 %v105
    %v577 = vunpack.c.l.b16 %v106
    %v578 = vunpack.c.h.b16 %v106
    %v579 = vunpack.c.l.b16 %v107
    %v580 = vunpack.c.h.b16 %v107
    %v581 = vunpack.c.l.b16 %v108
    %v582 = vunpack.c.h.b16 %v108
    %v583 = vunpack.c.l.b16 %v109
    %v584 = vunpack.c.h.b16 %v109
    %v585 = vunpack.c.l.b16 %v110
    %v586 = vunpack.c.h.b16 %v110
    %v587 = vunpack.c.l.b16 %v111
    %v588 = vunpack.c.h.b16 %v111
    %v589 = vunpack.c.l.b16 %v112
    %v590 = vunpack.c.h.b16 %v112
    %v591 = vunpack.c.l.b16 %v113
    %v592 = vunpack.c.h.b16 %v113
    %v593 = vunpack.c.l.b16 %v114
    %v594 = vunpack.c.h.b16 %v114
    %v595 = vunpack.c.l.b16 %v115
    %v596 = vunpack.c.h.b16 %v115
    %v597 = vunpack.c.l.b16 %v116
    %v598 = vunpack.c.h.b16 %v116
    %v599 = vunpack.c.l.b16 %v117
    %v600 = vunpack.c.h.b16 %v117
    %v601 = vunpack.c.l.b16 %v118
    %v602 = vunpack.c.h.b16 %v118
    %v603 = vunpack.c.l.b16 %v119
    %v604 = vunpack.c.h.b16 %v119
    %v605 = vunpack.c.l.b16 %v120
    %v606 = vunpack.c.h.b16 %v120
    %v607 = vunpack.c.l.b16 %v121
    %v608 = vunpack.c.h.b16 %v121
    %v609 = vunpack.c.l.b16 %v122
    %v610 = vunpack.c.h.b16 %v122
    %v611 = vunpack.c.l.b16 %v123
    %v612 = vunpack.c.h.b16 %v123
    %v613 = vunpack.c.l.b16 %v124
    %v614 = vunpack.c.h.b16 %v124
    %v615 = vunpack.c.l.b16 %v125
    %v616 = vunpack.c.h.b16 %v125
    %v617 = vunpack.c.l.b16 %v126
    %v618 = vunpack.c.h.b16 %v126
    %v619 = vunpack.c.l.b16 %v127
    %v620 = vunpack.c.h.b16 %v127
    %v621 = vunpack.c.l.b16 %v128
    %v622 = vunpack.c.h.b16 %v128
    %v623 = vunpack.c.l.b16 %v129
    %v624 = vunpack.c.h.b16 %v129
    %v625 = vunpack.c.l.b16 %v130
    %v626 = vunpack.c.h.b16 %v130
    %v627 = vunpack.c.l.b16 %v131
    %v628 = vunpack.c.h.b16 %v131
    %v629 = vunpack.c.l.b16 %v132
    %v630 = vunpack.c.h.b16 %v132
    %v631 = vunpack.c.l.b16 %v133
    %v632 = vunpack.c.h.b16 %v133
    %v633 = vunpack.c.l.b16 %v134
    %v634 = vunpack.c.h.b16 %v134
    %v635 = vunpack.c.l.b16 %v135
    %v636 = vunpack.c.h.b16 %v135
    %v637 = vunpack.c.l.b16 %v136
    %v638 = vunpack.c.h.b16 %v136
    %v639 = vunpack.c.l.b16 %v137
    %v640 = vunpack.c.h.b16 %v137
    %v641 = vunpack.c.l.b16 %v138
    %v642 = vunpack.c.h.b16 %v138
    %v643 = vunpack.c.l.b16 %v139
    %v644 = vunpack.c.h.b16 %v139
    %v645 = vunpack.c.l.b16 %v140
    %v646 = vunpack.c.h.b16 %v140
    %v647 = vunpack.c.l.b16 %v141
    %v648 = vunpack.c.h.b16 %v141
    %v649 = vunpack.c.l.b16 %v142
    %v650 = vunpack.c.h.b16 %v142
    %v651 = vunpack.c.l.b16 %v143
    %v652 = vunpack.c.h.b16 %v143
    %v653 = vunpack.c.l.b16 %v144
    %v654 = vunpack.c.h.b16 %v144
    %v655 = vunpack.c.l.b16 %v145
    %v656 = vunpack.c.h.b16 %v145
    %v657 = vunpack.c.l.b16 %v146
    %v658 = vunpack.c.h.b16 %v146
    %v659 = vunpack.c.l.b16 %v147
    %v660 = vunpack.c.h.b16 %v147
    %v661 = vunpack.c.l.b16 %v148
    %v662 = vunpack.c.h.b16 %v148
    %v663 = vunpack.c.l.b16 %v149
    %v664 = vunpack.c.h.b16 %v149
    %v665 = vunpack.c.l.b16 %v150
    %v666 = vunpack.c.h.b16 %v150
    %v667 = vunpack.c.l.b16 %v151
    %v668 = vunpack.c.h.b16 %v151
    %v669 = vunpack.c.l.b16 %v152
    %v670 = vunpack.c.h.b16 %v152
    %v671 = vunpack.c.l.b16 %v153
    %v672 = vunpack.c.h.b16 %v153
    %v673 = vunpack.c.l.b16 %v154
    %v674 = vunpack.c.h.b16 %v154
    %v675 = vpack.c.b16 %v551, %v547
    %v676 = vpack.c.b16 %v552, %v548
    %v677 = vpack.c.b16 %v553, %v549
    %v678 = vpack.c.b16 %v554, %v550
    %v679 = vpack.c.b16 %v559, %v555
    %v680 = vpack.c.b16 %v560, %v556
    %v681 = vpack.c.b16 %v561, %v557
    %v682 = vpack.c.b16 %v562, %v558
    %v683 = vpack.c.b16 %v567, %v563
    %v684 = vpack.c.b16 %v568, %v564
    %v685 = vpack.c.b16 %v569, %v565
    %v686 = vpack.c.b16 %v570, %v566
    %v687 = vpack.c.b16 %v575, %v571
    %v688 = vpack.c.b16 %v576, %v572
    %v689 = vpack.c.b16 %v577, %v573
    %v690 = vpack.c.b16 %v578, %v574
    %v691 = vpack.c.b16 %v583, %v579
    %v692 = vpack.c.b16 %v584, %v580
    %v693 = vpack.c.b16 %v585, %v581
    %v694 = vpack.c.b16 %v586, %v582
    %v695 = vpack.c.b16 %v591, %v587
    %v696 = vpack.c.b16 %v592, %v588
    %v697 = vpack.c.b16 %v593, %v589
    %v698 = vpack.c.b16 %v594, %v590
    %v699 = vpack.c.b16 %v599, %v595
    %v700 = vpack.c.b16 %v600, %v596
    %v701 = vpack.c.b16 %v601, %v597
    %v702 = vpack.c.b16 %v602, %v598
    %v703 = vpack.c.b16 %v607, %v603
    %v704 = vpack.c.b16 %v608, %v604
    %v705 = vpack.c.b16 %v609, %v605
    %v706 = vpack.c.b16 %v610, %v606
    %v707 = vpack.c.b16 %v615, %v611
    %v708 = vpack.c.b16 %v616, %v612
    %v709 = vpack.c.b16 %v617, %v613
    %v710 = vpack.c.b16 %v618, %v614
    %v711 = vpack.c.b16 %v623, %v619
    %v712 = vpack.c.b16 %v624, %v620
    %v713 = vpack.c.b16 %v625, %v621
    %v714 = vpack.c.b16 %v626, %v622
    %v715 = vpack.c.b16 %v631, %v627
    %v716 = vpack.c.b16 %v632, %v628
    %v717 = vpack.c.b16 %v633, %v629
    %v718 = vpack.c.b16 %v634, %v630
    %v719 = vpack.c.b16 %v639, %v635
    %v720 = vpack.c.b16 %v640, %v636
    %v721 = vpack.c.b16 %v641, %v637
    %v722 = vpack.c.b16 %v642, %v638
    %v723 = vpack.c.b16 %v647, %v643
    %v724 = vpack.c.b16 %v648, %v644
    %v725 = vpack.c.b16 %v649, %v645
    %v726 = vpack.c.b16 %v650, %v646
    %v727 = vpack.c.b16 %v655, %v651
    %v728 = vpack.c.b16 %v656, %v652
    %v729 = vpack.c.b16 %v657, %v653
    %v730 = vpack.c.b16 %v658, %v654
    %v731 = vpack.c.b16 %v663, %v659
    %v732 = vpack.c.b16 %v664, %v660
    %v733 = vpack.c.b16 %v665, %v661
    %v734 = vpack.c.b16 %v666, %v662
    %v735 = vpack.c.b16 %v671, %v667
    %v736 = vpack.c.b16 %v672, %v668
    %v737 = vpack.c.b16 %v673, %v669
    %v738 = vpack.c.b16 %v674, %v670
    %803 = vmatprep.subr.bf16.mxu0 %v676
    %804 = vmatpush1.bf16.msra.mxu0 %v675
    %805 = vmatprep.subr.bf16.mxu0 %v680
    %806 = vmatpush1.bf16.msra.mxu0 %v679
    %807 = vmatprep.subr.bf16.mxu0 %v684
    %808 = vmatpush1.bf16.msra.mxu0 %v683
    %809 = vmatprep.subr.bf16.mxu0 %v688
    %810 = vmatpush1.bf16.msra.mxu0 %v687
    %811 = vmatprep.subr.bf16.mxu0 %v692
    %812 = vmatpush1.bf16.msra.mxu0 %v691
    %813 = vmatprep.subr.bf16.mxu0 %v696
    %814 = vmatpush1.bf16.msra.mxu0 %v695
    %815 = vmatprep.subr.bf16.mxu0 %v700
    %816 = vmatpush1.bf16.msra.mxu0 %v699
    %817 = vmatprep.subr.bf16.mxu0 %v704
    %818 = vmatpush1.bf16.msra.mxu0 %v703
    %819 = vmatprep.subr.bf16.mxu0 %v708
    %820 = vmatpush1.bf16.msra.mxu0 %v707
    %821 = vmatprep.subr.bf16.mxu0 %v712
    %822 = vmatpush1.bf16.msra.mxu0 %v711
    %823 = vmatprep.subr.bf16.mxu0 %v716
    %824 = vmatpush1.bf16.msra.mxu0 %v715
    %825 = vmatprep.subr.bf16.mxu0 %v720
    %826 = vmatpush1.bf16.msra.mxu0 %v719
    %827 = vmatprep.subr.bf16.mxu0 %v724
    %828 = vmatpush1.bf16.msra.mxu0 %v723
    %829 = vmatprep.subr.bf16.mxu0 %v728
    %830 = vmatpush1.bf16.msra.mxu0 %v727
    %831 = vmatprep.subr.bf16.mxu0 %v732
    %832 = vmatpush1.bf16.msra.mxu0 %v731
    %833 = vmatprep.subr.bf16.mxu0 %v736
    %834 = vmatpush1.bf16.msra.mxu0 %v735
    %835 = vmatprep.mubr.bf16.mxu0 %v482
    %836 = vmatmul.mubr.bf16.gmra.mrb[0].mxu0 %v481
    %v837 = vpop.f32.mrb[0].mxu0
    %v838 = vadd.f32 %v160, %v837
    %v839 = vpop.f32.mrb[0].mxu0
    %v840 = vadd.f32 %v164, %v839
    %v841 = vpop.f32.mrb[0].mxu0
    %v842 = vpop.f32.mrb[0].mxu0
    %843 = vdwg.mxu0
    %844 = vmatprep.subr.bf16.mxu0 %v678
    %845 = vmatpush1.bf16.msra.mxu0 %v677
    %846 = vmatprep.subr.bf16.mxu0 %v682
    %847 = vmatpush1.bf16.msra.mxu0 %v681
    %848 = vmatprep.subr.bf16.mxu0 %v686
    %849 = vmatpush1.bf16.msra.mxu0 %v685
    %850 = vmatprep.subr.bf16.mxu0 %v690
    %851 = vmatpush1.bf16.msra.mxu0 %v689
    %852 = vmatprep.subr.bf16.mxu0 %v694
    %853 = vmatpush1.bf16.msra.mxu0 %v693
    %854 = vmatprep.subr.bf16.mxu0 %v698
    %855 = vmatpush1.bf16.msra.mxu0 %v697
    %856 = vmatprep.subr.bf16.mxu0 %v702
    %857 = vmatpush1.bf16.msra.mxu0 %v701
    %858 = vmatprep.subr.bf16.mxu0 %v706
    %859 = vmatpush1.bf16.msra.mxu0 %v705
    %860 = vmatprep.subr.bf16.mxu0 %v710
    %861 = vmatpush1.bf16.msra.mxu0 %v709
    %862 = vmatprep.subr.bf16.mxu0 %v714
    %863 = vmatpush1.bf16.msra.mxu0 %v713
    %864 = vmatprep.subr.bf16.mxu0 %v718
    %865 = vmatpush1.bf16.msra.mxu0 %v717
    %866 = vmatprep.subr.bf16.mxu0 %v722
    %867 = vmatpush1.bf16.msra.mxu0 %v721
    %868 = vmatprep.subr.bf16.mxu0 %v726
    %869 = vmatpush1.bf16.msra.mxu0 %v725
    %870 = vmatprep.subr.bf16.mxu0 %v730
    %871 = vmatpush1.bf16.msra.mxu0 %v729
    %872 = vmatprep.subr.bf16.mxu0 %v734
    %873 = vmatpush1.bf16.msra.mxu0 %v733
    %874 = vmatprep.subr.bf16.mxu0 %v738
    %875 = vmatpush1.bf16.msra.mxu0 %v737
    %876 = vmatprep.mubr.bf16.mxu0 %v482
    %877 = vmatmul.mubr.bf16.gmra.mrb[0].mxu0 %v481
    %v878 = vpop.f32.mrb[0].mxu0
    %v879 = vadd.f32 %v168, %v878
    %v880 = vpop.f32.mrb[0].mxu0
    %v881 = vadd.f32 %v172, %v880
    %v882 = vpop.f32.mrb[0].mxu0
    %v883 = vpop.f32.mrb[0].mxu0
    %884 = vdwg.mxu0
    %v885 = vxor.u32 %v838, 2147483648
    %v886 = vmul.f32 %v885, 1.442695
    %v887 = vpow.pop %v886
    %v888 = vadd.f32 %v887, 1.0
    %v889 = vrcp.pop %v888
    %v890 = vmul.f32 1.0, %v889
    %v891 = vxor.u32 %v840, 2147483648
    %v892 = vmul.f32 %v891, 1.442695
    %v893 = vpow.pop %v892
    %v894 = vadd.f32 %v893, 1.0
    %v895 = vrcp.pop %v894
    %v896 = vmul.f32 1.0, %v895
    %v897 = vtanh.pop %v879
    %v898 = vxor.u32 %v881, 2147483648
    %v899 = vmul.f32 %v898, 1.442695
    %v900 = vpow.pop %v899
    %v901 = vadd.f32 %v900, 1.0
    %v902 = vrcp.pop %v901
    %v903 = vmul.f32 1.0, %v902
    %v904 = vmul.f32 %v896, %v182
    %v905 = vmul.f32 %v890, %v897
    %v906 = vadd.f32 %v904, %v905
    %v907 = vtanh.pop %v906
    %v908 = vmul.f32 %v903, %v907
    %s909 = scalar_lea.vmem %s0, 8
    %v910 = vld [vmem:[%s909] sm:$0xff]
    %911 = vmatprep.subr.bf16.mxu0 %v282
    %912 = vmatpush1.bf16.msra.mxu0 %v281
    %913 = vmatprep.subr.bf16.mxu0 %v286
    %914 = vmatpush1.bf16.msra.mxu0 %v285
    %915 = vmatprep.subr.bf16.mxu0 %v290
    %916 = vmatpush1.bf16.msra.mxu0 %v289
    %917 = vmatprep.subr.bf16.mxu0 %v294
    %918 = vmatpush1.bf16.msra.mxu0 %v293
    %919 = vmatprep.subr.bf16.mxu0 %v298
    %920 = vmatpush1.bf16.msra.mxu0 %v297
    %921 = vmatprep.subr.bf16.mxu0 %v302
    %922 = vmatpush1.bf16.msra.mxu0 %v301
    %923 = vmatprep.subr.bf16.mxu0 %v306
    %924 = vmatpush1.bf16.msra.mxu0 %v305
    %925 = vmatprep.subr.bf16.mxu0 %v310
    %926 = vmatpush1.bf16.msra.mxu0 %v309
    %927 = vmatprep.subr.bf16.mxu0 0
    %928 = vmatpush1.bf16.msra.mxu0 0
    %929 = vmatprep.subr.bf16.mxu0 0
    %930 = vmatpush1.bf16.msra.mxu0 0
    %931 = vmatprep.subr.bf16.mxu0 0
    %932 = vmatpush1.bf16.msra.mxu0 0
    %933 = vmatprep.subr.bf16.mxu0 0
    %934 = vmatpush1.bf16.msra.mxu0 0
    %935 = vmatprep.subr.bf16.mxu0 0
    %936 = vmatpush1.bf16.msra.mxu0 0
    %937 = vmatprep.subr.bf16.mxu0 0
    %938 = vmatpush1.bf16.msra.mxu0 0
    %939 = vmatprep.subr.bf16.mxu0 0
    %940 = vmatpush1.bf16.msra.mxu0 0
    %941 = vmatprep.subr.bf16.mxu0 0
    %942 = vmatpush1.bf16.msra.mxu0 0
    %943 = vmatprep.mubr.bf16.mxu0 0
    %944 = vmatmul.mubr.bf16.gmra.mrb[0].mxu0 %v481
    %v945 = vpop.f32.mrb[0].mxu0
    %v946 = vadd.f32 0.0, %v945
    %v947 = vpop.f32.mrb[0].mxu0
    %v948 = vadd.f32 0.0, %v947
    %v949 = vpop.f32.mrb[0].mxu0
    %v950 = vpop.f32.mrb[0].mxu0
    %951 = vdwg.mxu0
    %952 = vmatprep.subr.bf16.mxu0 %v284
    %953 = vmatpush1.bf16.msra.mxu0 %v283
    %954 = vmatprep.subr.bf16.mxu0 %v288
    %955 = vmatpush1.bf16.msra.mxu0 %v287
    %956 = vmatprep.subr.bf16.mxu0 %v292
    %957 = vmatpush1.bf16.msra.mxu0 %v291
    %958 = vmatprep.subr.bf16.mxu0 %v296
    %959 = vmatpush1.bf16.msra.mxu0 %v295
    %960 = vmatprep.subr.bf16.mxu0 %v300
    %961 = vmatpush1.bf16.msra.mxu0 %v299
    %962 = vmatprep.subr.bf16.mxu0 %v304
    %963 = vmatpush1.bf16.msra.mxu0 %v303
    %964 = vmatprep.subr.bf16.mxu0 %v308
    %965 = vmatpush1.bf16.msra.mxu0 %v307
    %966 = vmatprep.subr.bf16.mxu0 %v312
    %967 = vmatpush1.bf16.msra.mxu0 %v311
    %968 = vmatprep.subr.bf16.mxu0 0
    %969 = vmatpush1.bf16.msra.mxu0 0
    %970 = vmatprep.subr.bf16.mxu0 0
    %971 = vmatpush1.bf16.msra.mxu0 0
    %972 = vmatprep.subr.bf16.mxu0 0
    %973 = vmatpush1.bf16.msra.mxu0 0
    %974 = vmatprep.subr.bf16.mxu0 0
    %975 = vmatpush1.bf16.msra.mxu0 0
    %976 = vmatprep.subr.bf16.mxu0 0
    %977 = vmatpush1.bf16.msra.mxu0 0
    %978 = vmatprep.subr.bf16.mxu0 0
    %979 = vmatpush1.bf16.msra.mxu0 0
    %980 = vmatprep.subr.bf16.mxu0 0
    %981 = vmatpush1.bf16.msra.mxu0 0
    %982 = vmatprep.subr.bf16.mxu0 0
    %983 = vmatpush1.bf16.msra.mxu0 0
    %984 = vmatprep.mubr.bf16.mxu0 0
    %985 = vmatmul.mubr.bf16.gmra.mrb[0].mxu0 %v481
    %v986 = vpop.f32.mrb[0].mxu0
    %v987 = vadd.f32 0.0, %v986
    %v988 = vpop.f32.mrb[0].mxu0
    %v989 = vadd.f32 0.0, %v988
    %v990 = vpop.f32.mrb[0].mxu0
    %v991 = vpop.f32.mrb[0].mxu0
    %992 = vdwg.mxu0
    %v997 = vcombine.low %v946, %v948
    %v998 = vcombine.low %v987, %v989
    %v1000 = vunpack.c.l.s4 1983009808
    %v1001 = vunpack.c.0.s8 %v1000
    %v1002 = vlaneseq
    %v1003 = vshrl.u32 %v1002, 7
    %v1004 = vsub.s32 %v1001, %v1003
    %v1005 = vrot.slane %v997, %v1004
    %v1007 = vunpack.c.l.s4 1983009808
    %v1008 = vunpack.c.0.s8 %v1007
    %v1009 = vlaneseq
    %v1010 = vshrl.u32 %v1009, 7
    %v1011 = vsub.s32 %v1008, %v1010
    %v1012 = vrot.slane %v998, %v1011
    %v1013 = vcombine.low %v1005, %v1012
    %v1015 = vadd.f32 %v910, %v1013
    %v1016 = vxor.u32 %v1015, 2147483648
    %v1017 = vmul.f32 %v1016, 1.442695
    %v1018 = vpow.pop %v1017
    %v1019 = vadd.f32 %v1018, 1.0
    %v1020 = vrcp.pop %v1019
    %v1021 = vmul.f32 1.0, %v1020
    %v1023 = vrot.slane %v1015, 2
    %v1025 = vxor.u32 %v1023, 2147483648
    %v1026 = vmul.f32 %v1025, 1.442695
    %v1027 = vpow.pop %v1026
    %v1028 = vadd.f32 %v1027, 1.0
    %v1029 = vrcp.pop %v1028
    %v1030 = vmul.f32 1.0, %v1029
    %v1031 = vrot.slane %v1015, 4
    %v1033 = vtanh.pop %v1031
    %v1034 = vrot.slane %v1015, 6
    %v1036 = vxor.u32 %v1034, 2147483648
    %v1037 = vmul.f32 %v1036, 1.442695
    %v1038 = vpow.pop %v1037
    %v1039 = vadd.f32 %v1038, 1.0
    %v1040 = vrcp.pop %v1039
    %v1041 = vmul.f32 1.0, %v1040
    %v1042 = vmul.f32 %v1030, %v478
    %v1043 = vmul.f32 %v1021, %v1033
    %v1044 = vadd.f32 %v1042, %v1043
    %v1045 = vtanh.pop %v1044
    %v1046 = vmul.f32 %v1041, %v1045
    %v1047 = vpack.c.bf16 %v1046, %v1046
    %v1048 = vpack.c.bf16 %v908, %v908
    %1049 = vmatprep.subr.bf16.mxu0 %v676
    %1050 = vmatpush1.bf16.msra.mxu0 %v675
    %1051 = vmatprep.subr.bf16.mxu0 %v680
    %1052 = vmatpush1.bf16.msra.mxu0 %v679
    %1053 = vmatprep.subr.bf16.mxu0 %v684
    %1054 = vmatpush1.bf16.msra.mxu0 %v683
    %1055 = vmatprep.subr.bf16.mxu0 %v688
    %1056 = vmatpush1.bf16.msra.mxu0 %v687
    %1057 = vmatprep.subr.bf16.mxu0 %v692
    %1058 = vmatpush1.bf16.msra.mxu0 %v691
    %1059 = vmatprep.subr.bf16.mxu0 %v696
    %1060 = vmatpush1.bf16.msra.mxu0 %v695
    %1061 = vmatprep.subr.bf16.mxu0 %v700
    %1062 = vmatpush1.bf16.msra.mxu0 %v699
    %1063 = vmatprep.subr.bf16.mxu0 %v704
    %1064 = vmatpush1.bf16.msra.mxu0 %v703
    %1065 = vmatprep.subr.bf16.mxu0 %v708
    %1066 = vmatpush1.bf16.msra.mxu0 %v707
    %1067 = vmatprep.subr.bf16.mxu0 %v712
    %1068 = vmatpush1.bf16.msra.mxu0 %v711
    %1069 = vmatprep.subr.bf16.mxu0 %v716
    %1070 = vmatpush1.bf16.msra.mxu0 %v715
    %1071 = vmatprep.subr.bf16.mxu0 %v720
    %1072 = vmatpush1.bf16.msra.mxu0 %v719
    %1073 = vmatprep.subr.bf16.mxu0 %v724
    %1074 = vmatpush1.bf16.msra.mxu0 %v723
    %1075 = vmatprep.subr.bf16.mxu0 %v728
    %1076 = vmatpush1.bf16.msra.mxu0 %v727
    %1077 = vmatprep.subr.bf16.mxu0 %v732
    %1078 = vmatpush1.bf16.msra.mxu0 %v731
    %1079 = vmatprep.subr.bf16.mxu0 %v736
    %1080 = vmatpush1.bf16.msra.mxu0 %v735
    %1081 = vmatprep.mubr.bf16.mxu0 %v1048
    %1082 = vmatmul.mubr.bf16.gmra.mrb[0].mxu0 %v1047
    %v1083 = vpop.f32.mrb[0].mxu0
    %v1084 = vadd.f32 %v160, %v1083
    %v1085 = vpop.f32.mrb[0].mxu0
    %v1086 = vadd.f32 %v164, %v1085
    %v1087 = vpop.f32.mrb[0].mxu0
    %v1088 = vpop.f32.mrb[0].mxu0
    %1089 = vdwg.mxu0
    %1090 = vmatprep.subr.bf16.mxu0 %v678
    %1091 = vmatpush1.bf16.msra.mxu0 %v677
    %1092 = vmatprep.subr.bf16.mxu0 %v682
    %1093 = vmatpush1.bf16.msra.mxu0 %v681
    %1094 = vmatprep.subr.bf16.mxu0 %v686
    %1095 = vmatpush1.bf16.msra.mxu0 %v685
    %1096 = vmatprep.subr.bf16.mxu0 %v690
    %1097 = vmatpush1.bf16.msra.mxu0 %v689
    %1098 = vmatprep.subr.bf16.mxu0 %v694
    %1099 = vmatpush1.bf16.msra.mxu0 %v693
    %1100 = vmatprep.subr.bf16.mxu0 %v698
    %1101 = vmatpush1.bf16.msra.mxu0 %v697
    %1102 = vmatprep.subr.bf16.mxu0 %v702
    %1103 = vmatpush1.bf16.msra.mxu0 %v701
    %1104 = vmatprep.subr.bf16.mxu0 %v706
    %1105 = vmatpush1.bf16.msra.mxu0 %v705
    %1106 = vmatprep.subr.bf16.mxu0 %v710
    %1107 = vmatpush1.bf16.msra.mxu0 %v709
    %1108 = vmatprep.subr.bf16.mxu0 %v714
    %1109 = vmatpush1.bf16.msra.mxu0 %v713
    %1110 = vmatprep.subr.bf16.mxu0 %v718
    %1111 = vmatpush1.bf16.msra.mxu0 %v717
    %1112 = vmatprep.subr.bf16.mxu0 %v722
    %1113 = vmatpush1.bf16.msra.mxu0 %v721
    %1114 = vmatprep.subr.bf16.mxu0 %v726
    %1115 = vmatpush1.bf16.msra.mxu0 %v725
    %1116 = vmatprep.subr.bf16.mxu0 %v730
    %1117 = vmatpush1.bf16.msra.mxu0 %v729
    %1118 = vmatprep.subr.bf16.mxu0 %v734
    %1119 = vmatpush1.bf16.msra.mxu0 %v733
    %1120 = vmatprep.subr.bf16.mxu0 %v738
    %1121 = vmatpush1.bf16.msra.mxu0 %v737
    %1122 = vmatprep.mubr.bf16.mxu0 %v1048
    %1123 = vmatmul.mubr.bf16.gmra.mrb[0].mxu0 %v1047
    %v1124 = vpop.f32.mrb[0].mxu0
    %v1125 = vadd.f32 %v168, %v1124
    %v1126 = vpop.f32.mrb[0].mxu0
    %v1127 = vadd.f32 %v172, %v1126
    %v1128 = vpop.f32.mrb[0].mxu0
    %v1129 = vpop.f32.mrb[0].mxu0
    %1130 = vdwg.mxu0
    %v1131 = vxor.u32 %v1084, 2147483648
    %v1132 = vmul.f32 %v1131, 1.442695
    %v1133 = vpow.pop %v1132
    %v1134 = vadd.f32 %v1133, 1.0
    %v1135 = vrcp.pop %v1134
    %v1136 = vmul.f32 1.0, %v1135
    %v1137 = vxor.u32 %v1086, 2147483648
    %v1138 = vmul.f32 %v1137, 1.442695
    %v1139 = vpow.pop %v1138
    %v1140 = vadd.f32 %v1139, 1.0
    %v1141 = vrcp.pop %v1140
    %v1142 = vmul.f32 1.0, %v1141
    %v1143 = vtanh.pop %v1125
    %v1144 = vxor.u32 %v1127, 2147483648
    %v1145 = vmul.f32 %v1144, 1.442695
    %v1146 = vpow.pop %v1145
    %v1147 = vadd.f32 %v1146, 1.0
    %v1148 = vrcp.pop %v1147
    %v1149 = vmul.f32 1.0, %v1148
    %v1150 = vmul.f32 %v1142, %v906
    %v1151 = vmul.f32 %v1136, %v1143
    %v1152 = vadd.f32 %v1150, %v1151
    %v1153 = vtanh.pop %v1152
    %v1154 = vmul.f32 %v1149, %v1153
    %s1155 = scalar_lea.vmem %s0, 16
    %v1156 = vld [vmem:[%s1155] sm:$0xff]
    %1157 = vmatprep.subr.bf16.mxu0 %v282
    %1158 = vmatpush1.bf16.msra.mxu0 %v281
    %1159 = vmatprep.subr.bf16.mxu0 %v286
    %1160 = vmatpush1.bf16.msra.mxu0 %v285
    %1161 = vmatprep.subr.bf16.mxu0 %v290
    %1162 = vmatpush1.bf16.msra.mxu0 %v289
    %1163 = vmatprep.subr.bf16.mxu0 %v294
    %1164 = vmatpush1.bf16.msra.mxu0 %v293
    %1165 = vmatprep.subr.bf16.mxu0 %v298
    %1166 = vmatpush1.bf16.msra.mxu0 %v297
    %1167 = vmatprep.subr.bf16.mxu0 %v302
    %1168 = vmatpush1.bf16.msra.mxu0 %v301
    %1169 = vmatprep.subr.bf16.mxu0 %v306
    %1170 = vmatpush1.bf16.msra.mxu0 %v305
    %1171 = vmatprep.subr.bf16.mxu0 %v310
    %1172 = vmatpush1.bf16.msra.mxu0 %v309
    %1173 = vmatprep.subr.bf16.mxu0 0
    %1174 = vmatpush1.bf16.msra.mxu0 0
    %1175 = vmatprep.subr.bf16.mxu0 0
    %1176 = vmatpush1.bf16.msra.mxu0 0
    %1177 = vmatprep.subr.bf16.mxu0 0
    %1178 = vmatpush1.bf16.msra.mxu0 0
    %1179 = vmatprep.subr.bf16.mxu0 0
    %1180 = vmatpush1.bf16.msra.mxu0 0
    %1181 = vmatprep.subr.bf16.mxu0 0
    %1182 = vmatpush1.bf16.msra.mxu0 0
    %1183 = vmatprep.subr.bf16.mxu0 0
    %1184 = vmatpush1.bf16.msra.mxu0 0
    %1185 = vmatprep.subr.bf16.mxu0 0
    %1186 = vmatpush1.bf16.msra.mxu0 0
    %1187 = vmatprep.subr.bf16.mxu0 0
    %1188 = vmatpush1.bf16.msra.mxu0 0
    %1189 = vmatprep.mubr.bf16.mxu0 0
    %1190 = vmatmul.mubr.bf16.gmra.mrb[0].mxu0 %v1047
    %v1191 = vpop.f32.mrb[0].mxu0
    %v1192 = vadd.f32 0.0, %v1191
    %v1193 = vpop.f32.mrb[0].mxu0
    %v1194 = vadd.f32 0.0, %v1193
    %v1195 = vpop.f32.mrb[0].mxu0
    %v1196 = vpop.f32.mrb[0].mxu0
    %1197 = vdwg.mxu0
    %1198 = vmatprep.subr.bf16.mxu0 %v284
    %1199 = vmatpush1.bf16.msra.mxu0 %v283
    %1200 = vmatprep.subr.bf16.mxu0 %v288
    %1201 = vmatpush1.bf16.msra.mxu0 %v287
    %1202 = vmatprep.subr.bf16.mxu0 %v292
    %1203 = vmatpush1.bf16.msra.mxu0 %v291
    %1204 = vmatprep.subr.bf16.mxu0 %v296
    %1205 = vmatpush1.bf16.msra.mxu0 %v295
    %1206 = vmatprep.subr.bf16.mxu0 %v300
    %1207 = vmatpush1.bf16.msra.mxu0 %v299
    %1208 = vmatprep.subr.bf16.mxu0 %v304
    %1209 = vmatpush1.bf16.msra.mxu0 %v303
    %1210 = vmatprep.subr.bf16.mxu0 %v308
    %1211 = vmatpush1.bf16.msra.mxu0 %v307
    %1212 = vmatprep.subr.bf16.mxu0 %v312
    %1213 = vmatpush1.bf16.msra.mxu0 %v311
    %1214 = vmatprep.subr.bf16.mxu0 0
    %1215 = vmatpush1.bf16.msra.mxu0 0
    %1216 = vmatprep.subr.bf16.mxu0 0
    %1217 = vmatpush1.bf16.msra.mxu0 0
    %1218 = vmatprep.subr.bf16.mxu0 0
    %1219 = vmatpush1.bf16.msra.mxu0 0
    %1220 = vmatprep.subr.bf16.mxu0 0
    %1221 = vmatpush1.bf16.msra.mxu0 0
    %1222 = vmatprep.subr.bf16.mxu0 0
    %1223 = vmatpush1.bf16.msra.mxu0 0
    %1224 = vmatprep.subr.bf16.mxu0 0
    %1225 = vmatpush1.bf16.msra.mxu0 0
    %1226 = vmatprep.subr.bf16.mxu0 0
    %1227 = vmatpush1.bf16.msra.mxu0 0
    %1228 = vmatprep.subr.bf16.mxu0 0
    %1229 = vmatpush1.bf16.msra.mxu0 0
    %1230 = vmatprep.mubr.bf16.mxu0 0
    %1231 = vmatmul.mubr.bf16.gmra.mrb[0].mxu0 %v1047
    %v1232 = vpop.f32.mrb[0].mxu0
    %v1233 = vadd.f32 0.0, %v1232
    %v1234 = vpop.f32.mrb[0].mxu0
    %v1235 = vadd.f32 0.0, %v1234
    %v1236 = vpop.f32.mrb[0].mxu0
    %v1237 = vpop.f32.mrb[0].mxu0
    %1238 = vdwg.mxu0
    %v1243 = vcombine.low %v1192, %v1194
    %v1244 = vcombine.low %v1233, %v1235
    %v1246 = vunpack.c.l.s4 1983009808
    %v1247 = vunpack.c.0.s8 %v1246
    %v1248 = vlaneseq
    %v1249 = vshrl.u32 %v1248, 7
    %v1250 = vsub.s32 %v1247, %v1249
    %v1251 = vrot.slane %v1243, %v1250
    %v1253 = vunpack.c.l.s4 1983009808
    %v1254 = vunpack.c.0.s8 %v1253
    %v1255 = vlaneseq
    %v1256 = vshrl.u32 %v1255, 7
    %v1257 = vsub.s32 %v1254, %v1256
    %v1258 = vrot.slane %v1244, %v1257
    %v1259 = vcombine.low %v1251, %v1258
    %v1261 = vadd.f32 %v1156, %v1259
    %v1262 = vxor.u32 %v1261, 2147483648
    %v1263 = vmul.f32 %v1262, 1.442695
    %v1264 = vpow.pop %v1263
    %v1265 = vadd.f32 %v1264, 1.0
    %v1266 = vrcp.pop %v1265
    %v1267 = vmul.f32 1.0, %v1266
    %v1269 = vrot.slane %v1261, 2
    %v1271 = vxor.u32 %v1269, 2147483648
    %v1272 = vmul.f32 %v1271, 1.442695
    %v1273 = vpow.pop %v1272
    %v1274 = vadd.f32 %v1273, 1.0
    %v1275 = vrcp.pop %v1274
    %v1276 = vmul.f32 1.0, %v1275
    %v1277 = vrot.slane %v1261, 4
    %v1279 = vtanh.pop %v1277
    %v1280 = vrot.slane %v1261, 6
    %v1282 = vxor.u32 %v1280, 2147483648
    %v1283 = vmul.f32 %v1282, 1.442695
    %v1284 = vpow.pop %v1283
    %v1285 = vadd.f32 %v1284, 1.0
    %v1286 = vrcp.pop %v1285
    %v1287 = vmul.f32 1.0, %v1286
    %v1288 = vmul.f32 %v1276, %v1044
    %v1289 = vmul.f32 %v1267, %v1279
    %v1290 = vadd.f32 %v1288, %v1289
    %v1291 = vtanh.pop %v1290
    %v1292 = vmul.f32 %v1287, %v1291
    %v1293 = vpack.c.bf16 %v1292, %v1292
    %v1294 = vpack.c.bf16 %v1154, %v1154
    %1295 = vmatprep.subr.bf16.mxu0 %v676
    %1296 = vmatpush1.bf16.msra.mxu0 %v675
    %1297 = vmatprep.subr.bf16.mxu0 %v680
    %1298 = vmatpush1.bf16.msra.mxu0 %v679
    %1299 = vmatprep.subr.bf16.mxu0 %v684
    %1300 = vmatpush1.bf16.msra.mxu0 %v683
    %1301 = vmatprep.subr.bf16.mxu0 %v688
    %1302 = vmatpush1.bf16.msra.mxu0 %v687
    %1303 = vmatprep.subr.bf16.mxu0 %v692
    %1304 = vmatpush1.bf16.msra.mxu0 %v691
    %1305 = vmatprep.subr.bf16.mxu0 %v696
    %1306 = vmatpush1.bf16.msra.mxu0 %v695
    %1307 = vmatprep.subr.bf16.mxu0 %v700
    %1308 = vmatpush1.bf16.msra.mxu0 %v699
    %1309 = vmatprep.subr.bf16.mxu0 %v704
    %1310 = vmatpush1.bf16.msra.mxu0 %v703
    %1311 = vmatprep.subr.bf16.mxu0 %v708
    %1312 = vmatpush1.bf16.msra.mxu0 %v707
    %1313 = vmatprep.subr.bf16.mxu0 %v712
    %1314 = vmatpush1.bf16.msra.mxu0 %v711
    %1315 = vmatprep.subr.bf16.mxu0 %v716
    %1316 = vmatpush1.bf16.msra.mxu0 %v715
    %1317 = vmatprep.subr.bf16.mxu0 %v720
    %1318 = vmatpush1.bf16.msra.mxu0 %v719
    %1319 = vmatprep.subr.bf16.mxu0 %v724
    %1320 = vmatpush1.bf16.msra.mxu0 %v723
    %1321 = vmatprep.subr.bf16.mxu0 %v728
    %1322 = vmatpush1.bf16.msra.mxu0 %v727
    %1323 = vmatprep.subr.bf16.mxu0 %v732
    %1324 = vmatpush1.bf16.msra.mxu0 %v731
    %1325 = vmatprep.subr.bf16.mxu0 %v736
    %1326 = vmatpush1.bf16.msra.mxu0 %v735
    %1327 = vmatprep.mubr.bf16.mxu0 %v1294
    %1328 = vmatmul.mubr.bf16.gmra.mrb[0].mxu0 %v1293
    %v1329 = vpop.f32.mrb[0].mxu0
    %v1330 = vadd.f32 %v160, %v1329
    %v1331 = vpop.f32.mrb[0].mxu0
    %v1332 = vadd.f32 %v164, %v1331
    %v1333 = vpop.f32.mrb[0].mxu0
    %v1334 = vpop.f32.mrb[0].mxu0
    %1335 = vdwg.mxu0
    %1336 = vmatprep.subr.bf16.mxu0 %v678
    %1337 = vmatpush1.bf16.msra.mxu0 %v677
    %1338 = vmatprep.subr.bf16.mxu0 %v682
    %1339 = vmatpush1.bf16.msra.mxu0 %v681
    %1340 = vmatprep.subr.bf16.mxu0 %v686
    %1341 = vmatpush1.bf16.msra.mxu0 %v685
    %1342 = vmatprep.subr.bf16.mxu0 %v690
    %1343 = vmatpush1.bf16.msra.mxu0 %v689
    %1344 = vmatprep.subr.bf16.mxu0 %v694
    %1345 = vmatpush1.bf16.msra.mxu0 %v693
    %1346 = vmatprep.subr.bf16.mxu0 %v698
    %1347 = vmatpush1.bf16.msra.mxu0 %v697
    %1348 = vmatprep.subr.bf16.mxu0 %v702
    %1349 = vmatpush1.bf16.msra.mxu0 %v701
    %1350 = vmatprep.subr.bf16.mxu0 %v706
    %1351 = vmatpush1.bf16.msra.mxu0 %v705
    %1352 = vmatprep.subr.bf16.mxu0 %v710
    %1353 = vmatpush1.bf16.msra.mxu0 %v709
    %1354 = vmatprep.subr.bf16.mxu0 %v714
    %1355 = vmatpush1.bf16.msra.mxu0 %v713
    %1356 = vmatprep.subr.bf16.mxu0 %v718
    %1357 = vmatpush1.bf16.msra.mxu0 %v717
    %1358 = vmatprep.subr.bf16.mxu0 %v722
    %1359 = vmatpush1.bf16.msra.mxu0 %v721
    %1360 = vmatprep.subr.bf16.mxu0 %v726
    %1361 = vmatpush1.bf16.msra.mxu0 %v725
    %1362 = vmatprep.subr.bf16.mxu0 %v730
    %1363 = vmatpush1.bf16.msra.mxu0 %v729
    %1364 = vmatprep.subr.bf16.mxu0 %v734
    %1365 = vmatpush1.bf16.msra.mxu0 %v733
    %1366 = vmatprep.subr.bf16.mxu0 %v738
    %1367 = vmatpush1.bf16.msra.mxu0 %v737
    %1368 = vmatprep.mubr.bf16.mxu0 %v1294
    %1369 = vmatmul.mubr.bf16.gmra.mrb[0].mxu0 %v1293
    %v1370 = vpop.f32.mrb[0].mxu0
    %v1371 = vadd.f32 %v168, %v1370
    %v1372 = vpop.f32.mrb[0].mxu0
    %v1373 = vadd.f32 %v172, %v1372
    %v1374 = vpop.f32.mrb[0].mxu0
    %v1375 = vpop.f32.mrb[0].mxu0
    %1376 = vdwg.mxu0
    %v1377 = vxor.u32 %v1330, 2147483648
    %v1378 = vmul.f32 %v1377, 1.442695
    %v1379 = vpow.pop %v1378
    %v1380 = vadd.f32 %v1379, 1.0
    %v1381 = vrcp.pop %v1380
    %v1382 = vmul.f32 1.0, %v1381
    %v1383 = vxor.u32 %v1332, 2147483648
    %v1384 = vmul.f32 %v1383, 1.442695
    %v1385 = vpow.pop %v1384
    %v1386 = vadd.f32 %v1385, 1.0
    %v1387 = vrcp.pop %v1386
    %v1388 = vmul.f32 1.0, %v1387
    %v1389 = vtanh.pop %v1371
    %v1390 = vxor.u32 %v1373, 2147483648
    %v1391 = vmul.f32 %v1390, 1.442695
    %v1392 = vpow.pop %v1391
    %v1393 = vadd.f32 %v1392, 1.0
    %v1394 = vrcp.pop %v1393
    %v1395 = vmul.f32 1.0, %v1394
    %v1396 = vmul.f32 %v1388, %v1152
    %v1397 = vmul.f32 %v1382, %v1389
    %v1398 = vadd.f32 %v1396, %v1397
    %v1399 = vtanh.pop %v1398
    %v1400 = vmul.f32 %v1395, %v1399
    %s1401 = scalar_lea.vmem %s0, 24
    %v1402 = vld [vmem:[%s1401] sm:$0xff]
    %1403 = vmatprep.subr.bf16.mxu0 %v282
    %1404 = vmatpush1.bf16.msra.mxu0 %v281
    %1405 = vmatprep.subr.bf16.mxu0 %v286
    %1406 = vmatpush1.bf16.msra.mxu0 %v285
    %1407 = vmatprep.subr.bf16.mxu0 %v290
    %1408 = vmatpush1.bf16.msra.mxu0 %v289
    %1409 = vmatprep.subr.bf16.mxu0 %v294
    %1410 = vmatpush1.bf16.msra.mxu0 %v293
    %1411 = vmatprep.subr.bf16.mxu0 %v298
    %1412 = vmatpush1.bf16.msra.mxu0 %v297
    %1413 = vmatprep.subr.bf16.mxu0 %v302
    %1414 = vmatpush1.bf16.msra.mxu0 %v301
    %1415 = vmatprep.subr.bf16.mxu0 %v306
    %1416 = vmatpush1.bf16.msra.mxu0 %v305
    %1417 = vmatprep.subr.bf16.mxu0 %v310
    %1418 = vmatpush1.bf16.msra.mxu0 %v309
    %1419 = vmatprep.subr.bf16.mxu0 0
    %1420 = vmatpush1.bf16.msra.mxu0 0
    %1421 = vmatprep.subr.bf16.mxu0 0
    %1422 = vmatpush1.bf16.msra.mxu0 0
    %1423 = vmatprep.subr.bf16.mxu0 0
    %1424 = vmatpush1.bf16.msra.mxu0 0
    %1425 = vmatprep.subr.bf16.mxu0 0
    %1426 = vmatpush1.bf16.msra.mxu0 0
    %1427 = vmatprep.subr.bf16.mxu0 0
    %1428 = vmatpush1.bf16.msra.mxu0 0
    %1429 = vmatprep.subr.bf16.mxu0 0
    %1430 = vmatpush1.bf16.msra.mxu0 0
    %1431 = vmatprep.subr.bf16.mxu0 0
    %1432 = vmatpush1.bf16.msra.mxu0 0
    %1433 = vmatprep.subr.bf16.mxu0 0
    %1434 = vmatpush1.bf16.msra.mxu0 0
    %1435 = vmatprep.mubr.bf16.mxu0 0
    %1436 = vmatmul.mubr.bf16.gmra.mrb[0].mxu0 %v1293
    %v1437 = vpop.f32.mrb[0].mxu0
    %v1438 = vadd.f32 0.0, %v1437
    %v1439 = vpop.f32.mrb[0].mxu0
    %v1440 = vadd.f32 0.0, %v1439
    %v1441 = vpop.f32.mrb[0].mxu0
    %v1442 = vpop.f32.mrb[0].mxu0
    %1443 = vdwg.mxu0
    %1444 = vmatprep.subr.bf16.mxu0 %v284
    %1445 = vmatpush1.bf16.msra.mxu0 %v283
    %1446 = vmatprep.subr.bf16.mxu0 %v288
    %1447 = vmatpush1.bf16.msra.mxu0 %v287
    %1448 = vmatprep.subr.bf16.mxu0 %v292
    %1449 = vmatpush1.bf16.msra.mxu0 %v291
    %1450 = vmatprep.subr.bf16.mxu0 %v296
    %1451 = vmatpush1.bf16.msra.mxu0 %v295
    %1452 = vmatprep.subr.bf16.mxu0 %v300
    %1453 = vmatpush1.bf16.msra.mxu0 %v299
    %1454 = vmatprep.subr.bf16.mxu0 %v304
    %1455 = vmatpush1.bf16.msra.mxu0 %v303
    %1456 = vmatprep.subr.bf16.mxu0 %v308
    %1457 = vmatpush1.bf16.msra.mxu0 %v307
    %1458 = vmatprep.subr.bf16.mxu0 %v312
    %1459 = vmatpush1.bf16.msra.mxu0 %v311
    %1460 = vmatprep.subr.bf16.mxu0 0
    %1461 = vmatpush1.bf16.msra.mxu0 0
    %1462 = vmatprep.subr.bf16.mxu0 0
    %1463 = vmatpush1.bf16.msra.mxu0 0
    %1464 = vmatprep.subr.bf16.mxu0 0
    %1465 = vmatpush1.bf16.msra.mxu0 0
    %1466 = vmatprep.subr.bf16.mxu0 0
    %1467 = vmatpush1.bf16.msra.mxu0 0
    %1468 = vmatprep.subr.bf16.mxu0 0
    %1469 = vmatpush1.bf16.msra.mxu0 0
    %1470 = vmatprep.subr.bf16.mxu0 0
    %1471 = vmatpush1.bf16.msra.mxu0 0
    %1472 = vmatprep.subr.bf16.mxu0 0
    %1473 = vmatpush1.bf16.msra.mxu0 0
    %1474 = vmatprep.subr.bf16.mxu0 0
    %1475 = vmatpush1.bf16.msra.mxu0 0
    %1476 = vmatprep.mubr.bf16.mxu0 0
    %1477 = vmatmul.mubr.bf16.gmra.mrb[0].mxu0 %v1293
    %v1478 = vpop.f32.mrb[0].mxu0
    %v1479 = vadd.f32 0.0, %v1478
    %v1480 = vpop.f32.mrb[0].mxu0
    %v1481 = vadd.f32 0.0, %v1480
    %v1482 = vpop.f32.mrb[0].mxu0
    %v1483 = vpop.f32.mrb[0].mxu0
    %1484 = vdwg.mxu0
    %v1489 = vcombine.low %v1438, %v1440
    %v1490 = vcombine.low %v1479, %v1481
    %v1492 = vunpack.c.l.s4 1983009808
    %v1493 = vunpack.c.0.s8 %v1492
    %v1494 = vlaneseq
    %v1495 = vshrl.u32 %v1494, 7
    %v1496 = vsub.s32 %v1493, %v1495
    %v1497 = vrot.slane %v1489, %v1496
    %v1499 = vunpack.c.l.s4 1983009808
    %v1500 = vunpack.c.0.s8 %v1499
    %v1501 = vlaneseq
    %v1502 = vshrl.u32 %v1501, 7
    %v1503 = vsub.s32 %v1500, %v1502
    %v1504 = vrot.slane %v1490, %v1503
    %v1505 = vcombine.low %v1497, %v1504
    %v1507 = vadd.f32 %v1402, %v1505
    %v1508 = vxor.u32 %v1507, 2147483648
    %v1509 = vmul.f32 %v1508, 1.442695
    %v1510 = vpow.pop %v1509
    %v1511 = vadd.f32 %v1510, 1.0
    %v1512 = vrcp.pop %v1511
    %v1513 = vmul.f32 1.0, %v1512
    %v1515 = vrot.slane %v1507, 2
    %v1517 = vxor.u32 %v1515, 2147483648
    %v1518 = vmul.f32 %v1517, 1.442695
    %v1519 = vpow.pop %v1518
    %v1520 = vadd.f32 %v1519, 1.0
    %v1521 = vrcp.pop %v1520
    %v1522 = vmul.f32 1.0, %v1521
    %v1523 = vrot.slane %v1507, 4
    %v1525 = vtanh.pop %v1523
    %v1526 = vrot.slane %v1507, 6
    %v1528 = vxor.u32 %v1526, 2147483648
    %v1529 = vmul.f32 %v1528, 1.442695
    %v1530 = vpow.pop %v1529
    %v1531 = vadd.f32 %v1530, 1.0
    %v1532 = vrcp.pop %v1531
    %v1533 = vmul.f32 1.0, %v1532
    %v1534 = vmul.f32 %v1522, %v1290
    %v1535 = vmul.f32 %v1513, %v1525
    %v1536 = vadd.f32 %v1534, %v1535
    %v1537 = vtanh.pop %v1536
    %v1538 = vmul.f32 %v1533, %v1537
    %v1539 = vpack.c.bf16 %v1538, %v1538
    %v1540 = vpack.c.bf16 %v1400, %v1400
    %1541 = vmatprep.subr.bf16.mxu0 %v676
    %1542 = vmatpush1.bf16.msra.mxu0 %v675
    %1543 = vmatprep.subr.bf16.mxu0 %v680
    %1544 = vmatpush1.bf16.msra.mxu0 %v679
    %1545 = vmatprep.subr.bf16.mxu0 %v684
    %1546 = vmatpush1.bf16.msra.mxu0 %v683
    %1547 = vmatprep.subr.bf16.mxu0 %v688
    %1548 = vmatpush1.bf16.msra.mxu0 %v687
    %1549 = vmatprep.subr.bf16.mxu0 %v692
    %1550 = vmatpush1.bf16.msra.mxu0 %v691
    %1551 = vmatprep.subr.bf16.mxu0 %v696
    %1552 = vmatpush1.bf16.msra.mxu0 %v695
    %1553 = vmatprep.subr.bf16.mxu0 %v700
    %1554 = vmatpush1.bf16.msra.mxu0 %v699
    %1555 = vmatprep.subr.bf16.mxu0 %v704
    %1556 = vmatpush1.bf16.msra.mxu0 %v703
    %1557 = vmatprep.subr.bf16.mxu0 %v708
    %1558 = vmatpush1.bf16.msra.mxu0 %v707
    %1559 = vmatprep.subr.bf16.mxu0 %v712
    %1560 = vmatpush1.bf16.msra.mxu0 %v711
    %1561 = vmatprep.subr.bf16.mxu0 %v716
    %1562 = vmatpush1.bf16.msra.mxu0 %v715
    %1563 = vmatprep.subr.bf16.mxu0 %v720
    %1564 = vmatpush1.bf16.msra.mxu0 %v719
    %1565 = vmatprep.subr.bf16.mxu0 %v724
    %1566 = vmatpush1.bf16.msra.mxu0 %v723
    %1567 = vmatprep.subr.bf16.mxu0 %v728
    %1568 = vmatpush1.bf16.msra.mxu0 %v727
    %1569 = vmatprep.subr.bf16.mxu0 %v732
    %1570 = vmatpush1.bf16.msra.mxu0 %v731
    %1571 = vmatprep.subr.bf16.mxu0 %v736
    %1572 = vmatpush1.bf16.msra.mxu0 %v735
    %1573 = vmatprep.mubr.bf16.mxu0 %v1540
    %1574 = vmatmul.mubr.bf16.gmra.mrb[0].mxu0 %v1539
    %v1575 = vpop.f32.mrb[0].mxu0
    %v1576 = vadd.f32 %v160, %v1575
    %v1577 = vpop.f32.mrb[0].mxu0
    %v1578 = vadd.f32 %v164, %v1577
    %v1579 = vpop.f32.mrb[0].mxu0
    %v1580 = vpop.f32.mrb[0].mxu0
    %1581 = vdwg.mxu0
    %1582 = vmatprep.subr.bf16.mxu0 %v678
    %1583 = vmatpush1.bf16.msra.mxu0 %v677
    %1584 = vmatprep.subr.bf16.mxu0 %v682
    %1585 = vmatpush1.bf16.msra.mxu0 %v681
    %1586 = vmatprep.subr.bf16.mxu0 %v686
    %1587 = vmatpush1.bf16.msra.mxu0 %v685
    %1588 = vmatprep.subr.bf16.mxu0 %v690
    %1589 = vmatpush1.bf16.msra.mxu0 %v689
    %1590 = vmatprep.subr.bf16.mxu0 %v694
    %1591 = vmatpush1.bf16.msra.mxu0 %v693
    %1592 = vmatprep.subr.bf16.mxu0 %v698
    %1593 = vmatpush1.bf16.msra.mxu0 %v697
    %1594 = vmatprep.subr.bf16.mxu0 %v702
    %1595 = vmatpush1.bf16.msra.mxu0 %v701
    %1596 = vmatprep.subr.bf16.mxu0 %v706
    %1597 = vmatpush1.bf16.msra.mxu0 %v705
    %1598 = vmatprep.subr.bf16.mxu0 %v710
    %1599 = vmatpush1.bf16.msra.mxu0 %v709
    %1600 = vmatprep.subr.bf16.mxu0 %v714
    %1601 = vmatpush1.bf16.msra.mxu0 %v713
    %1602 = vmatprep.subr.bf16.mxu0 %v718
    %1603 = vmatpush1.bf16.msra.mxu0 %v717
    %1604 = vmatprep.subr.bf16.mxu0 %v722
    %1605 = vmatpush1.bf16.msra.mxu0 %v721
    %1606 = vmatprep.subr.bf16.mxu0 %v726
    %1607 = vmatpush1.bf16.msra.mxu0 %v725
    %1608 = vmatprep.subr.bf16.mxu0 %v730
    %1609 = vmatpush1.bf16.msra.mxu0 %v729
    %1610 = vmatprep.subr.bf16.mxu0 %v734
    %1611 = vmatpush1.bf16.msra.mxu0 %v733
    %1612 = vmatprep.subr.bf16.mxu0 %v738
    %1613 = vmatpush1.bf16.msra.mxu0 %v737
    %1614 = vmatprep.mubr.bf16.mxu0 %v1540
    %1615 = vmatmul.mubr.bf16.gmra.mrb[0].mxu0 %v1539
    %v1616 = vpop.f32.mrb[0].mxu0
    %v1617 = vadd.f32 %v168, %v1616
    %v1618 = vpop.f32.mrb[0].mxu0
    %v1619 = vadd.f32 %v172, %v1618
    %v1620 = vpop.f32.mrb[0].mxu0
    %v1621 = vpop.f32.mrb[0].mxu0
    %1622 = vdwg.mxu0
    %v1623 = vxor.u32 %v1576, 2147483648
    %v1624 = vmul.f32 %v1623, 1.442695
    %v1625 = vpow.pop %v1624
    %v1626 = vadd.f32 %v1625, 1.0
    %v1627 = vrcp.pop %v1626
    %v1628 = vmul.f32 1.0, %v1627
    %v1629 = vxor.u32 %v1578, 2147483648
    %v1630 = vmul.f32 %v1629, 1.442695
    %v1631 = vpow.pop %v1630
    %v1632 = vadd.f32 %v1631, 1.0
    %v1633 = vrcp.pop %v1632
    %v1634 = vmul.f32 1.0, %v1633
    %v1635 = vtanh.pop %v1617
    %v1636 = vxor.u32 %v1619, 2147483648
    %v1637 = vmul.f32 %v1636, 1.442695
    %v1638 = vpow.pop %v1637
    %v1639 = vadd.f32 %v1638, 1.0
    %v1640 = vrcp.pop %v1639
    %v1641 = vmul.f32 1.0, %v1640
    %v1642 = vmul.f32 %v1634, %v1398
    %v1643 = vmul.f32 %v1628, %v1635
    %v1644 = vadd.f32 %v1642, %v1643
    %v1645 = vtanh.pop %v1644
    %v1646 = vmul.f32 %v1641, %v1645
    %s1647 = scalar_lea.vmem %s0, 32
    %v1648 = vld [vmem:[%s1647] sm:$0xff]
    %1649 = vmatprep.subr.bf16.mxu0 %v282
    %1650 = vmatpush1.bf16.msra.mxu0 %v281
    %1651 = vmatprep.subr.bf16.mxu0 %v286
    %1652 = vmatpush1.bf16.msra.mxu0 %v285
    %1653 = vmatprep.subr.bf16.mxu0 %v290
    %1654 = vmatpush1.bf16.msra.mxu0 %v289
    %1655 = vmatprep.subr.bf16.mxu0 %v294
    %1656 = vmatpush1.bf16.msra.mxu0 %v293
    %1657 = vmatprep.subr.bf16.mxu0 %v298
    %1658 = vmatpush1.bf16.msra.mxu0 %v297
    %1659 = vmatprep.subr.bf16.mxu0 %v302
    %1660 = vmatpush1.bf16.msra.mxu0 %v301
    %1661 = vmatprep.subr.bf16.mxu0 %v306
    %1662 = vmatpush1.bf16.msra.mxu0 %v305
    %1663 = vmatprep.subr.bf16.mxu0 %v310
    %1664 = vmatpush1.bf16.msra.mxu0 %v309
    %1665 = vmatprep.subr.bf16.mxu0 0
    %1666 = vmatpush1.bf16.msra.mxu0 0
    %1667 = vmatprep.subr.bf16.mxu0 0
    %1668 = vmatpush1.bf16.msra.mxu0 0
    %1669 = vmatprep.subr.bf16.mxu0 0
    %1670 = vmatpush1.bf16.msra.mxu0 0
    %1671 = vmatprep.subr.bf16.mxu0 0
    %1672 = vmatpush1.bf16.msra.mxu0 0
    %1673 = vmatprep.subr.bf16.mxu0 0
    %1674 = vmatpush1.bf16.msra.mxu0 0
    %1675 = vmatprep.subr.bf16.mxu0 0
    %1676 = vmatpush1.bf16.msra.mxu0 0
    %1677 = vmatprep.subr.bf16.mxu0 0
    %1678 = vmatpush1.bf16.msra.mxu0 0
    %1679 = vmatprep.subr.bf16.mxu0 0
    %1680 = vmatpush1.bf16.msra.mxu0 0
    %1681 = vmatprep.mubr.bf16.mxu0 0
    %1682 = vmatmul.mubr.bf16.gmra.mrb[0].mxu0 %v1539
    %v1683 = vpop.f32.mrb[0].mxu0
    %v1684 = vadd.f32 0.0, %v1683
    %v1685 = vpop.f32.mrb[0].mxu0
    %v1686 = vadd.f32 0.0, %v1685
    %v1687 = vpop.f32.mrb[0].mxu0
    %v1688 = vpop.f32.mrb[0].mxu0
    %1689 = vdwg.mxu0
    %1690 = vmatprep.subr.bf16.mxu0 %v284
    %1691 = vmatpush1.bf16.msra.mxu0 %v283
    %1692 = vmatprep.subr.bf16.mxu0 %v288
    %1693 = vmatpush1.bf16.msra.mxu0 %v287
    %1694 = vmatprep.subr.bf16.mxu0 %v292
    %1695 = vmatpush1.bf16.msra.mxu0 %v291
    %1696 = vmatprep.subr.bf16.mxu0 %v296
    %1697 = vmatpush1.bf16.msra.mxu0 %v295
    %1698 = vmatprep.subr.bf16.mxu0 %v300
    %1699 = vmatpush1.bf16.msra.mxu0 %v299
    %1700 = vmatprep.subr.bf16.mxu0 %v304
    %1701 = vmatpush1.bf16.msra.mxu0 %v303
    %1702 = vmatprep.subr.bf16.mxu0 %v308
    %1703 = vmatpush1.bf16.msra.mxu0 %v307
    %1704 = vmatprep.subr.bf16.mxu0 %v312
    %1705 = vmatpush1.bf16.msra.mxu0 %v311
    %1706 = vmatprep.subr.bf16.mxu0 0
    %1707 = vmatpush1.bf16.msra.mxu0 0
    %1708 = vmatprep.subr.bf16.mxu0 0
    %1709 = vmatpush1.bf16.msra.mxu0 0
    %1710 = vmatprep.subr.bf16.mxu0 0
    %1711 = vmatpush1.bf16.msra.mxu0 0
    %1712 = vmatprep.subr.bf16.mxu0 0
    %1713 = vmatpush1.bf16.msra.mxu0 0
    %1714 = vmatprep.subr.bf16.mxu0 0
    %1715 = vmatpush1.bf16.msra.mxu0 0
    %1716 = vmatprep.subr.bf16.mxu0 0
    %1717 = vmatpush1.bf16.msra.mxu0 0
    %1718 = vmatprep.subr.bf16.mxu0 0
    %1719 = vmatpush1.bf16.msra.mxu0 0
    %1720 = vmatprep.subr.bf16.mxu0 0
    %1721 = vmatpush1.bf16.msra.mxu0 0
    %1722 = vmatprep.mubr.bf16.mxu0 0
    %1723 = vmatmul.mubr.bf16.gmra.mrb[0].mxu0 %v1539
    %v1724 = vpop.f32.mrb[0].mxu0
    %v1725 = vadd.f32 0.0, %v1724
    %v1726 = vpop.f32.mrb[0].mxu0
    %v1727 = vadd.f32 0.0, %v1726
    %v1728 = vpop.f32.mrb[0].mxu0
    %v1729 = vpop.f32.mrb[0].mxu0
    %1730 = vdwg.mxu0
    %v1735 = vcombine.low %v1684, %v1686
    %v1736 = vcombine.low %v1725, %v1727
    %v1738 = vunpack.c.l.s4 1983009808
    %v1739 = vunpack.c.0.s8 %v1738
    %v1740 = vlaneseq
    %v1741 = vshrl.u32 %v1740, 7
    %v1742 = vsub.s32 %v1739, %v1741
    %v1743 = vrot.slane %v1735, %v1742
    %v1745 = vunpack.c.l.s4 1983009808
    %v1746 = vunpack.c.0.s8 %v1745
    %v1747 = vlaneseq
    %v1748 = vshrl.u32 %v1747, 7
    %v1749 = vsub.s32 %v1746, %v1748
    %v1750 = vrot.slane %v1736, %v1749
    %v1751 = vcombine.low %v1743, %v1750
    %v1753 = vadd.f32 %v1648, %v1751
    %v1754 = vxor.u32 %v1753, 2147483648
    %v1755 = vmul.f32 %v1754, 1.442695
    %v1756 = vpow.pop %v1755
    %v1757 = vadd.f32 %v1756, 1.0
    %v1758 = vrcp.pop %v1757
    %v1759 = vmul.f32 1.0, %v1758
    %v1761 = vrot.slane %v1753, 2
    %v1763 = vxor.u32 %v1761, 2147483648
    %v1764 = vmul.f32 %v1763, 1.442695
    %v1765 = vpow.pop %v1764
    %v1766 = vadd.f32 %v1765, 1.0
    %v1767 = vrcp.pop %v1766
    %v1768 = vmul.f32 1.0, %v1767
    %v1769 = vrot.slane %v1753, 4
    %v1771 = vtanh.pop %v1769
    %v1772 = vrot.slane %v1753, 6
    %v1774 = vxor.u32 %v1772, 2147483648
    %v1775 = vmul.f32 %v1774, 1.442695
    %v1776 = vpow.pop %v1775
    %v1777 = vadd.f32 %v1776, 1.0
    %v1778 = vrcp.pop %v1777
    %v1779 = vmul.f32 1.0, %v1778
    %v1780 = vmul.f32 %v1768, %v1536
    %v1781 = vmul.f32 %v1759, %v1771
    %v1782 = vadd.f32 %v1780, %v1781
    %v1783 = vtanh.pop %v1782
    %v1784 = vmul.f32 %v1779, %v1783
    %v1785 = vpack.c.bf16 %v1784, %v1784
    %v1786 = vpack.c.bf16 %v1646, %v1646
    %1787 = vmatprep.subr.bf16.mxu0 %v676
    %1788 = vmatpush1.bf16.msra.mxu0 %v675
    %1789 = vmatprep.subr.bf16.mxu0 %v680
    %1790 = vmatpush1.bf16.msra.mxu0 %v679
    %1791 = vmatprep.subr.bf16.mxu0 %v684
    %1792 = vmatpush1.bf16.msra.mxu0 %v683
    %1793 = vmatprep.subr.bf16.mxu0 %v688
    %1794 = vmatpush1.bf16.msra.mxu0 %v687
    %1795 = vmatprep.subr.bf16.mxu0 %v692
    %1796 = vmatpush1.bf16.msra.mxu0 %v691
    %1797 = vmatprep.subr.bf16.mxu0 %v696
    %1798 = vmatpush1.bf16.msra.mxu0 %v695
    %1799 = vmatprep.subr.bf16.mxu0 %v700
    %1800 = vmatpush1.bf16.msra.mxu0 %v699
    %1801 = vmatprep.subr.bf16.mxu0 %v704
    %1802 = vmatpush1.bf16.msra.mxu0 %v703
    %1803 = vmatprep.subr.bf16.mxu0 %v708
    %1804 = vmatpush1.bf16.msra.mxu0 %v707
    %1805 = vmatprep.subr.bf16.mxu0 %v712
    %1806 = vmatpush1.bf16.msra.mxu0 %v711
    %1807 = vmatprep.subr.bf16.mxu0 %v716
    %1808 = vmatpush1.bf16.msra.mxu0 %v715
    %1809 = vmatprep.subr.bf16.mxu0 %v720
    %1810 = vmatpush1.bf16.msra.mxu0 %v719
    %1811 = vmatprep.subr.bf16.mxu0 %v724
    %1812 = vmatpush1.bf16.msra.mxu0 %v723
    %1813 = vmatprep.subr.bf16.mxu0 %v728
    %1814 = vmatpush1.bf16.msra.mxu0 %v727
    %1815 = vmatprep.subr.bf16.mxu0 %v732
    %1816 = vmatpush1.bf16.msra.mxu0 %v731
    %1817 = vmatprep.subr.bf16.mxu0 %v736
    %1818 = vmatpush1.bf16.msra.mxu0 %v735
    %1819 = vmatprep.mubr.bf16.mxu0 %v1786
    %1820 = vmatmul.mubr.bf16.gmra.mrb[0].mxu0 %v1785
    %v1821 = vpop.f32.mrb[0].mxu0
    %v1822 = vadd.f32 %v160, %v1821
    %v1823 = vpop.f32.mrb[0].mxu0
    %v1824 = vadd.f32 %v164, %v1823
    %v1825 = vpop.f32.mrb[0].mxu0
    %v1826 = vpop.f32.mrb[0].mxu0
    %1827 = vdwg.mxu0
    %1828 = vmatprep.subr.bf16.mxu0 %v678
    %1829 = vmatpush1.bf16.msra.mxu0 %v677
    %1830 = vmatprep.subr.bf16.mxu0 %v682
    %1831 = vmatpush1.bf16.msra.mxu0 %v681
    %1832 = vmatprep.subr.bf16.mxu0 %v686
    %1833 = vmatpush1.bf16.msra.mxu0 %v685
    %1834 = vmatprep.subr.bf16.mxu0 %v690
    %1835 = vmatpush1.bf16.msra.mxu0 %v689
    %1836 = vmatprep.subr.bf16.mxu0 %v694
    %1837 = vmatpush1.bf16.msra.mxu0 %v693
    %1838 = vmatprep.subr.bf16.mxu0 %v698
    %1839 = vmatpush1.bf16.msra.mxu0 %v697
    %1840 = vmatprep.subr.bf16.mxu0 %v702
    %1841 = vmatpush1.bf16.msra.mxu0 %v701
    %1842 = vmatprep.subr.bf16.mxu0 %v706
    %1843 = vmatpush1.bf16.msra.mxu0 %v705
    %1844 = vmatprep.subr.bf16.mxu0 %v710
    %1845 = vmatpush1.bf16.msra.mxu0 %v709
    %1846 = vmatprep.subr.bf16.mxu0 %v714
    %1847 = vmatpush1.bf16.msra.mxu0 %v713
    %1848 = vmatprep.subr.bf16.mxu0 %v718
    %1849 = vmatpush1.bf16.msra.mxu0 %v717
    %1850 = vmatprep.subr.bf16.mxu0 %v722
    %1851 = vmatpush1.bf16.msra.mxu0 %v721
    %1852 = vmatprep.subr.bf16.mxu0 %v726
    %1853 = vmatpush1.bf16.msra.mxu0 %v725
    %1854 = vmatprep.subr.bf16.mxu0 %v730
    %1855 = vmatpush1.bf16.msra.mxu0 %v729
    %1856 = vmatprep.subr.bf16.mxu0 %v734
    %1857 = vmatpush1.bf16.msra.mxu0 %v733
    %1858 = vmatprep.subr.bf16.mxu0 %v738
    %1859 = vmatpush1.bf16.msra.mxu0 %v737
    %1860 = vmatprep.mubr.bf16.mxu0 %v1786
    %1861 = vmatmul.mubr.bf16.gmra.mrb[0].mxu0 %v1785
    %v1862 = vpop.f32.mrb[0].mxu0
    %v1863 = vadd.f32 %v168, %v1862
    %v1864 = vpop.f32.mrb[0].mxu0
    %v1865 = vadd.f32 %v172, %v1864
    %v1866 = vpop.f32.mrb[0].mxu0
    %v1867 = vpop.f32.mrb[0].mxu0
    %1868 = vdwg.mxu0
    %v1869 = vxor.u32 %v1822, 2147483648
    %v1870 = vmul.f32 %v1869, 1.442695
    %v1871 = vpow.pop %v1870
    %v1872 = vadd.f32 %v1871, 1.0
    %v1873 = vrcp.pop %v1872
    %v1874 = vmul.f32 1.0, %v1873
    %v1875 = vxor.u32 %v1824, 2147483648
    %v1876 = vmul.f32 %v1875, 1.442695
    %v1877 = vpow.pop %v1876
    %v1878 = vadd.f32 %v1877, 1.0
    %v1879 = vrcp.pop %v1878
    %v1880 = vmul.f32 1.0, %v1879
    %v1881 = vtanh.pop %v1863
    %v1882 = vxor.u32 %v1865, 2147483648
    %v1883 = vmul.f32 %v1882, 1.442695
    %v1884 = vpow.pop %v1883
    %v1885 = vadd.f32 %v1884, 1.0
    %v1886 = vrcp.pop %v1885
    %v1887 = vmul.f32 1.0, %v1886
    %v1888 = vmul.f32 %v1880, %v1644
    %v1889 = vmul.f32 %v1874, %v1881
    %v1890 = vadd.f32 %v1888, %v1889
    %v1891 = vtanh.pop %v1890
    %v1892 = vmul.f32 %v1887, %v1891
    %s1893 = scalar_lea.vmem %s0, 40
    %v1894 = vld [vmem:[%s1893] sm:$0xff]
    %1895 = vmatprep.subr.bf16.mxu0 %v282
    %1896 = vmatpush1.bf16.msra.mxu0 %v281
    %1897 = vmatprep.subr.bf16.mxu0 %v286
    %1898 = vmatpush1.bf16.msra.mxu0 %v285
    %1899 = vmatprep.subr.bf16.mxu0 %v290
    %1900 = vmatpush1.bf16.msra.mxu0 %v289
    %1901 = vmatprep.subr.bf16.mxu0 %v294
    %1902 = vmatpush1.bf16.msra.mxu0 %v293
    %1903 = vmatprep.subr.bf16.mxu0 %v298
    %1904 = vmatpush1.bf16.msra.mxu0 %v297
    %1905 = vmatprep.subr.bf16.mxu0 %v302
    %1906 = vmatpush1.bf16.msra.mxu0 %v301
    %1907 = vmatprep.subr.bf16.mxu0 %v306
    %1908 = vmatpush1.bf16.msra.mxu0 %v305
    %1909 = vmatprep.subr.bf16.mxu0 %v310
    %1910 = vmatpush1.bf16.msra.mxu0 %v309
    %1911 = vmatprep.subr.bf16.mxu0 0
    %1912 = vmatpush1.bf16.msra.mxu0 0
    %1913 = vmatprep.subr.bf16.mxu0 0
    %1914 = vmatpush1.bf16.msra.mxu0 0
    %1915 = vmatprep.subr.bf16.mxu0 0
    %1916 = vmatpush1.bf16.msra.mxu0 0
    %1917 = vmatprep.subr.bf16.mxu0 0
    %1918 = vmatpush1.bf16.msra.mxu0 0
    %1919 = vmatprep.subr.bf16.mxu0 0
    %1920 = vmatpush1.bf16.msra.mxu0 0
    %1921 = vmatprep.subr.bf16.mxu0 0
    %1922 = vmatpush1.bf16.msra.mxu0 0
    %1923 = vmatprep.subr.bf16.mxu0 0
    %1924 = vmatpush1.bf16.msra.mxu0 0
    %1925 = vmatprep.subr.bf16.mxu0 0
    %1926 = vmatpush1.bf16.msra.mxu0 0
    %1927 = vmatprep.mubr.bf16.mxu0 0
    %1928 = vmatmul.mubr.bf16.gmra.mrb[0].mxu0 %v1785
    %v1929 = vpop.f32.mrb[0].mxu0
    %v1930 = vadd.f32 0.0, %v1929
    %v1931 = vpop.f32.mrb[0].mxu0
    %v1932 = vadd.f32 0.0, %v1931
    %v1933 = vpop.f32.mrb[0].mxu0
    %v1934 = vpop.f32.mrb[0].mxu0
    %1935 = vdwg.mxu0
    %1936 = vmatprep.subr.bf16.mxu0 %v284
    %1937 = vmatpush1.bf16.msra.mxu0 %v283
    %1938 = vmatprep.subr.bf16.mxu0 %v288
    %1939 = vmatpush1.bf16.msra.mxu0 %v287
    %1940 = vmatprep.subr.bf16.mxu0 %v292
    %1941 = vmatpush1.bf16.msra.mxu0 %v291
    %1942 = vmatprep.subr.bf16.mxu0 %v296
    %1943 = vmatpush1.bf16.msra.mxu0 %v295
    %1944 = vmatprep.subr.bf16.mxu0 %v300
    %1945 = vmatpush1.bf16.msra.mxu0 %v299
    %1946 = vmatprep.subr.bf16.mxu0 %v304
    %1947 = vmatpush1.bf16.msra.mxu0 %v303
    %1948 = vmatprep.subr.bf16.mxu0 %v308
    %1949 = vmatpush1.bf16.msra.mxu0 %v307
    %1950 = vmatprep.subr.bf16.mxu0 %v312
    %1951 = vmatpush1.bf16.msra.mxu0 %v311
    %1952 = vmatprep.subr.bf16.mxu0 0
    %1953 = vmatpush1.bf16.msra.mxu0 0
    %1954 = vmatprep.subr.bf16.mxu0 0
    %1955 = vmatpush1.bf16.msra.mxu0 0
    %1956 = vmatprep.subr.bf16.mxu0 0
    %1957 = vmatpush1.bf16.msra.mxu0 0
    %1958 = vmatprep.subr.bf16.mxu0 0
    %1959 = vmatpush1.bf16.msra.mxu0 0
    %1960 = vmatprep.subr.bf16.mxu0 0
    %1961 = vmatpush1.bf16.msra.mxu0 0
    %1962 = vmatprep.subr.bf16.mxu0 0
    %1963 = vmatpush1.bf16.msra.mxu0 0
    %1964 = vmatprep.subr.bf16.mxu0 0
    %1965 = vmatpush1.bf16.msra.mxu0 0
    %1966 = vmatprep.subr.bf16.mxu0 0
    %1967 = vmatpush1.bf16.msra.mxu0 0
    %1968 = vmatprep.mubr.bf16.mxu0 0
    %1969 = vmatmul.mubr.bf16.gmra.mrb[0].mxu0 %v1785
    %v1970 = vpop.f32.mrb[0].mxu0
    %v1971 = vadd.f32 0.0, %v1970
    %v1972 = vpop.f32.mrb[0].mxu0
    %v1973 = vadd.f32 0.0, %v1972
    %v1974 = vpop.f32.mrb[0].mxu0
    %v1975 = vpop.f32.mrb[0].mxu0
    %1976 = vdwg.mxu0
    %v1981 = vcombine.low %v1930, %v1932
    %v1982 = vcombine.low %v1971, %v1973
    %v1984 = vunpack.c.l.s4 1983009808
    %v1985 = vunpack.c.0.s8 %v1984
    %v1986 = vlaneseq
    %v1987 = vshrl.u32 %v1986, 7
    %v1988 = vsub.s32 %v1985, %v1987
    %v1989 = vrot.slane %v1981, %v1988
    %v1991 = vunpack.c.l.s4 1983009808
    %v1992 = vunpack.c.0.s8 %v1991
    %v1993 = vlaneseq
    %v1994 = vshrl.u32 %v1993, 7
    %v1995 = vsub.s32 %v1992, %v1994
    %v1996 = vrot.slane %v1982, %v1995
    %v1997 = vcombine.low %v1989, %v1996
    %v1999 = vadd.f32 %v1894, %v1997
    %v2000 = vxor.u32 %v1999, 2147483648
    %v2001 = vmul.f32 %v2000, 1.442695
    %v2002 = vpow.pop %v2001
    %v2003 = vadd.f32 %v2002, 1.0
    %v2004 = vrcp.pop %v2003
    %v2005 = vmul.f32 1.0, %v2004
    %v2007 = vrot.slane %v1999, 2
    %v2009 = vxor.u32 %v2007, 2147483648
    %v2010 = vmul.f32 %v2009, 1.442695
    %v2011 = vpow.pop %v2010
    %v2012 = vadd.f32 %v2011, 1.0
    %v2013 = vrcp.pop %v2012
    %v2014 = vmul.f32 1.0, %v2013
    %v2015 = vrot.slane %v1999, 4
    %v2017 = vtanh.pop %v2015
    %v2018 = vrot.slane %v1999, 6
    %v2020 = vxor.u32 %v2018, 2147483648
    %v2021 = vmul.f32 %v2020, 1.442695
    %v2022 = vpow.pop %v2021
    %v2023 = vadd.f32 %v2022, 1.0
    %v2024 = vrcp.pop %v2023
    %v2025 = vmul.f32 1.0, %v2024
    %v2026 = vmul.f32 %v2014, %v1782
    %v2027 = vmul.f32 %v2005, %v2017
    %v2028 = vadd.f32 %v2026, %v2027
    %v2029 = vtanh.pop %v2028
    %v2030 = vmul.f32 %v2025, %v2029
    %v2031 = vpack.c.bf16 %v2030, %v2030
    %v2032 = vpack.c.bf16 %v1892, %v1892
    %2033 = vmatprep.subr.bf16.mxu0 %v676
    %2034 = vmatpush1.bf16.msra.mxu0 %v675
    %2035 = vmatprep.subr.bf16.mxu0 %v680
    %2036 = vmatpush1.bf16.msra.mxu0 %v679
    %2037 = vmatprep.subr.bf16.mxu0 %v684
    %2038 = vmatpush1.bf16.msra.mxu0 %v683
    %2039 = vmatprep.subr.bf16.mxu0 %v688
    %2040 = vmatpush1.bf16.msra.mxu0 %v687
    %2041 = vmatprep.subr.bf16.mxu0 %v692
    %2042 = vmatpush1.bf16.msra.mxu0 %v691
    %2043 = vmatprep.subr.bf16.mxu0 %v696
    %2044 = vmatpush1.bf16.msra.mxu0 %v695
    %2045 = vmatprep.subr.bf16.mxu0 %v700
    %2046 = vmatpush1.bf16.msra.mxu0 %v699
    %2047 = vmatprep.subr.bf16.mxu0 %v704
    %2048 = vmatpush1.bf16.msra.mxu0 %v703
    %2049 = vmatprep.subr.bf16.mxu0 %v708
    %2050 = vmatpush1.bf16.msra.mxu0 %v707
    %2051 = vmatprep.subr.bf16.mxu0 %v712
    %2052 = vmatpush1.bf16.msra.mxu0 %v711
    %2053 = vmatprep.subr.bf16.mxu0 %v716
    %2054 = vmatpush1.bf16.msra.mxu0 %v715
    %2055 = vmatprep.subr.bf16.mxu0 %v720
    %2056 = vmatpush1.bf16.msra.mxu0 %v719
    %2057 = vmatprep.subr.bf16.mxu0 %v724
    %2058 = vmatpush1.bf16.msra.mxu0 %v723
    %2059 = vmatprep.subr.bf16.mxu0 %v728
    %2060 = vmatpush1.bf16.msra.mxu0 %v727
    %2061 = vmatprep.subr.bf16.mxu0 %v732
    %2062 = vmatpush1.bf16.msra.mxu0 %v731
    %2063 = vmatprep.subr.bf16.mxu0 %v736
    %2064 = vmatpush1.bf16.msra.mxu0 %v735
    %2065 = vmatprep.mubr.bf16.mxu0 %v2032
    %2066 = vmatmul.mubr.bf16.gmra.mrb[0].mxu0 %v2031
    %v2067 = vpop.f32.mrb[0].mxu0
    %v2068 = vadd.f32 %v160, %v2067
    %v2069 = vpop.f32.mrb[0].mxu0
    %v2070 = vadd.f32 %v164, %v2069
    %v2071 = vpop.f32.mrb[0].mxu0
    %v2072 = vpop.f32.mrb[0].mxu0
    %2073 = vdwg.mxu0
    %2074 = vmatprep.subr.bf16.mxu0 %v678
    %2075 = vmatpush1.bf16.msra.mxu0 %v677
    %2076 = vmatprep.subr.bf16.mxu0 %v682
    %2077 = vmatpush1.bf16.msra.mxu0 %v681
    %2078 = vmatprep.subr.bf16.mxu0 %v686
    %2079 = vmatpush1.bf16.msra.mxu0 %v685
    %2080 = vmatprep.subr.bf16.mxu0 %v690
    %2081 = vmatpush1.bf16.msra.mxu0 %v689
    %2082 = vmatprep.subr.bf16.mxu0 %v694
    %2083 = vmatpush1.bf16.msra.mxu0 %v693
    %2084 = vmatprep.subr.bf16.mxu0 %v698
    %2085 = vmatpush1.bf16.msra.mxu0 %v697
    %2086 = vmatprep.subr.bf16.mxu0 %v702
    %2087 = vmatpush1.bf16.msra.mxu0 %v701
    %2088 = vmatprep.subr.bf16.mxu0 %v706
    %2089 = vmatpush1.bf16.msra.mxu0 %v705
    %2090 = vmatprep.subr.bf16.mxu0 %v710
    %2091 = vmatpush1.bf16.msra.mxu0 %v709
    %2092 = vmatprep.subr.bf16.mxu0 %v714
    %2093 = vmatpush1.bf16.msra.mxu0 %v713
    %2094 = vmatprep.subr.bf16.mxu0 %v718
    %2095 = vmatpush1.bf16.msra.mxu0 %v717
    %2096 = vmatprep.subr.bf16.mxu0 %v722
    %2097 = vmatpush1.bf16.msra.mxu0 %v721
    %2098 = vmatprep.subr.bf16.mxu0 %v726
    %2099 = vmatpush1.bf16.msra.mxu0 %v725
    %2100 = vmatprep.subr.bf16.mxu0 %v730
    %2101 = vmatpush1.bf16.msra.mxu0 %v729
    %2102 = vmatprep.subr.bf16.mxu0 %v734
    %2103 = vmatpush1.bf16.msra.mxu0 %v733
    %2104 = vmatprep.subr.bf16.mxu0 %v738
    %2105 = vmatpush1.bf16.msra.mxu0 %v737
    %2106 = vmatprep.mubr.bf16.mxu0 %v2032
    %2107 = vmatmul.mubr.bf16.gmra.mrb[0].mxu0 %v2031
    %v2108 = vpop.f32.mrb[0].mxu0
    %v2109 = vadd.f32 %v168, %v2108
    %v2110 = vpop.f32.mrb[0].mxu0
    %v2111 = vadd.f32 %v172, %v2110
    %v2112 = vpop.f32.mrb[0].mxu0
    %v2113 = vpop.f32.mrb[0].mxu0
    %2114 = vdwg.mxu0
    %v2115 = vxor.u32 %v2068, 2147483648
    %v2116 = vmul.f32 %v2115, 1.442695
    %v2117 = vpow.pop %v2116
    %v2118 = vadd.f32 %v2117, 1.0
    %v2119 = vrcp.pop %v2118
    %v2120 = vmul.f32 1.0, %v2119
    %v2121 = vxor.u32 %v2070, 2147483648
    %v2122 = vmul.f32 %v2121, 1.442695
    %v2123 = vpow.pop %v2122
    %v2124 = vadd.f32 %v2123, 1.0
    %v2125 = vrcp.pop %v2124
    %v2126 = vmul.f32 1.0, %v2125
    %v2127 = vtanh.pop %v2109
    %v2128 = vxor.u32 %v2111, 2147483648
    %v2129 = vmul.f32 %v2128, 1.442695
    %v2130 = vpow.pop %v2129
    %v2131 = vadd.f32 %v2130, 1.0
    %v2132 = vrcp.pop %v2131
    %v2133 = vmul.f32 1.0, %v2132
    %v2134 = vmul.f32 %v2126, %v1890
    %v2135 = vmul.f32 %v2120, %v2127
    %v2136 = vadd.f32 %v2134, %v2135
    %v2137 = vtanh.pop %v2136
    %v2138 = vmul.f32 %v2133, %v2137
    %s2139 = scalar_lea.vmem %s0, 48
    %v2140 = vld [vmem:[%s2139] sm:$0xff]
    %2141 = vmatprep.subr.bf16.mxu0 %v282
    %2142 = vmatpush1.bf16.msra.mxu0 %v281
    %2143 = vmatprep.subr.bf16.mxu0 %v286
    %2144 = vmatpush1.bf16.msra.mxu0 %v285
    %2145 = vmatprep.subr.bf16.mxu0 %v290
    %2146 = vmatpush1.bf16.msra.mxu0 %v289
    %2147 = vmatprep.subr.bf16.mxu0 %v294
    %2148 = vmatpush1.bf16.msra.mxu0 %v293
    %2149 = vmatprep.subr.bf16.mxu0 %v298
    %2150 = vmatpush1.bf16.msra.mxu0 %v297
    %2151 = vmatprep.subr.bf16.mxu0 %v302
    %2152 = vmatpush1.bf16.msra.mxu0 %v301
    %2153 = vmatprep.subr.bf16.mxu0 %v306
    %2154 = vmatpush1.bf16.msra.mxu0 %v305
    %2155 = vmatprep.subr.bf16.mxu0 %v310
    %2156 = vmatpush1.bf16.msra.mxu0 %v309
    %2157 = vmatprep.subr.bf16.mxu0 0
    %2158 = vmatpush1.bf16.msra.mxu0 0
    %2159 = vmatprep.subr.bf16.mxu0 0
    %2160 = vmatpush1.bf16.msra.mxu0 0
    %2161 = vmatprep.subr.bf16.mxu0 0
    %2162 = vmatpush1.bf16.msra.mxu0 0
    %2163 = vmatprep.subr.bf16.mxu0 0
    %2164 = vmatpush1.bf16.msra.mxu0 0
    %2165 = vmatprep.subr.bf16.mxu0 0
    %2166 = vmatpush1.bf16.msra.mxu0 0
    %2167 = vmatprep.subr.bf16.mxu0 0
    %2168 = vmatpush1.bf16.msra.mxu0 0
    %2169 = vmatprep.subr.bf16.mxu0 0
    %2170 = vmatpush1.bf16.msra.mxu0 0
    %2171 = vmatprep.subr.bf16.mxu0 0
    %2172 = vmatpush1.bf16.msra.mxu0 0
    %2173 = vmatprep.mubr.bf16.mxu0 0
    %2174 = vmatmul.mubr.bf16.gmra.mrb[0].mxu0 %v2031
    %v2175 = vpop.f32.mrb[0].mxu0
    %v2176 = vadd.f32 0.0, %v2175
    %v2177 = vpop.f32.mrb[0].mxu0
    %v2178 = vadd.f32 0.0, %v2177
    %v2179 = vpop.f32.mrb[0].mxu0
    %v2180 = vpop.f32.mrb[0].mxu0
    %2181 = vdwg.mxu0
    %2182 = vmatprep.subr.bf16.mxu0 %v284
    %2183 = vmatpush1.bf16.msra.mxu0 %v283
    %2184 = vmatprep.subr.bf16.mxu0 %v288
    %2185 = vmatpush1.bf16.msra.mxu0 %v287
    %2186 = vmatprep.subr.bf16.mxu0 %v292
    %2187 = vmatpush1.bf16.msra.mxu0 %v291
    %2188 = vmatprep.subr.bf16.mxu0 %v296
    %2189 = vmatpush1.bf16.msra.mxu0 %v295
    %2190 = vmatprep.subr.bf16.mxu0 %v300
    %2191 = vmatpush1.bf16.msra.mxu0 %v299
    %2192 = vmatprep.subr.bf16.mxu0 %v304
    %2193 = vmatpush1.bf16.msra.mxu0 %v303
    %2194 = vmatprep.subr.bf16.mxu0 %v308
    %2195 = vmatpush1.bf16.msra.mxu0 %v307
    %2196 = vmatprep.subr.bf16.mxu0 %v312
    %2197 = vmatpush1.bf16.msra.mxu0 %v311
    %2198 = vmatprep.subr.bf16.mxu0 0
    %2199 = vmatpush1.bf16.msra.mxu0 0
    %2200 = vmatprep.subr.bf16.mxu0 0
    %2201 = vmatpush1.bf16.msra.mxu0 0
    %2202 = vmatprep.subr.bf16.mxu0 0
    %2203 = vmatpush1.bf16.msra.mxu0 0
    %2204 = vmatprep.subr.bf16.mxu0 0
    %2205 = vmatpush1.bf16.msra.mxu0 0
    %2206 = vmatprep.subr.bf16.mxu0 0
    %2207 = vmatpush1.bf16.msra.mxu0 0
    %2208 = vmatprep.subr.bf16.mxu0 0
    %2209 = vmatpush1.bf16.msra.mxu0 0
    %2210 = vmatprep.subr.bf16.mxu0 0
    %2211 = vmatpush1.bf16.msra.mxu0 0
    %2212 = vmatprep.subr.bf16.mxu0 0
    %2213 = vmatpush1.bf16.msra.mxu0 0
    %2214 = vmatprep.mubr.bf16.mxu0 0
    %2215 = vmatmul.mubr.bf16.gmra.mrb[0].mxu0 %v2031
    %v2216 = vpop.f32.mrb[0].mxu0
    %v2217 = vadd.f32 0.0, %v2216
    %v2218 = vpop.f32.mrb[0].mxu0
    %v2219 = vadd.f32 0.0, %v2218
    %v2220 = vpop.f32.mrb[0].mxu0
    %v2221 = vpop.f32.mrb[0].mxu0
    %2222 = vdwg.mxu0
    %v2227 = vcombine.low %v2176, %v2178
    %v2228 = vcombine.low %v2217, %v2219
    %v2230 = vunpack.c.l.s4 1983009808
    %v2231 = vunpack.c.0.s8 %v2230
    %v2232 = vlaneseq
    %v2233 = vshrl.u32 %v2232, 7
    %v2234 = vsub.s32 %v2231, %v2233
    %v2235 = vrot.slane %v2227, %v2234
    %v2237 = vunpack.c.l.s4 1983009808
    %v2238 = vunpack.c.0.s8 %v2237
    %v2239 = vlaneseq
    %v2240 = vshrl.u32 %v2239, 7
    %v2241 = vsub.s32 %v2238, %v2240
    %v2242 = vrot.slane %v2228, %v2241
    %v2243 = vcombine.low %v2235, %v2242
    %v2245 = vadd.f32 %v2140, %v2243
    %v2246 = vxor.u32 %v2245, 2147483648
    %v2247 = vmul.f32 %v2246, 1.442695
    %v2248 = vpow.pop %v2247
    %v2249 = vadd.f32 %v2248, 1.0
    %v2250 = vrcp.pop %v2249
    %v2251 = vmul.f32 1.0, %v2250
    %v2253 = vrot.slane %v2245, 2
    %v2255 = vxor.u32 %v2253, 2147483648
    %v2256 = vmul.f32 %v2255, 1.442695
    %v2257 = vpow.pop %v2256
    %v2258 = vadd.f32 %v2257, 1.0
    %v2259 = vrcp.pop %v2258
    %v2260 = vmul.f32 1.0, %v2259
    %v2261 = vrot.slane %v2245, 4
    %v2263 = vtanh.pop %v2261
    %v2264 = vrot.slane %v2245, 6
    %v2266 = vxor.u32 %v2264, 2147483648
    %v2267 = vmul.f32 %v2266, 1.442695
    %v2268 = vpow.pop %v2267
    %v2269 = vadd.f32 %v2268, 1.0
    %v2270 = vrcp.pop %v2269
    %v2271 = vmul.f32 1.0, %v2270
    %v2272 = vmul.f32 %v2260, %v2028
    %v2273 = vmul.f32 %v2251, %v2263
    %v2274 = vadd.f32 %v2272, %v2273
    %v2275 = vtanh.pop %v2274
    %v2276 = vmul.f32 %v2271, %v2275
    %v2277 = vpack.c.bf16 %v2276, %v2276
    %v2278 = vpack.c.bf16 %v2138, %v2138
    %2279 = vmatprep.subr.bf16.mxu0 %v676
    %2280 = vmatpush1.bf16.msra.mxu0 %v675
    %2281 = vmatprep.subr.bf16.mxu0 %v680
    %2282 = vmatpush1.bf16.msra.mxu0 %v679
    %2283 = vmatprep.subr.bf16.mxu0 %v684
    %2284 = vmatpush1.bf16.msra.mxu0 %v683
    %2285 = vmatprep.subr.bf16.mxu0 %v688
    %2286 = vmatpush1.bf16.msra.mxu0 %v687
    %2287 = vmatprep.subr.bf16.mxu0 %v692
    %2288 = vmatpush1.bf16.msra.mxu0 %v691
    %2289 = vmatprep.subr.bf16.mxu0 %v696
    %2290 = vmatpush1.bf16.msra.mxu0 %v695
    %2291 = vmatprep.subr.bf16.mxu0 %v700
    %2292 = vmatpush1.bf16.msra.mxu0 %v699
    %2293 = vmatprep.subr.bf16.mxu0 %v704
    %2294 = vmatpush1.bf16.msra.mxu0 %v703
    %2295 = vmatprep.subr.bf16.mxu0 %v708
    %2296 = vmatpush1.bf16.msra.mxu0 %v707
    %2297 = vmatprep.subr.bf16.mxu0 %v712
    %2298 = vmatpush1.bf16.msra.mxu0 %v711
    %2299 = vmatprep.subr.bf16.mxu0 %v716
    %2300 = vmatpush1.bf16.msra.mxu0 %v715
    %2301 = vmatprep.subr.bf16.mxu0 %v720
    %2302 = vmatpush1.bf16.msra.mxu0 %v719
    %2303 = vmatprep.subr.bf16.mxu0 %v724
    %2304 = vmatpush1.bf16.msra.mxu0 %v723
    %2305 = vmatprep.subr.bf16.mxu0 %v728
    %2306 = vmatpush1.bf16.msra.mxu0 %v727
    %2307 = vmatprep.subr.bf16.mxu0 %v732
    %2308 = vmatpush1.bf16.msra.mxu0 %v731
    %2309 = vmatprep.subr.bf16.mxu0 %v736
    %2310 = vmatpush1.bf16.msra.mxu0 %v735
    %2311 = vmatprep.mubr.bf16.mxu0 %v2278
    %2312 = vmatmul.mubr.bf16.gmra.mrb[0].mxu0 %v2277
    %v2313 = vpop.f32.mrb[0].mxu0
    %v2314 = vadd.f32 %v160, %v2313
    %v2315 = vpop.f32.mrb[0].mxu0
    %v2316 = vadd.f32 %v164, %v2315
    %v2317 = vpop.f32.mrb[0].mxu0
    %v2318 = vpop.f32.mrb[0].mxu0
    %2319 = vdwg.mxu0
    %2320 = vmatprep.subr.bf16.mxu0 %v678
    %2321 = vmatpush1.bf16.msra.mxu0 %v677
    %2322 = vmatprep.subr.bf16.mxu0 %v682
    %2323 = vmatpush1.bf16.msra.mxu0 %v681
    %2324 = vmatprep.subr.bf16.mxu0 %v686
    %2325 = vmatpush1.bf16.msra.mxu0 %v685
    %2326 = vmatprep.subr.bf16.mxu0 %v690
    %2327 = vmatpush1.bf16.msra.mxu0 %v689
    %2328 = vmatprep.subr.bf16.mxu0 %v694
    %2329 = vmatpush1.bf16.msra.mxu0 %v693
    %2330 = vmatprep.subr.bf16.mxu0 %v698
    %2331 = vmatpush1.bf16.msra.mxu0 %v697
    %2332 = vmatprep.subr.bf16.mxu0 %v702
    %2333 = vmatpush1.bf16.msra.mxu0 %v701
    %2334 = vmatprep.subr.bf16.mxu0 %v706
    %2335 = vmatpush1.bf16.msra.mxu0 %v705
    %2336 = vmatprep.subr.bf16.mxu0 %v710
    %2337 = vmatpush1.bf16.msra.mxu0 %v709
    %2338 = vmatprep.subr.bf16.mxu0 %v714
    %2339 = vmatpush1.bf16.msra.mxu0 %v713
    %2340 = vmatprep.subr.bf16.mxu0 %v718
    %2341 = vmatpush1.bf16.msra.mxu0 %v717
    %2342 = vmatprep.subr.bf16.mxu0 %v722
    %2343 = vmatpush1.bf16.msra.mxu0 %v721
    %2344 = vmatprep.subr.bf16.mxu0 %v726
    %2345 = vmatpush1.bf16.msra.mxu0 %v725
    %2346 = vmatprep.subr.bf16.mxu0 %v730
    %2347 = vmatpush1.bf16.msra.mxu0 %v729
    %2348 = vmatprep.subr.bf16.mxu0 %v734
    %2349 = vmatpush1.bf16.msra.mxu0 %v733
    %2350 = vmatprep.subr.bf16.mxu0 %v738
    %2351 = vmatpush1.bf16.msra.mxu0 %v737
    %2352 = vmatprep.mubr.bf16.mxu0 %v2278
    %2353 = vmatmul.mubr.bf16.gmra.mrb[0].mxu0 %v2277
    %v2354 = vpop.f32.mrb[0].mxu0
    %v2355 = vadd.f32 %v168, %v2354
    %v2356 = vpop.f32.mrb[0].mxu0
    %v2357 = vadd.f32 %v172, %v2356
    %v2358 = vpop.f32.mrb[0].mxu0
    %v2359 = vpop.f32.mrb[0].mxu0
    %2360 = vdwg.mxu0
    %v2361 = vxor.u32 %v2314, 2147483648
    %v2362 = vmul.f32 %v2361, 1.442695
    %v2363 = vpow.pop %v2362
    %v2364 = vadd.f32 %v2363, 1.0
    %v2365 = vrcp.pop %v2364
    %v2366 = vmul.f32 1.0, %v2365
    %v2367 = vxor.u32 %v2316, 2147483648
    %v2368 = vmul.f32 %v2367, 1.442695
    %v2369 = vpow.pop %v2368
    %v2370 = vadd.f32 %v2369, 1.0
    %v2371 = vrcp.pop %v2370
    %v2372 = vmul.f32 1.0, %v2371
    %v2373 = vtanh.pop %v2355
    %v2374 = vxor.u32 %v2357, 2147483648
    %v2375 = vmul.f32 %v2374, 1.442695
    %v2376 = vpow.pop %v2375
    %v2377 = vadd.f32 %v2376, 1.0
    %v2378 = vrcp.pop %v2377
    %v2379 = vmul.f32 1.0, %v2378
    %v2380 = vmul.f32 %v2372, %v2136
    %v2381 = vmul.f32 %v2366, %v2373
    %v2382 = vadd.f32 %v2380, %v2381
    %v2383 = vtanh.pop %v2382
    %v2384 = vmul.f32 %v2379, %v2383
    %s2385 = scalar_lea.vmem %s0, 56
    %v2386 = vld [vmem:[%s2385] sm:$0xff]
    %2387 = vmatprep.subr.bf16.mxu0 %v282
    %2388 = vmatpush1.bf16.msra.mxu0 %v281
    %2389 = vmatprep.subr.bf16.mxu0 %v286
    %2390 = vmatpush1.bf16.msra.mxu0 %v285
    %2391 = vmatprep.subr.bf16.mxu0 %v290
    %2392 = vmatpush1.bf16.msra.mxu0 %v289
    %2393 = vmatprep.subr.bf16.mxu0 %v294
    %2394 = vmatpush1.bf16.msra.mxu0 %v293
    %2395 = vmatprep.subr.bf16.mxu0 %v298
    %2396 = vmatpush1.bf16.msra.mxu0 %v297
    %2397 = vmatprep.subr.bf16.mxu0 %v302
    %2398 = vmatpush1.bf16.msra.mxu0 %v301
    %2399 = vmatprep.subr.bf16.mxu0 %v306
    %2400 = vmatpush1.bf16.msra.mxu0 %v305
    %2401 = vmatprep.subr.bf16.mxu0 %v310
    %2402 = vmatpush1.bf16.msra.mxu0 %v309
    %2403 = vmatprep.subr.bf16.mxu0 0
    %2404 = vmatpush1.bf16.msra.mxu0 0
    %2405 = vmatprep.subr.bf16.mxu0 0
    %2406 = vmatpush1.bf16.msra.mxu0 0
    %2407 = vmatprep.subr.bf16.mxu0 0
    %2408 = vmatpush1.bf16.msra.mxu0 0
    %2409 = vmatprep.subr.bf16.mxu0 0
    %2410 = vmatpush1.bf16.msra.mxu0 0
    %2411 = vmatprep.subr.bf16.mxu0 0
    %2412 = vmatpush1.bf16.msra.mxu0 0
    %2413 = vmatprep.subr.bf16.mxu0 0
    %2414 = vmatpush1.bf16.msra.mxu0 0
    %2415 = vmatprep.subr.bf16.mxu0 0
    %2416 = vmatpush1.bf16.msra.mxu0 0
    %2417 = vmatprep.subr.bf16.mxu0 0
    %2418 = vmatpush1.bf16.msra.mxu0 0
    %2419 = vmatprep.mubr.bf16.mxu0 0
    %2420 = vmatmul.mubr.bf16.gmra.mrb[0].mxu0 %v2277
    %v2421 = vpop.f32.mrb[0].mxu0
    %v2422 = vadd.f32 0.0, %v2421
    %v2423 = vpop.f32.mrb[0].mxu0
    %v2424 = vadd.f32 0.0, %v2423
    %v2425 = vpop.f32.mrb[0].mxu0
    %v2426 = vpop.f32.mrb[0].mxu0
    %2427 = vdwg.mxu0
    %2428 = vmatprep.subr.bf16.mxu0 %v284
    %2429 = vmatpush1.bf16.msra.mxu0 %v283
    %2430 = vmatprep.subr.bf16.mxu0 %v288
    %2431 = vmatpush1.bf16.msra.mxu0 %v287
    %2432 = vmatprep.subr.bf16.mxu0 %v292
    %2433 = vmatpush1.bf16.msra.mxu0 %v291
    %2434 = vmatprep.subr.bf16.mxu0 %v296
    %2435 = vmatpush1.bf16.msra.mxu0 %v295
    %2436 = vmatprep.subr.bf16.mxu0 %v300
    %2437 = vmatpush1.bf16.msra.mxu0 %v299
    %2438 = vmatprep.subr.bf16.mxu0 %v304
    %2439 = vmatpush1.bf16.msra.mxu0 %v303
    %2440 = vmatprep.subr.bf16.mxu0 %v308
    %2441 = vmatpush1.bf16.msra.mxu0 %v307
    %2442 = vmatprep.subr.bf16.mxu0 %v312
    %2443 = vmatpush1.bf16.msra.mxu0 %v311
    %2444 = vmatprep.subr.bf16.mxu0 0
    %2445 = vmatpush1.bf16.msra.mxu0 0
    %2446 = vmatprep.subr.bf16.mxu0 0
    %2447 = vmatpush1.bf16.msra.mxu0 0
    %2448 = vmatprep.subr.bf16.mxu0 0
    %2449 = vmatpush1.bf16.msra.mxu0 0
    %2450 = vmatprep.subr.bf16.mxu0 0
    %2451 = vmatpush1.bf16.msra.mxu0 0
    %2452 = vmatprep.subr.bf16.mxu0 0
    %2453 = vmatpush1.bf16.msra.mxu0 0
    %2454 = vmatprep.subr.bf16.mxu0 0
    %2455 = vmatpush1.bf16.msra.mxu0 0
    %2456 = vmatprep.subr.bf16.mxu0 0
    %2457 = vmatpush1.bf16.msra.mxu0 0
    %2458 = vmatprep.subr.bf16.mxu0 0
    %2459 = vmatpush1.bf16.msra.mxu0 0
    %2460 = vmatprep.mubr.bf16.mxu0 0
    %2461 = vmatmul.mubr.bf16.gmra.mrb[0].mxu0 %v2277
    %v2462 = vpop.f32.mrb[0].mxu0
    %v2463 = vadd.f32 0.0, %v2462
    %v2464 = vpop.f32.mrb[0].mxu0
    %v2465 = vadd.f32 0.0, %v2464
    %v2466 = vpop.f32.mrb[0].mxu0
    %v2467 = vpop.f32.mrb[0].mxu0
    %2468 = vdwg.mxu0
    %v2473 = vcombine.low %v2422, %v2424
    %v2474 = vcombine.low %v2463, %v2465
    %v2476 = vunpack.c.l.s4 1983009808
    %v2477 = vunpack.c.0.s8 %v2476
    %v2478 = vlaneseq
    %v2479 = vshrl.u32 %v2478, 7
    %v2480 = vsub.s32 %v2477, %v2479
    %v2481 = vrot.slane %v2473, %v2480
    %v2483 = vunpack.c.l.s4 1983009808
    %v2484 = vunpack.c.0.s8 %v2483
    %v2485 = vlaneseq
    %v2486 = vshrl.u32 %v2485, 7
    %v2487 = vsub.s32 %v2484, %v2486
    %v2488 = vrot.slane %v2474, %v2487
    %v2489 = vcombine.low %v2481, %v2488
    %v2491 = vadd.f32 %v2386, %v2489
    %v2492 = vxor.u32 %v2491, 2147483648
    %v2493 = vmul.f32 %v2492, 1.442695
    %v2494 = vpow.pop %v2493
    %v2495 = vadd.f32 %v2494, 1.0
    %v2496 = vrcp.pop %v2495
    %v2497 = vmul.f32 1.0, %v2496
    %v2499 = vrot.slane %v2491, 2
    %v2501 = vxor.u32 %v2499, 2147483648
    %v2502 = vmul.f32 %v2501, 1.442695
    %v2503 = vpow.pop %v2502
    %v2504 = vadd.f32 %v2503, 1.0
    %v2505 = vrcp.pop %v2504
    %v2506 = vmul.f32 1.0, %v2505
    %v2507 = vrot.slane %v2491, 4
    %v2509 = vtanh.pop %v2507
    %v2510 = vrot.slane %v2491, 6
    %v2512 = vxor.u32 %v2510, 2147483648
    %v2513 = vmul.f32 %v2512, 1.442695
    %v2514 = vpow.pop %v2513
    %v2515 = vadd.f32 %v2514, 1.0
    %v2516 = vrcp.pop %v2515
    %v2517 = vmul.f32 1.0, %v2516
    %v2518 = vmul.f32 %v2506, %v2274
    %v2519 = vmul.f32 %v2497, %v2509
    %v2520 = vadd.f32 %v2518, %v2519
    %v2521 = vtanh.pop %v2520
    %v2522 = vmul.f32 %v2517, %v2521
    %v2523 = vpack.c.bf16 %v2522, %v2522
    %v2524 = vpack.c.bf16 %v2384, %v2384
    %2525 = vmatprep.subr.bf16.mxu0 %v676
    %2526 = vmatpush1.bf16.msra.mxu0 %v675
    %2527 = vmatprep.subr.bf16.mxu0 %v680
    %2528 = vmatpush1.bf16.msra.mxu0 %v679
    %2529 = vmatprep.subr.bf16.mxu0 %v684
    %2530 = vmatpush1.bf16.msra.mxu0 %v683
    %2531 = vmatprep.subr.bf16.mxu0 %v688
    %2532 = vmatpush1.bf16.msra.mxu0 %v687
    %2533 = vmatprep.subr.bf16.mxu0 %v692
    %2534 = vmatpush1.bf16.msra.mxu0 %v691
    %2535 = vmatprep.subr.bf16.mxu0 %v696
    %2536 = vmatpush1.bf16.msra.mxu0 %v695
    %2537 = vmatprep.subr.bf16.mxu0 %v700
    %2538 = vmatpush1.bf16.msra.mxu0 %v699
    %2539 = vmatprep.subr.bf16.mxu0 %v704
    %2540 = vmatpush1.bf16.msra.mxu0 %v703
    %2541 = vmatprep.subr.bf16.mxu0 %v708
    %2542 = vmatpush1.bf16.msra.mxu0 %v707
    %2543 = vmatprep.subr.bf16.mxu0 %v712
    %2544 = vmatpush1.bf16.msra.mxu0 %v711
    %2545 = vmatprep.subr.bf16.mxu0 %v716
    %2546 = vmatpush1.bf16.msra.mxu0 %v715
    %2547 = vmatprep.subr.bf16.mxu0 %v720
    %2548 = vmatpush1.bf16.msra.mxu0 %v719
    %2549 = vmatprep.subr.bf16.mxu0 %v724
    %2550 = vmatpush1.bf16.msra.mxu0 %v723
    %2551 = vmatprep.subr.bf16.mxu0 %v728
    %2552 = vmatpush1.bf16.msra.mxu0 %v727
    %2553 = vmatprep.subr.bf16.mxu0 %v732
    %2554 = vmatpush1.bf16.msra.mxu0 %v731
    %2555 = vmatprep.subr.bf16.mxu0 %v736
    %2556 = vmatpush1.bf16.msra.mxu0 %v735
    %2557 = vmatprep.mubr.bf16.mxu0 %v2524
    %2558 = vmatmul.mubr.bf16.gmra.mrb[0].mxu0 %v2523
    %v2559 = vpop.f32.mrb[0].mxu0
    %v2560 = vadd.f32 %v160, %v2559
    %v2561 = vpop.f32.mrb[0].mxu0
    %v2562 = vadd.f32 %v164, %v2561
    %v2563 = vpop.f32.mrb[0].mxu0
    %v2564 = vpop.f32.mrb[0].mxu0
    %2565 = vdwg.mxu0
    %2566 = vmatprep.subr.bf16.mxu0 %v678
    %2567 = vmatpush1.bf16.msra.mxu0 %v677
    %2568 = vmatprep.subr.bf16.mxu0 %v682
    %2569 = vmatpush1.bf16.msra.mxu0 %v681
    %2570 = vmatprep.subr.bf16.mxu0 %v686
    %2571 = vmatpush1.bf16.msra.mxu0 %v685
    %2572 = vmatprep.subr.bf16.mxu0 %v690
    %2573 = vmatpush1.bf16.msra.mxu0 %v689
    %2574 = vmatprep.subr.bf16.mxu0 %v694
    %2575 = vmatpush1.bf16.msra.mxu0 %v693
    %2576 = vmatprep.subr.bf16.mxu0 %v698
    %2577 = vmatpush1.bf16.msra.mxu0 %v697
    %2578 = vmatprep.subr.bf16.mxu0 %v702
    %2579 = vmatpush1.bf16.msra.mxu0 %v701
    %2580 = vmatprep.subr.bf16.mxu0 %v706
    %2581 = vmatpush1.bf16.msra.mxu0 %v705
    %2582 = vmatprep.subr.bf16.mxu0 %v710
    %2583 = vmatpush1.bf16.msra.mxu0 %v709
    %2584 = vmatprep.subr.bf16.mxu0 %v714
    %2585 = vmatpush1.bf16.msra.mxu0 %v713
    %2586 = vmatprep.subr.bf16.mxu0 %v718
    %2587 = vmatpush1.bf16.msra.mxu0 %v717
    %2588 = vmatprep.subr.bf16.mxu0 %v722
    %2589 = vmatpush1.bf16.msra.mxu0 %v721
    %2590 = vmatprep.subr.bf16.mxu0 %v726
    %2591 = vmatpush1.bf16.msra.mxu0 %v725
    %2592 = vmatprep.subr.bf16.mxu0 %v730
    %2593 = vmatpush1.bf16.msra.mxu0 %v729
    %2594 = vmatprep.subr.bf16.mxu0 %v734
    %2595 = vmatpush1.bf16.msra.mxu0 %v733
    %2596 = vmatprep.subr.bf16.mxu0 %v738
    %2597 = vmatpush1.bf16.msra.mxu0 %v737
    %2598 = vmatprep.mubr.bf16.mxu0 %v2524
    %2599 = vmatmul.mubr.bf16.gmra.mrb[0].mxu0 %v2523
    %v2600 = vpop.f32.mrb[0].mxu0
    %v2601 = vadd.f32 %v168, %v2600
    %v2602 = vpop.f32.mrb[0].mxu0
    %v2603 = vadd.f32 %v172, %v2602
    %v2604 = vpop.f32.mrb[0].mxu0
    %v2605 = vpop.f32.mrb[0].mxu0
    %2606 = vdwg.mxu0
    %v2607 = vxor.u32 %v2560, 2147483648
    %v2608 = vmul.f32 %v2607, 1.442695
    %v2609 = vpow.pop %v2608
    %v2610 = vadd.f32 %v2609, 1.0
    %v2611 = vrcp.pop %v2610
    %v2612 = vmul.f32 1.0, %v2611
    %v2613 = vxor.u32 %v2562, 2147483648
    %v2614 = vmul.f32 %v2613, 1.442695
    %v2615 = vpow.pop %v2614
    %v2616 = vadd.f32 %v2615, 1.0
    %v2617 = vrcp.pop %v2616
    %v2618 = vmul.f32 1.0, %v2617
    %v2619 = vtanh.pop %v2601
    %v2620 = vxor.u32 %v2603, 2147483648
    %v2621 = vmul.f32 %v2620, 1.442695
    %v2622 = vpow.pop %v2621
    %v2623 = vadd.f32 %v2622, 1.0
    %v2624 = vrcp.pop %v2623
    %v2625 = vmul.f32 1.0, %v2624
    %v2626 = vmul.f32 %v2618, %v2382
    %v2627 = vmul.f32 %v2612, %v2619
    %v2628 = vadd.f32 %v2626, %v2627
    %v2629 = vtanh.pop %v2628
    %v2630 = vmul.f32 %v2625, %v2629
    %v2631 = vpack.c.bf16 %v2630, %v2630
    %v2632 = vld [vmem:[%s6] sm:$0xf]
    %v2633 = vld [vmem:[%s6 + $0x4] sm:$0xf]
    %v2634 = vld [vmem:[%s6 + $0x8] sm:$0xf]
    %v2635 = vld [vmem:[%s6 + $0xc] sm:$0xf]
    %v2636 = vld [vmem:[%s6 + $0x10] sm:$0xf]
    %v2637 = vld [vmem:[%s6 + $0x14] sm:$0xf]
    %v2638 = vld [vmem:[%s6 + $0x18] sm:$0xf]
    %v2639 = vld [vmem:[%s6 + $0x1c] sm:$0xf]
    %v2640 = vld [vmem:[%s6 + $0x20] sm:$0xf]
    %v2641 = vld [vmem:[%s6 + $0x24] sm:$0xf]
    %v2642 = vld [vmem:[%s6 + $0x28] sm:$0xf]
    %v2643 = vld [vmem:[%s6 + $0x2c] sm:$0xf]
    %v2644 = vld [vmem:[%s6 + $0x30] sm:$0xf]
    %v2645 = vld [vmem:[%s6 + $0x34] sm:$0xf]
    %v2646 = vld [vmem:[%s6 + $0x38] sm:$0xf]
    %v2647 = vld [vmem:[%s6 + $0x3c] sm:$0xf]
    %v2648 = vld [vmem:[%s7] sm:$0x1]
    %v2650 = vlaneseq
    %v2651 = vshrl.u32 %v2650, 7
    %v2652 = vsub.s32 0, %v2651
    %v2653 = vrot.slane %v2648, %v2652
    %v2671 = vunpack.c.l.b16 %v2632
    %v2672 = vunpack.c.l.b16 %v2633
    %v2673 = vunpack.c.l.b16 %v2634
    %v2674 = vunpack.c.l.b16 %v2635
    %v2675 = vunpack.c.l.b16 %v2636
    %v2676 = vunpack.c.l.b16 %v2637
    %v2677 = vunpack.c.l.b16 %v2638
    %v2678 = vunpack.c.l.b16 %v2639
    %v2679 = vunpack.c.l.b16 %v2640
    %v2680 = vunpack.c.l.b16 %v2641
    %v2681 = vunpack.c.l.b16 %v2642
    %v2682 = vunpack.c.l.b16 %v2643
    %v2683 = vunpack.c.l.b16 %v2644
    %v2684 = vunpack.c.l.b16 %v2645
    %v2685 = vunpack.c.l.b16 %v2646
    %v2686 = vunpack.c.l.b16 %v2647
    %v2687 = vpack.c.b16 %v2672, %v2671
    %v2688 = vpack.c.b16 %v2674, %v2673
    %v2689 = vpack.c.b16 %v2676, %v2675
    %v2690 = vpack.c.b16 %v2678, %v2677
    %v2691 = vpack.c.b16 %v2680, %v2679
    %v2692 = vpack.c.b16 %v2682, %v2681
    %v2693 = vpack.c.b16 %v2684, %v2683
    %v2694 = vpack.c.b16 %v2686, %v2685
    %2703 = vmatprep.subr.bf16.mxu0 0
    %2704 = vmatpush1.bf16.msra.mxu0 %v2687
    %2705 = vmatprep.subr.bf16.mxu0 0
    %2706 = vmatpush1.bf16.msra.mxu0 %v2688
    %2707 = vmatprep.subr.bf16.mxu0 0
    %2708 = vmatpush1.bf16.msra.mxu0 %v2689
    %2709 = vmatprep.subr.bf16.mxu0 0
    %2710 = vmatpush1.bf16.msra.mxu0 %v2690
    %2711 = vmatprep.subr.bf16.mxu0 0
    %2712 = vmatpush1.bf16.msra.mxu0 %v2691
    %2713 = vmatprep.subr.bf16.mxu0 0
    %2714 = vmatpush1.bf16.msra.mxu0 %v2692
    %2715 = vmatprep.subr.bf16.mxu0 0
    %2716 = vmatpush1.bf16.msra.mxu0 %v2693
    %2717 = vmatprep.subr.bf16.mxu0 0
    %2718 = vmatpush1.bf16.msra.mxu0 %v2694
    %2719 = vmatprep.subr.bf16.mxu0 0
    %2720 = vmatpush1.bf16.msra.mxu0 0
    %2721 = vmatprep.subr.bf16.mxu0 0
    %2722 = vmatpush1.bf16.msra.mxu0 0
    %2723 = vmatprep.subr.bf16.mxu0 0
    %2724 = vmatpush1.bf16.msra.mxu0 0
    %2725 = vmatprep.subr.bf16.mxu0 0
    %2726 = vmatpush1.bf16.msra.mxu0 0
    %2727 = vmatprep.subr.bf16.mxu0 0
    %2728 = vmatpush1.bf16.msra.mxu0 0
    %2729 = vmatprep.subr.bf16.mxu0 0
    %2730 = vmatpush1.bf16.msra.mxu0 0
    %2731 = vmatprep.subr.bf16.mxu0 0
    %2732 = vmatpush1.bf16.msra.mxu0 0
    %2733 = vmatprep.subr.bf16.mxu0 0
    %2734 = vmatpush1.bf16.msra.mxu0 0
    %2735 = vmatprep.mubr.bf16.mxu0 0
    %2736 = vmatmul.mubr.bf16.gmra.mrb[0].mxu0 %v2631
    %v2737 = vpop.f32.mrb[0].mxu0
    %v2738 = vadd.f32 %v2653, %v2737
    %v2739 = vpop.f32.mrb[0].mxu0
    %v2740 = vpop.f32.mrb[0].mxu0
    %v2741 = vpop.f32.mrb[0].mxu0
    %2742 = vdwg.mxu0
    %2743 = vst [vmem:[#allocation7] sm:$0x3] %v2738
    // Predicated region
    $region42: #{lstm_net_forward.1} parent=1 // pred_check
      _
    $region43: #{lstm_net_forward.1} parent=1 // pred_check_branch
      %2745 = sbr.rel (0) target = $region45
    $region44: #{lstm_net_forward.1} parent=1 // pred_region
      %s2747 = ssub.s32 32, 32
      %2748 = vsyncadd [#allocation4], %s2747
      %s2750 = sshll.u32 [#allocation7], 4
      %s2751 = int_to_ptr.vmem [resolvable:$true] %s2750
      %2753 = dma.vmem_to_hbm [thread:$0]  %s2751, 32, %s8, [#allocation4]
    $region45: #{lstm_net_forward.1} parent=1 // pred_fallthru
      _
    // Predicated region
    $region46: #{lstm_net_forward.1} parent=1 // pred_check
      _
    $region47: #{lstm_net_forward.1} parent=1 // pred_check_branch
      %2755 = sbr.rel (0) target = $region49
    $region48: #{lstm_net_forward.1} parent=1 // pred_region
      %2756 = dma.done [#allocation4], 32
    $region49: #{lstm_net_forward.1} parent=1 // pred_fallthru
      _
    %2757 = vsyncpa [#allocation3], 1
    %2758 = vsyncpa [#allocation6], 1
    %2759 = vsyncpa [#allocation4], 1

</llo_original>
